<compile_context>
chip_gen: v5e
topology: v5e:2x2
jax: 0.10.0
libtpu: 0.0.40
codegen_flags: <defaults>
</compile_context>

<pallas_src>
import jax
import jax.numpy as jnp
from jax.experimental import pallas as pl
from jax.experimental.pallas import tpu as pltpu

HIDDEN = 500
NUM_CLASSES = 10
IMG = 28                    # 28x28 -> conv(3) -> 26x26 -> pool(2,2) -> 13x13
POOL_OUT = 13
PP = POOL_OUT * POOL_OUT    # 169 valid pooled pixels per conv channel
WL = 14 * 14                # 196-lane per-channel layout used in-kernel (lane = i*14 + j)
PH = 224                    # padded phase width (>= WL + 15 so shifted slices stay in range)
FLAT = 3 * PP               # 507
HP = 512                    # padded hidden (500 -> 512, lane-dense)
CP = 128                    # padded num_classes (10 -> 128, lane-dense logits store)
N_WIN = 16                  # 4x4 shifted stride-2 windows (derived in-kernel)


# ---------------- fused Pallas kernel ----------------

def fused_kernel(cw_ref, cb_ref, x_ref,
                 w1a_ref, w1b_ref, w1c_ref, b1_ref,
                 w2_ref, b2_ref, w3_ref, b3_ref, out_ref, *wins):
    # Stage the 16 stride-2 shifted windows into VMEM scratch (196-lane layout).
    # Window (dr, dc), dr,dc in 0..3, holds x[n, 2i+dr, 2j+dc] at lane i*14+j for
    # i, j <= 12; lanes with i == 13 or j == 13 are don't-care (their W1 rows are 0).
    for p in range(4):                       # phase (r, c): r = p // 2, c = p % 2
        ph = x_ref[p]                        # [TN, PH] f32, single load per phase
        for u in range(2):                   # dr = r + 2u
            for v in range(2):               # dc = c + 2v
                w = (p // 2 + 2 * u) * 4 + (p % 2 + 2 * v)
                s = u * 14 + v               # lane shift within the phase
                wins[w][...] = ph[:, s:s + WL]

    cw = [cw_ref[k] for k in range(27)]      # conv weights, index c*9 + di*3 + dj (SMEM)
    cb = [cb_ref[c] for c in range(3)]       # conv bias (SMEM)
    w1_refs = (w1a_ref, w1b_ref, w1c_ref)

    # Conv + maxpool (VPU, f32) and layer-1 partial dot per channel (MXU, bf16 operands).
    h = None
    for c in range(3):
        pc = None
        for a in range(2):                   # pool-window row offset
            for b in range(2):               # pool-window col offset
                acc = None
                for di in range(3):
                    for dj in range(3):
                        wv = wins[(a + di) * 4 + (b + dj)][...]   # streamed at point of use
                        term = cw[c * 9 + di * 3 + dj] * wv
                        acc = term if acc is None else acc + term
                pc = acc if pc is None else jnp.maximum(pc, acc)
        pooled_c = pc + cb[c]                                     # [TN, WL] f32
        part = jnp.dot(pooled_c.astype(jnp.bfloat16), w1_refs[c][...],
                       preferred_element_type=jnp.float32)        # [TN, HP] f32
        h = part if h is None else h + part

    # MLP tail (bf16 MXU operands, f32 accumulate, f32 biases).
    h = jnp.maximum(h + b1_ref[...], 0.0)
    h = jnp.maximum(jnp.dot(h.astype(jnp.bfloat16), w2_ref[...],
                            preferred_element_type=jnp.float32) + b2_ref[...], 0.0)
    out_ref[...] = (jnp.dot(h.astype(jnp.bfloat16), w3_ref[...],
                            preferred_element_type=jnp.float32) + b3_ref[...])


# ---------------- wrapper ----------------

def _round_up(v, m):
    return (v + m - 1) // m * m


def neuralnet_forward(x, params):
    """x: [N, 1, 28, 28] float32 (NCHW). Returns logits [N, 10]."""
    N = x.shape[0]
    assert x.shape[1:] == (1, IMG, IMG)
    x2 = x[:, 0].astype(jnp.float32)                       # [N, 28, 28]

    # Cheap XLA prep: 4 stride-2 phase grids, lane-dense [4, N, 196]
    # phases[r*2+c][n, i*14+j] = x[n, 2i+r, 2j+c]
    phases = (x2.reshape(N, 14, 2, 14, 2)
                .transpose(2, 4, 0, 1, 3)
                .reshape(4, N, WL))

    # Batch tiling: TN=256 fills the 256-wide MXU M dim (v6e/v7x) but only when we keep
    # >= 2 grid steps so the "parallel" batch axis can span v7x's two TensorCores.
    if N >= 512:
        TN = 256
    elif N >= 128:
        TN = 128
    else:
        TN = max(8, _round_up(N, 8))
    Np = _round_up(N, TN)

    # Zero-pad batch and pad phase lanes 196..PH-1 with zeros (shifted slices only read
    # the pad at don't-care output lanes, which are zeroed out of W1).
    phases = jnp.pad(phases, ((0, 0), (0, Np - N), (0, PH - WL)))   # [4, Np, PH]

    # Conv params as SMEM scalars.
    cw = params["conv_w"].reshape(27).astype(jnp.float32)
    cb = params["conv_b"].reshape(3).astype(jnp.float32)

    # W1 re-laid-out to 196 rows per channel (rows for i==13 / j==13 zero), bf16.
    w1p = jnp.pad(params["w1"], ((0, 0), (0, HP - HIDDEN)))          # [507, 512]
    w1_blocks = []
    for c in range(3):
        blk = w1p[c * PP:(c + 1) * PP].reshape(POOL_OUT, POOL_OUT, HP)   # [13,13,512]
        blk = jnp.pad(blk, ((0, 1), (0, 1), (0, 0))).reshape(WL, HP)     # [196,512]
        w1_blocks.append(blk.astype(jnp.bfloat16))
    b1p = jnp.pad(params["b1"], ((0, 0), (0, HP - HIDDEN)))              # [1, 512] f32
    w2p = jnp.pad(params["w2"], ((0, HP - HIDDEN), (0, HP - HIDDEN))).astype(jnp.bfloat16)
    b2p = jnp.pad(params["b2"], ((0, 0), (0, HP - HIDDEN)))              # [1, 512] f32
    w3p = jnp.pad(params["w3"], ((0, HP - HIDDEN), (0, CP - NUM_CLASSES))).astype(jnp.bfloat16)
    b3p = jnp.pad(params["b3"], ((0, 0), (0, CP - NUM_CLASSES)))         # [1, 128] f32

    const = lambda i: (0, 0)   # weights: same block every step -> VMEM-resident
    out = pl.pallas_call(
        fused_kernel,
        out_shape=jax.ShapeDtypeStruct((Np, CP), jnp.float32),
        grid=(Np // TN,),
        in_specs=[
            pl.BlockSpec(memory_space=pltpu.MemorySpace.SMEM),    # conv weights (27,)
            pl.BlockSpec(memory_space=pltpu.MemorySpace.SMEM),    # conv bias   (3,)
            pl.BlockSpec((4, TN, PH), lambda i: (0, i, 0)),       # phases (batch tiled)
            pl.BlockSpec((WL, HP), const),                        # w1 channel block 0 (bf16)
            pl.BlockSpec((WL, HP), const),                        # w1 channel block 1 (bf16)
            pl.BlockSpec((WL, HP), const),                        # w1 channel block 2 (bf16)
            pl.BlockSpec((1, HP), const),                         # b1 (f32)
            pl.BlockSpec((HP, HP), const),                        # w2 (bf16)
            pl.BlockSpec((1, HP), const),                         # b2 (f32)
            pl.BlockSpec((HP, CP), const),                        # w3 (bf16)
            pl.BlockSpec((1, CP), const),                         # b3 (f32)
        ],
        out_specs=pl.BlockSpec((TN, CP), lambda i: (i, 0)),
        scratch_shapes=[pltpu.VMEM((TN, WL), jnp.float32) for _ in range(N_WIN)],
        compiler_params=pltpu.CompilerParams(
            dimension_semantics=("parallel",),
            vmem_limit_bytes=32 * 1024 * 1024,
        ),
    )(cw, cb, phases, w1_blocks[0], w1_blocks[1], w1_blocks[2],
      b1p, w2p, b2p, w3p, b3p)

    return out[:N, :NUM_CLASSES]


# ---------------- deterministic parameter init (PyTorch-style uniform) ----------------

def init_params(key):
    def uniform(k, shape, fan_in):
        bound = 1.0 / jnp.sqrt(jnp.float32(fan_in))
        return jax.random.uniform(k, shape, jnp.float32, -bound, bound)

    ks = jax.random.split(key, 8)
    return {
        "conv_w": uniform(ks[0], (3, 1, 3, 3), 1 * 3 * 3),
        "conv_b": uniform(ks[1], (3,), 1 * 3 * 3),
        # Linear weights stored transposed relative to PyTorch ([in, out]) for x @ W.
        "w1": uniform(ks[2], (FLAT, HIDDEN), FLAT),
        "b1": uniform(ks[3], (1, HIDDEN), FLAT),
        "w2": uniform(ks[4], (HIDDEN, HIDDEN), HIDDEN),
        "b2": uniform(ks[5], (1, HIDDEN), HIDDEN),
        "w3": uniform(ks[6], (HIDDEN, NUM_CLASSES), HIDDEN),
        "b3": uniform(ks[7], (1, NUM_CLASSES), HIDDEN),
    }


# ---------------- pure-JAX reference (same math, no Pallas, all-f32) ----------------

def reference_forward(x, params):
    N = x.shape[0]
    x2 = x[:, 0]
    CONV_OUT = IMG - 2
    patches = jnp.stack(
        [x2[:, di:di + CONV_OUT, dj:dj + CONV_OUT] for di in range(3) for dj in range(3)],
        axis=-1,
    )
    wc = params["conv_w"].reshape(3, 9)
    conv = jnp.einsum("nijk,ck->ncij", patches, wc,
                      precision=jax.lax.Precision.HIGHEST) + params["conv_b"][None, :, None, None]
    pooled = jnp.max(conv.reshape(N, 3, POOL_OUT, 2, POOL_OUT, 2), axis=(3, 5))
    flat = pooled.reshape(N, FLAT)
    hp = jax.lax.Precision.HIGHEST
    h = jnp.maximum(jnp.dot(flat, params["w1"], precision=hp) + params["b1"], 0.0)
    h = jnp.maximum(jnp.dot(h, params["w2"], precision=hp) + params["b2"], 0.0)
    return jnp.dot(h, params["w3"], precision=hp) + params["b3"]


if __name__ == "__main__":
    key = jax.random.PRNGKey(0)
    k_x, k_p = jax.random.split(key)
    N = 2
    x = jax.random.normal(k_x, (N, 1, IMG, IMG), jnp.float32)   # NCHW, MNIST-like 28x28
    params = init_params(k_p)

    fwd = jax.jit(neuralnet_forward)
    out = jax.block_until_ready(fwd(x, params))
    assert out.shape == (N, NUM_CLASSES), out.shape

    ref = jax.block_until_ready(jax.jit(reference_forward)(x, params))
    # bf16 MXU operands (weights + dot LHS) introduce ~1e-3..1e-2 deviation vs the
    # all-f32 HIGHEST-precision reference; the conv/pool path is exact f32, and any
    # structural/layout bug would show up as O(0.1+) errors, far outside this band.
    assert jnp.allclose(out, ref, atol=2e-2, rtol=2e-2), (out, ref)

    print("KERNEL_OK")
</pallas_src>

<mosaic_0001>
module attributes {stable_mosaic.version = 11 : i64} {
  func.func @fused_kernel(%arg0: i32, %arg1: memref<27xf32, #tpu.memory_space<smem>>, %arg2: memref<3xf32, #tpu.memory_space<smem>>, %arg3: memref<4x8x224xf32, #tpu.memory_space<vmem>>, %arg4: memref<196x512xbf16, #tpu.memory_space<vmem>>, %arg5: memref<196x512xbf16, #tpu.memory_space<vmem>>, %arg6: memref<196x512xbf16, #tpu.memory_space<vmem>>, %arg7: memref<1x512xf32, #tpu.memory_space<vmem>>, %arg8: memref<512x512xbf16, #tpu.memory_space<vmem>>, %arg9: memref<1x512xf32, #tpu.memory_space<vmem>>, %arg10: memref<512x128xbf16, #tpu.memory_space<vmem>>, %arg11: memref<1x128xf32, #tpu.memory_space<vmem>>, %arg12: memref<8x128xf32, #tpu.memory_space<vmem>>, %arg13: memref<8x196xf32, #tpu.memory_space<vmem>>, %arg14: memref<8x196xf32, #tpu.memory_space<vmem>>, %arg15: memref<8x196xf32, #tpu.memory_space<vmem>>, %arg16: memref<8x196xf32, #tpu.memory_space<vmem>>, %arg17: memref<8x196xf32, #tpu.memory_space<vmem>>, %arg18: memref<8x196xf32, #tpu.memory_space<vmem>>, %arg19: memref<8x196xf32, #tpu.memory_space<vmem>>, %arg20: memref<8x196xf32, #tpu.memory_space<vmem>>, %arg21: memref<8x196xf32, #tpu.memory_space<vmem>>, %arg22: memref<8x196xf32, #tpu.memory_space<vmem>>, %arg23: memref<8x196xf32, #tpu.memory_space<vmem>>, %arg24: memref<8x196xf32, #tpu.memory_space<vmem>>, %arg25: memref<8x196xf32, #tpu.memory_space<vmem>>, %arg26: memref<8x196xf32, #tpu.memory_space<vmem>>, %arg27: memref<8x196xf32, #tpu.memory_space<vmem>>, %arg28: memref<8x196xf32, #tpu.memory_space<vmem>>) attributes {dimension_semantics = [#tpu.dimension_semantics<parallel>], iteration_bounds = array<i64: 1>, scalar_prefetch = 0 : i64, scratch_operands = 16 : i64, tpu.core_type = #tpu.core_type<tc>, window_params = [{transform_indices = @transform_0, window_bounds = array<i64: 27>}, {transform_indices = @transform_1, window_bounds = array<i64: 3>}, {transform_indices = @transform_2, window_bounds = array<i64: 4, 8, 224>}, {pipeline_mode = #tpu.pipeline_mode<synchronous>, transform_indices = @transform_3, window_bounds = array<i64: 196, 512>}, {pipeline_mode = #tpu.pipeline_mode<synchronous>, transform_indices = @transform_4, window_bounds = array<i64: 196, 512>}, {pipeline_mode = #tpu.pipeline_mode<synchronous>, transform_indices = @transform_5, window_bounds = array<i64: 196, 512>}, {pipeline_mode = #tpu.pipeline_mode<synchronous>, transform_indices = @transform_6, window_bounds = array<i64: 1, 512>}, {pipeline_mode = #tpu.pipeline_mode<synchronous>, transform_indices = @transform_7, window_bounds = array<i64: 512, 512>}, {pipeline_mode = #tpu.pipeline_mode<synchronous>, transform_indices = @transform_8, window_bounds = array<i64: 1, 512>}, {pipeline_mode = #tpu.pipeline_mode<synchronous>, transform_indices = @transform_9, window_bounds = array<i64: 512, 128>}, {pipeline_mode = #tpu.pipeline_mode<synchronous>, transform_indices = @transform_10, window_bounds = array<i64: 1, 128>}, {transform_indices = @transform_11, window_bounds = array<i64: 8, 128>}]} {
    %c0 = arith.constant 0 : index
    %c0_0 = arith.constant 0 : index
    %c0_1 = arith.constant 0 : index
    %0 = vector.load %arg3[%c0, %c0_0, %c0_1] : memref<4x8x224xf32, #tpu.memory_space<vmem>>, vector<1x8x224xf32>
    %1 = vector.shape_cast %0 : vector<1x8x224xf32> to vector<8x224xf32>
    %2 = vector.extract_strided_slice %1 {offsets = [0, 0], sizes = [8, 196], strides = [1, 1]} : vector<8x224xf32> to vector<8x196xf32>
    %c0_2 = arith.constant 0 : index
    %c0_3 = arith.constant 0 : index
    %3 = vector.load %arg13[%c0_2, %c0_3] : memref<8x196xf32, #tpu.memory_space<vmem>>, vector<8x196xf32>
    tpu.vector_store %arg13[%c0_2, %c0_3], %2 {strides = array<i32>} : memref<8x196xf32, #tpu.memory_space<vmem>>, vector<8x196xf32>,
    %4 = vector.extract_strided_slice %1 {offsets = [0, 1], sizes = [8, 196], strides = [1, 1]} : vector<8x224xf32> to vector<8x196xf32>
    %c0_4 = arith.constant 0 : index
    %c0_5 = arith.constant 0 : index
    %5 = vector.load %arg15[%c0_4, %c0_5] : memref<8x196xf32, #tpu.memory_space<vmem>>, vector<8x196xf32>
    tpu.vector_store %arg15[%c0_4, %c0_5], %4 {strides = array<i32>} : memref<8x196xf32, #tpu.memory_space<vmem>>, vector<8x196xf32>,
    %6 = vector.extract_strided_slice %1 {offsets = [0, 14], sizes = [8, 196], strides = [1, 1]} : vector<8x224xf32> to vector<8x196xf32>
    %c0_6 = arith.constant 0 : index
    %c0_7 = arith.constant 0 : index
    %7 = vector.load %arg21[%c0_6, %c0_7] : memref<8x196xf32, #tpu.memory_space<vmem>>, vector<8x196xf32>
    tpu.vector_store %arg21[%c0_6, %c0_7], %6 {strides = array<i32>} : memref<8x196xf32, #tpu.memory_space<vmem>>, vector<8x196xf32>,
    %8 = vector.extract_strided_slice %1 {offsets = [0, 15], sizes = [8, 196], strides = [1, 1]} : vector<8x224xf32> to vector<8x196xf32>
    %c0_8 = arith.constant 0 : index
    %c0_9 = arith.constant 0 : index
    %9 = vector.load %arg23[%c0_8, %c0_9] : memref<8x196xf32, #tpu.memory_space<vmem>>, vector<8x196xf32>
    tpu.vector_store %arg23[%c0_8, %c0_9], %8 {strides = array<i32>} : memref<8x196xf32, #tpu.memory_space<vmem>>, vector<8x196xf32>,
    %c1 = arith.constant 1 : index
    %c0_10 = arith.constant 0 : index
    %c0_11 = arith.constant 0 : index
    %10 = vector.load %arg3[%c1, %c0_10, %c0_11] : memref<4x8x224xf32, #tpu.memory_space<vmem>>, vector<1x8x224xf32>
    %11 = vector.shape_cast %10 : vector<1x8x224xf32> to vector<8x224xf32>
    %12 = vector.extract_strided_slice %11 {offsets = [0, 0], sizes = [8, 196], strides = [1, 1]} : vector<8x224xf32> to vector<8x196xf32>
    %c0_12 = arith.constant 0 : index
    %c0_13 = arith.constant 0 : index
    %13 = vector.load %arg14[%c0_12, %c0_13] : memref<8x196xf32, #tpu.memory_space<vmem>>, vector<8x196xf32>
    tpu.vector_store %arg14[%c0_12, %c0_13], %12 {strides = array<i32>} : memref<8x196xf32, #tpu.memory_space<vmem>>, vector<8x196xf32>,
    %14 = vector.extract_strided_slice %11 {offsets = [0, 1], sizes = [8, 196], strides = [1, 1]} : vector<8x224xf32> to vector<8x196xf32>
    %c0_14 = arith.constant 0 : index
    %c0_15 = arith.constant 0 : index
    %15 = vector.load %arg16[%c0_14, %c0_15] : memref<8x196xf32, #tpu.memory_space<vmem>>, vector<8x196xf32>
    tpu.vector_store %arg16[%c0_14, %c0_15], %14 {strides = array<i32>} : memref<8x196xf32, #tpu.memory_space<vmem>>, vector<8x196xf32>,
    %16 = vector.extract_strided_slice %11 {offsets = [0, 14], sizes = [8, 196], strides = [1, 1]} : vector<8x224xf32> to vector<8x196xf32>
    %c0_16 = arith.constant 0 : index
    %c0_17 = arith.constant 0 : index
    %17 = vector.load %arg22[%c0_16, %c0_17] : memref<8x196xf32, #tpu.memory_space<vmem>>, vector<8x196xf32>
    tpu.vector_store %arg22[%c0_16, %c0_17], %16 {strides = array<i32>} : memref<8x196xf32, #tpu.memory_space<vmem>>, vector<8x196xf32>,
    %18 = vector.extract_strided_slice %11 {offsets = [0, 15], sizes = [8, 196], strides = [1, 1]} : vector<8x224xf32> to vector<8x196xf32>
    %c0_18 = arith.constant 0 : index
    %c0_19 = arith.constant 0 : index
    %19 = vector.load %arg24[%c0_18, %c0_19] : memref<8x196xf32, #tpu.memory_space<vmem>>, vector<8x196xf32>
    tpu.vector_store %arg24[%c0_18, %c0_19], %18 {strides = array<i32>} : memref<8x196xf32, #tpu.memory_space<vmem>>, vector<8x196xf32>,
    %c2 = arith.constant 2 : index
    %c0_20 = arith.constant 0 : index
    %c0_21 = arith.constant 0 : index
    %20 = vector.load %arg3[%c2, %c0_20, %c0_21] : memref<4x8x224xf32, #tpu.memory_space<vmem>>, vector<1x8x224xf32>
    %21 = vector.shape_cast %20 : vector<1x8x224xf32> to vector<8x224xf32>
    %22 = vector.extract_strided_slice %21 {offsets = [0, 0], sizes = [8, 196], strides = [1, 1]} : vector<8x224xf32> to vector<8x196xf32>
    %c0_22 = arith.constant 0 : index
    %c0_23 = arith.constant 0 : index
    %23 = vector.load %arg17[%c0_22, %c0_23] : memref<8x196xf32, #tpu.memory_space<vmem>>, vector<8x196xf32>
    tpu.vector_store %arg17[%c0_22, %c0_23], %22 {strides = array<i32>} : memref<8x196xf32, #tpu.memory_space<vmem>>, vector<8x196xf32>,
    %24 = vector.extract_strided_slice %21 {offsets = [0, 1], sizes = [8, 196], strides = [1, 1]} : vector<8x224xf32> to vector<8x196xf32>
    %c0_24 = arith.constant 0 : index
    %c0_25 = arith.constant 0 : index
    %25 = vector.load %arg19[%c0_24, %c0_25] : memref<8x196xf32, #tpu.memory_space<vmem>>, vector<8x196xf32>
    tpu.vector_store %arg19[%c0_24, %c0_25], %24 {strides = array<i32>} : memref<8x196xf32, #tpu.memory_space<vmem>>, vector<8x196xf32>,
    %26 = vector.extract_strided_slice %21 {offsets = [0, 14], sizes = [8, 196], strides = [1, 1]} : vector<8x224xf32> to vector<8x196xf32>
    %c0_26 = arith.constant 0 : index
    %c0_27 = arith.constant 0 : index
    %27 = vector.load %arg25[%c0_26, %c0_27] : memref<8x196xf32, #tpu.memory_space<vmem>>, vector<8x196xf32>
    tpu.vector_store %arg25[%c0_26, %c0_27], %26 {strides = array<i32>} : memref<8x196xf32, #tpu.memory_space<vmem>>, vector<8x196xf32>,
    %28 = vector.extract_strided_slice %21 {offsets = [0, 15], sizes = [8, 196], strides = [1, 1]} : vector<8x224xf32> to vector<8x196xf32>
    %c0_28 = arith.constant 0 : index
    %c0_29 = arith.constant 0 : index
    %29 = vector.load %arg27[%c0_28, %c0_29] : memref<8x196xf32, #tpu.memory_space<vmem>>, vector<8x196xf32>
    tpu.vector_store %arg27[%c0_28, %c0_29], %28 {strides = array<i32>} : memref<8x196xf32, #tpu.memory_space<vmem>>, vector<8x196xf32>,
    %c3 = arith.constant 3 : index
    %c0_30 = arith.constant 0 : index
    %c0_31 = arith.constant 0 : index
    %30 = vector.load %arg3[%c3, %c0_30, %c0_31] : memref<4x8x224xf32, #tpu.memory_space<vmem>>, vector<1x8x224xf32>
    %31 = vector.shape_cast %30 : vector<1x8x224xf32> to vector<8x224xf32>
    %32 = vector.extract_strided_slice %31 {offsets = [0, 0], sizes = [8, 196], strides = [1, 1]} : vector<8x224xf32> to vector<8x196xf32>
    %c0_32 = arith.constant 0 : index
    %c0_33 = arith.constant 0 : index
    %33 = vector.load %arg18[%c0_32, %c0_33] : memref<8x196xf32, #tpu.memory_space<vmem>>, vector<8x196xf32>
    tpu.vector_store %arg18[%c0_32, %c0_33], %32 {strides = array<i32>} : memref<8x196xf32, #tpu.memory_space<vmem>>, vector<8x196xf32>,
    %34 = vector.extract_strided_slice %31 {offsets = [0, 1], sizes = [8, 196], strides = [1, 1]} : vector<8x224xf32> to vector<8x196xf32>
    %c0_34 = arith.constant 0 : index
    %c0_35 = arith.constant 0 : index
    %35 = vector.load %arg20[%c0_34, %c0_35] : memref<8x196xf32, #tpu.memory_space<vmem>>, vector<8x196xf32>
    tpu.vector_store %arg20[%c0_34, %c0_35], %34 {strides = array<i32>} : memref<8x196xf32, #tpu.memory_space<vmem>>, vector<8x196xf32>,
    %36 = vector.extract_strided_slice %31 {offsets = [0, 14], sizes = [8, 196], strides = [1, 1]} : vector<8x224xf32> to vector<8x196xf32>
    %c0_36 = arith.constant 0 : index
    %c0_37 = arith.constant 0 : index
    %37 = vector.load %arg26[%c0_36, %c0_37] : memref<8x196xf32, #tpu.memory_space<vmem>>, vector<8x196xf32>
    tpu.vector_store %arg26[%c0_36, %c0_37], %36 {strides = array<i32>} : memref<8x196xf32, #tpu.memory_space<vmem>>, vector<8x196xf32>,
    %38 = vector.extract_strided_slice %31 {offsets = [0, 15], sizes = [8, 196], strides = [1, 1]} : vector<8x224xf32> to vector<8x196xf32>
    %c0_38 = arith.constant 0 : index
    %c0_39 = arith.constant 0 : index
    %39 = vector.load %arg28[%c0_38, %c0_39] : memref<8x196xf32, #tpu.memory_space<vmem>>, vector<8x196xf32>
    tpu.vector_store %arg28[%c0_38, %c0_39], %38 {strides = array<i32>} : memref<8x196xf32, #tpu.memory_space<vmem>>, vector<8x196xf32>,
    %c0_40 = arith.constant 0 : index
    %40 = memref.load %arg1[%c0_40] : memref<27xf32, #tpu.memory_space<smem>>
    %c1_41 = arith.constant 1 : index
    %41 = memref.load %arg1[%c1_41] : memref<27xf32, #tpu.memory_space<smem>>
    %c2_42 = arith.constant 2 : index
    %42 = memref.load %arg1[%c2_42] : memref<27xf32, #tpu.memory_space<smem>>
    %c3_43 = arith.constant 3 : index
    %43 = memref.load %arg1[%c3_43] : memref<27xf32, #tpu.memory_space<smem>>
    %c4 = arith.constant 4 : index
    %44 = memref.load %arg1[%c4] : memref<27xf32, #tpu.memory_space<smem>>
    %c5 = arith.constant 5 : index
    %45 = memref.load %arg1[%c5] : memref<27xf32, #tpu.memory_space<smem>>
    %c6 = arith.constant 6 : index
    %46 = memref.load %arg1[%c6] : memref<27xf32, #tpu.memory_space<smem>>
    %c7 = arith.constant 7 : index
    %47 = memref.load %arg1[%c7] : memref<27xf32, #tpu.memory_space<smem>>
    %c8 = arith.constant 8 : index
    %48 = memref.load %arg1[%c8] : memref<27xf32, #tpu.memory_space<smem>>
    %c9 = arith.constant 9 : index
    %49 = memref.load %arg1[%c9] : memref<27xf32, #tpu.memory_space<smem>>
    %c10 = arith.constant 10 : index
    %50 = memref.load %arg1[%c10] : memref<27xf32, #tpu.memory_space<smem>>
    %c11 = arith.constant 11 : index
    %51 = memref.load %arg1[%c11] : memref<27xf32, #tpu.memory_space<smem>>
    %c12 = arith.constant 12 : index
    %52 = memref.load %arg1[%c12] : memref<27xf32, #tpu.memory_space<smem>>
    %c13 = arith.constant 13 : index
    %53 = memref.load %arg1[%c13] : memref<27xf32, #tpu.memory_space<smem>>
    %c14 = arith.constant 14 : index
    %54 = memref.load %arg1[%c14] : memref<27xf32, #tpu.memory_space<smem>>
    %c15 = arith.constant 15 : index
    %55 = memref.load %arg1[%c15] : memref<27xf32, #tpu.memory_space<smem>>
    %c16 = arith.constant 16 : index
    %56 = memref.load %arg1[%c16] : memref<27xf32, #tpu.memory_space<smem>>
    %c17 = arith.constant 17 : index
    %57 = memref.load %arg1[%c17] : memref<27xf32, #tpu.memory_space<smem>>
    %c18 = arith.constant 18 : index
    %58 = memref.load %arg1[%c18] : memref<27xf32, #tpu.memory_space<smem>>
    %c19 = arith.constant 19 : index
    %59 = memref.load %arg1[%c19] : memref<27xf32, #tpu.memory_space<smem>>
    %c20 = arith.constant 20 : index
    %60 = memref.load %arg1[%c20] : memref<27xf32, #tpu.memory_space<smem>>
    %c21 = arith.constant 21 : index
    %61 = memref.load %arg1[%c21] : memref<27xf32, #tpu.memory_space<smem>>
    %c22 = arith.constant 22 : index
    %62 = memref.load %arg1[%c22] : memref<27xf32, #tpu.memory_space<smem>>
    %c23 = arith.constant 23 : index
    %63 = memref.load %arg1[%c23] : memref<27xf32, #tpu.memory_space<smem>>
    %c24 = arith.constant 24 : index
    %64 = memref.load %arg1[%c24] : memref<27xf32, #tpu.memory_space<smem>>
    %c25 = arith.constant 25 : index
    %65 = memref.load %arg1[%c25] : memref<27xf32, #tpu.memory_space<smem>>
    %c26 = arith.constant 26 : index
    %66 = memref.load %arg1[%c26] : memref<27xf32, #tpu.memory_space<smem>>
    %c0_44 = arith.constant 0 : index
    %67 = memref.load %arg2[%c0_44] : memref<3xf32, #tpu.memory_space<smem>>
    %c1_45 = arith.constant 1 : index
    %68 = memref.load %arg2[%c1_45] : memref<3xf32, #tpu.memory_space<smem>>
    %c2_46 = arith.constant 2 : index
    %69 = memref.load %arg2[%c2_46] : memref<3xf32, #tpu.memory_space<smem>>
    %c0_47 = arith.constant 0 : index
    %c0_48 = arith.constant 0 : index
    %70 = vector.load %arg13[%c0_47, %c0_48] : memref<8x196xf32, #tpu.memory_space<vmem>>, vector<8x196xf32>
    %71 = vector.broadcast %40 : f32 to vector<8x196xf32>
    %72 = arith.mulf %71, %70 : vector<8x196xf32>
    %c0_49 = arith.constant 0 : index
    %c0_50 = arith.constant 0 : index
    %73 = vector.load %arg14[%c0_49, %c0_50] : memref<8x196xf32, #tpu.memory_space<vmem>>, vector<8x196xf32>
    %74 = vector.broadcast %41 : f32 to vector<8x196xf32>
    %75 = arith.mulf %74, %73 : vector<8x196xf32>
    %76 = arith.addf %72, %75 : vector<8x196xf32>
    %c0_51 = arith.constant 0 : index
    %c0_52 = arith.constant 0 : index
    %77 = vector.load %arg15[%c0_51, %c0_52] : memref<8x196xf32, #tpu.memory_space<vmem>>, vector<8x196xf32>
    %78 = vector.broadcast %42 : f32 to vector<8x196xf32>
    %79 = arith.mulf %78, %77 : vector<8x196xf32>
    %80 = arith.addf %76, %79 : vector<8x196xf32>
    %c0_53 = arith.constant 0 : index
    %c0_54 = arith.constant 0 : index
    %81 = vector.load %arg17[%c0_53, %c0_54] : memref<8x196xf32, #tpu.memory_space<vmem>>, vector<8x196xf32>
    %82 = vector.broadcast %43 : f32 to vector<8x196xf32>
    %83 = arith.mulf %82, %81 : vector<8x196xf32>
    %84 = arith.addf %80, %83 : vector<8x196xf32>
    %c0_55 = arith.constant 0 : index
    %c0_56 = arith.constant 0 : index
    %85 = vector.load %arg18[%c0_55, %c0_56] : memref<8x196xf32, #tpu.memory_space<vmem>>, vector<8x196xf32>
    %86 = vector.broadcast %44 : f32 to vector<8x196xf32>
    %87 = arith.mulf %86, %85 : vector<8x196xf32>
    %88 = arith.addf %84, %87 : vector<8x196xf32>
    %c0_57 = arith.constant 0 : index
    %c0_58 = arith.constant 0 : index
    %89 = vector.load %arg19[%c0_57, %c0_58] : memref<8x196xf32, #tpu.memory_space<vmem>>, vector<8x196xf32>
    %90 = vector.broadcast %45 : f32 to vector<8x196xf32>
    %91 = arith.mulf %90, %89 : vector<8x196xf32>
    %92 = arith.addf %88, %91 : vector<8x196xf32>
    %c0_59 = arith.constant 0 : index
    %c0_60 = arith.constant 0 : index
    %93 = vector.load %arg21[%c0_59, %c0_60] : memref<8x196xf32, #tpu.memory_space<vmem>>, vector<8x196xf32>
    %94 = vector.broadcast %46 : f32 to vector<8x196xf32>
    %95 = arith.mulf %94, %93 : vector<8x196xf32>
    %96 = arith.addf %92, %95 : vector<8x196xf32>
    %c0_61 = arith.constant 0 : index
    %c0_62 = arith.constant 0 : index
    %97 = vector.load %arg22[%c0_61, %c0_62] : memref<8x196xf32, #tpu.memory_space<vmem>>, vector<8x196xf32>
    %98 = vector.broadcast %47 : f32 to vector<8x196xf32>
    %99 = arith.mulf %98, %97 : vector<8x196xf32>
    %100 = arith.addf %96, %99 : vector<8x196xf32>
    %c0_63 = arith.constant 0 : index
    %c0_64 = arith.constant 0 : index
    %101 = vector.load %arg23[%c0_63, %c0_64] : memref<8x196xf32, #tpu.memory_space<vmem>>, vector<8x196xf32>
    %102 = vector.broadcast %48 : f32 to vector<8x196xf32>
    %103 = arith.mulf %102, %101 : vector<8x196xf32>
    %104 = arith.addf %100, %103 : vector<8x196xf32>
    %c0_65 = arith.constant 0 : index
    %c0_66 = arith.constant 0 : index
    %105 = vector.load %arg14[%c0_65, %c0_66] : memref<8x196xf32, #tpu.memory_space<vmem>>, vector<8x196xf32>
    %106 = vector.broadcast %40 : f32 to vector<8x196xf32>
    %107 = arith.mulf %106, %105 : vector<8x196xf32>
    %c0_67 = arith.constant 0 : index
    %c0_68 = arith.constant 0 : index
    %108 = vector.load %arg15[%c0_67, %c0_68] : memref<8x196xf32, #tpu.memory_space<vmem>>, vector<8x196xf32>
    %109 = vector.broadcast %41 : f32 to vector<8x196xf32>
    %110 = arith.mulf %109, %108 : vector<8x196xf32>
    %111 = arith.addf %107, %110 : vector<8x196xf32>
    %c0_69 = arith.constant 0 : index
    %c0_70 = arith.constant 0 : index
    %112 = vector.load %arg16[%c0_69, %c0_70] : memref<8x196xf32, #tpu.memory_space<vmem>>, vector<8x196xf32>
    %113 = vector.broadcast %42 : f32 to vector<8x196xf32>
    %114 = arith.mulf %113, %112 : vector<8x196xf32>
    %115 = arith.addf %111, %114 : vector<8x196xf32>
    %c0_71 = arith.constant 0 : index
    %c0_72 = arith.constant 0 : index
    %116 = vector.load %arg18[%c0_71, %c0_72] : memref<8x196xf32, #tpu.memory_space<vmem>>, vector<8x196xf32>
    %117 = vector.broadcast %43 : f32 to vector<8x196xf32>
    %118 = arith.mulf %117, %116 : vector<8x196xf32>
    %119 = arith.addf %115, %118 : vector<8x196xf32>
    %c0_73 = arith.constant 0 : index
    %c0_74 = arith.constant 0 : index
    %120 = vector.load %arg19[%c0_73, %c0_74] : memref<8x196xf32, #tpu.memory_space<vmem>>, vector<8x196xf32>
    %121 = vector.broadcast %44 : f32 to vector<8x196xf32>
    %122 = arith.mulf %121, %120 : vector<8x196xf32>
    %123 = arith.addf %119, %122 : vector<8x196xf32>
    %c0_75 = arith.constant 0 : index
    %c0_76 = arith.constant 0 : index
    %124 = vector.load %arg20[%c0_75, %c0_76] : memref<8x196xf32, #tpu.memory_space<vmem>>, vector<8x196xf32>
    %125 = vector.broadcast %45 : f32 to vector<8x196xf32>
    %126 = arith.mulf %125, %124 : vector<8x196xf32>
    %127 = arith.addf %123, %126 : vector<8x196xf32>
    %c0_77 = arith.constant 0 : index
    %c0_78 = arith.constant 0 : index
    %128 = vector.load %arg22[%c0_77, %c0_78] : memref<8x196xf32, #tpu.memory_space<vmem>>, vector<8x196xf32>
    %129 = vector.broadcast %46 : f32 to vector<8x196xf32>
    %130 = arith.mulf %129, %128 : vector<8x196xf32>
    %131 = arith.addf %127, %130 : vector<8x196xf32>
    %c0_79 = arith.constant 0 : index
    %c0_80 = arith.constant 0 : index
    %132 = vector.load %arg23[%c0_79, %c0_80] : memref<8x196xf32, #tpu.memory_space<vmem>>, vector<8x196xf32>
    %133 = vector.broadcast %47 : f32 to vector<8x196xf32>
    %134 = arith.mulf %133, %132 : vector<8x196xf32>
    %135 = arith.addf %131, %134 : vector<8x196xf32>
    %c0_81 = arith.constant 0 : index
    %c0_82 = arith.constant 0 : index
    %136 = vector.load %arg24[%c0_81, %c0_82] : memref<8x196xf32, #tpu.memory_space<vmem>>, vector<8x196xf32>
    %137 = vector.broadcast %48 : f32 to vector<8x196xf32>
    %138 = arith.mulf %137, %136 : vector<8x196xf32>
    %139 = arith.addf %135, %138 : vector<8x196xf32>
    %140 = arith.maximumf %104, %139 : vector<8x196xf32>
    %c0_83 = arith.constant 0 : index
    %c0_84 = arith.constant 0 : index
    %141 = vector.load %arg17[%c0_83, %c0_84] : memref<8x196xf32, #tpu.memory_space<vmem>>, vector<8x196xf32>
    %142 = vector.broadcast %40 : f32 to vector<8x196xf32>
    %143 = arith.mulf %142, %141 : vector<8x196xf32>
    %c0_85 = arith.constant 0 : index
    %c0_86 = arith.constant 0 : index
    %144 = vector.load %arg18[%c0_85, %c0_86] : memref<8x196xf32, #tpu.memory_space<vmem>>, vector<8x196xf32>
    %145 = vector.broadcast %41 : f32 to vector<8x196xf32>
    %146 = arith.mulf %145, %144 : vector<8x196xf32>
    %147 = arith.addf %143, %146 : vector<8x196xf32>
    %c0_87 = arith.constant 0 : index
    %c0_88 = arith.constant 0 : index
    %148 = vector.load %arg19[%c0_87, %c0_88] : memref<8x196xf32, #tpu.memory_space<vmem>>, vector<8x196xf32>
    %149 = vector.broadcast %42 : f32 to vector<8x196xf32>
    %150 = arith.mulf %149, %148 : vector<8x196xf32>
    %151 = arith.addf %147, %150 : vector<8x196xf32>
    %c0_89 = arith.constant 0 : index
    %c0_90 = arith.constant 0 : index
    %152 = vector.load %arg21[%c0_89, %c0_90] : memref<8x196xf32, #tpu.memory_space<vmem>>, vector<8x196xf32>
    %153 = vector.broadcast %43 : f32 to vector<8x196xf32>
    %154 = arith.mulf %153, %152 : vector<8x196xf32>
    %155 = arith.addf %151, %154 : vector<8x196xf32>
    %c0_91 = arith.constant 0 : index
    %c0_92 = arith.constant 0 : index
    %156 = vector.load %arg22[%c0_91, %c0_92] : memref<8x196xf32, #tpu.memory_space<vmem>>, vector<8x196xf32>
    %157 = vector.broadcast %44 : f32 to vector<8x196xf32>
    %158 = arith.mulf %157, %156 : vector<8x196xf32>
    %159 = arith.addf %155, %158 : vector<8x196xf32>
    %c0_93 = arith.constant 0 : index
    %c0_94 = arith.constant 0 : index
    %160 = vector.load %arg23[%c0_93, %c0_94] : memref<8x196xf32, #tpu.memory_space<vmem>>, vector<8x196xf32>
    %161 = vector.broadcast %45 : f32 to vector<8x196xf32>
    %162 = arith.mulf %161, %160 : vector<8x196xf32>
    %163 = arith.addf %159, %162 : vector<8x196xf32>
    %c0_95 = arith.constant 0 : index
    %c0_96 = arith.constant 0 : index
    %164 = vector.load %arg25[%c0_95, %c0_96] : memref<8x196xf32, #tpu.memory_space<vmem>>, vector<8x196xf32>
    %165 = vector.broadcast %46 : f32 to vector<8x196xf32>
    %166 = arith.mulf %165, %164 : vector<8x196xf32>
    %167 = arith.addf %163, %166 : vector<8x196xf32>
    %c0_97 = arith.constant 0 : index
    %c0_98 = arith.constant 0 : index
    %168 = vector.load %arg26[%c0_97, %c0_98] : memref<8x196xf32, #tpu.memory_space<vmem>>, vector<8x196xf32>
    %169 = vector.broadcast %47 : f32 to vector<8x196xf32>
    %170 = arith.mulf %169, %168 : vector<8x196xf32>
    %171 = arith.addf %167, %170 : vector<8x196xf32>
    %c0_99 = arith.constant 0 : index
    %c0_100 = arith.constant 0 : index
    %172 = vector.load %arg27[%c0_99, %c0_100] : memref<8x196xf32, #tpu.memory_space<vmem>>, vector<8x196xf32>
    %173 = vector.broadcast %48 : f32 to vector<8x196xf32>
    %174 = arith.mulf %173, %172 : vector<8x196xf32>
    %175 = arith.addf %171, %174 : vector<8x196xf32>
    %176 = arith.maximumf %140, %175 : vector<8x196xf32>
    %c0_101 = arith.constant 0 : index
    %c0_102 = arith.constant 0 : index
    %177 = vector.load %arg18[%c0_101, %c0_102] : memref<8x196xf32, #tpu.memory_space<vmem>>, vector<8x196xf32>
    %178 = vector.broadcast %40 : f32 to vector<8x196xf32>
    %179 = arith.mulf %178, %177 : vector<8x196xf32>
    %c0_103 = arith.constant 0 : index
    %c0_104 = arith.constant 0 : index
    %180 = vector.load %arg19[%c0_103, %c0_104] : memref<8x196xf32, #tpu.memory_space<vmem>>, vector<8x196xf32>
    %181 = vector.broadcast %41 : f32 to vector<8x196xf32>
    %182 = arith.mulf %181, %180 : vector<8x196xf32>
    %183 = arith.addf %179, %182 : vector<8x196xf32>
    %c0_105 = arith.constant 0 : index
    %c0_106 = arith.constant 0 : index
    %184 = vector.load %arg20[%c0_105, %c0_106] : memref<8x196xf32, #tpu.memory_space<vmem>>, vector<8x196xf32>
    %185 = vector.broadcast %42 : f32 to vector<8x196xf32>
    %186 = arith.mulf %185, %184 : vector<8x196xf32>
    %187 = arith.addf %183, %186 : vector<8x196xf32>
    %c0_107 = arith.constant 0 : index
    %c0_108 = arith.constant 0 : index
    %188 = vector.load %arg22[%c0_107, %c0_108] : memref<8x196xf32, #tpu.memory_space<vmem>>, vector<8x196xf32>
    %189 = vector.broadcast %43 : f32 to vector<8x196xf32>
    %190 = arith.mulf %189, %188 : vector<8x196xf32>
    %191 = arith.addf %187, %190 : vector<8x196xf32>
    %c0_109 = arith.constant 0 : index
    %c0_110 = arith.constant 0 : index
    %192 = vector.load %arg23[%c0_109, %c0_110] : memref<8x196xf32, #tpu.memory_space<vmem>>, vector<8x196xf32>
    %193 = vector.broadcast %44 : f32 to vector<8x196xf32>
    %194 = arith.mulf %193, %192 : vector<8x196xf32>
    %195 = arith.addf %191, %194 : vector<8x196xf32>
    %c0_111 = arith.constant 0 : index
    %c0_112 = arith.constant 0 : index
    %196 = vector.load %arg24[%c0_111, %c0_112] : memref<8x196xf32, #tpu.memory_space<vmem>>, vector<8x196xf32>
    %197 = vector.broadcast %45 : f32 to vector<8x196xf32>
    %198 = arith.mulf %197, %196 : vector<8x196xf32>
    %199 = arith.addf %195, %198 : vector<8x196xf32>
    %c0_113 = arith.constant 0 : index
    %c0_114 = arith.constant 0 : index
    %200 = vector.load %arg26[%c0_113, %c0_114] : memref<8x196xf32, #tpu.memory_space<vmem>>, vector<8x196xf32>
    %201 = vector.broadcast %46 : f32 to vector<8x196xf32>
    %202 = arith.mulf %201, %200 : vector<8x196xf32>
    %203 = arith.addf %199, %202 : vector<8x196xf32>
    %c0_115 = arith.constant 0 : index
    %c0_116 = arith.constant 0 : index
    %204 = vector.load %arg27[%c0_115, %c0_116] : memref<8x196xf32, #tpu.memory_space<vmem>>, vector<8x196xf32>
    %205 = vector.broadcast %47 : f32 to vector<8x196xf32>
    %206 = arith.mulf %205, %204 : vector<8x196xf32>
    %207 = arith.addf %203, %206 : vector<8x196xf32>
    %c0_117 = arith.constant 0 : index
    %c0_118 = arith.constant 0 : index
    %208 = vector.load %arg28[%c0_117, %c0_118] : memref<8x196xf32, #tpu.memory_space<vmem>>, vector<8x196xf32>
    %209 = vector.broadcast %48 : f32 to vector<8x196xf32>
    %210 = arith.mulf %209, %208 : vector<8x196xf32>
    %211 = arith.addf %207, %210 : vector<8x196xf32>
    %212 = arith.maximumf %176, %211 : vector<8x196xf32>
    %213 = vector.broadcast %67 : f32 to vector<8x196xf32>
    %214 = arith.addf %212, %213 : vector<8x196xf32>
    %215 = arith.truncf %214 : vector<8x196xf32> to vector<8x196xbf16>
    %c0_119 = arith.constant 0 : index
    %c0_120 = arith.constant 0 : index
    %216 = vector.load %arg4[%c0_119, %c0_120] : memref<196x512xbf16, #tpu.memory_space<vmem>>, vector<196x512xbf16>
    %cst = arith.constant dense<0.000000e+00> : vector<8x512xf32>
    %217 = tpu.matmul %215, %216, %cst {dimension_numbers = #tpu.dot_dimension_numbers<[1], [0], [0], [1], [0, 0, 1, 1], [], []>} : vector<8x196xbf16>, vector<196x512xbf16>, vector<8x512xf32> -> vector<8x512xf32>
    %c0_121 = arith.constant 0 : index
    %c0_122 = arith.constant 0 : index
    %218 = vector.load %arg13[%c0_121, %c0_122] : memref<8x196xf32, #tpu.memory_space<vmem>>, vector<8x196xf32>
    %219 = vector.broadcast %49 : f32 to vector<8x196xf32>
    %220 = arith.mulf %219, %218 : vector<8x196xf32>
    %c0_123 = arith.constant 0 : index
    %c0_124 = arith.constant 0 : index
    %221 = vector.load %arg14[%c0_123, %c0_124] : memref<8x196xf32, #tpu.memory_space<vmem>>, vector<8x196xf32>
    %222 = vector.broadcast %50 : f32 to vector<8x196xf32>
    %223 = arith.mulf %222, %221 : vector<8x196xf32>
    %224 = arith.addf %220, %223 : vector<8x196xf32>
    %c0_125 = arith.constant 0 : index
    %c0_126 = arith.constant 0 : index
    %225 = vector.load %arg15[%c0_125, %c0_126] : memref<8x196xf32, #tpu.memory_space<vmem>>, vector<8x196xf32>
    %226 = vector.broadcast %51 : f32 to vector<8x196xf32>
    %227 = arith.mulf %226, %225 : vector<8x196xf32>
    %228 = arith.addf %224, %227 : vector<8x196xf32>
    %c0_127 = arith.constant 0 : index
    %c0_128 = arith.constant 0 : index
    %229 = vector.load %arg17[%c0_127, %c0_128] : memref<8x196xf32, #tpu.memory_space<vmem>>, vector<8x196xf32>
    %230 = vector.broadcast %52 : f32 to vector<8x196xf32>
    %231 = arith.mulf %230, %229 : vector<8x196xf32>
    %232 = arith.addf %228, %231 : vector<8x196xf32>
    %c0_129 = arith.constant 0 : index
    %c0_130 = arith.constant 0 : index
    %233 = vector.load %arg18[%c0_129, %c0_130] : memref<8x196xf32, #tpu.memory_space<vmem>>, vector<8x196xf32>
    %234 = vector.broadcast %53 : f32 to vector<8x196xf32>
    %235 = arith.mulf %234, %233 : vector<8x196xf32>
    %236 = arith.addf %232, %235 : vector<8x196xf32>
    %c0_131 = arith.constant 0 : index
    %c0_132 = arith.constant 0 : index
    %237 = vector.load %arg19[%c0_131, %c0_132] : memref<8x196xf32, #tpu.memory_space<vmem>>, vector<8x196xf32>
    %238 = vector.broadcast %54 : f32 to vector<8x196xf32>
    %239 = arith.mulf %238, %237 : vector<8x196xf32>
    %240 = arith.addf %236, %239 : vector<8x196xf32>
    %c0_133 = arith.constant 0 : index
    %c0_134 = arith.constant 0 : index
    %241 = vector.load %arg21[%c0_133, %c0_134] : memref<8x196xf32, #tpu.memory_space<vmem>>, vector<8x196xf32>
    %242 = vector.broadcast %55 : f32 to vector<8x196xf32>
    %243 = arith.mulf %242, %241 : vector<8x196xf32>
    %244 = arith.addf %240, %243 : vector<8x196xf32>
    %c0_135 = arith.constant 0 : index
    %c0_136 = arith.constant 0 : index
    %245 = vector.load %arg22[%c0_135, %c0_136] : memref<8x196xf32, #tpu.memory_space<vmem>>, vector<8x196xf32>
    %246 = vector.broadcast %56 : f32 to vector<8x196xf32>
    %247 = arith.mulf %246, %245 : vector<8x196xf32>
    %248 = arith.addf %244, %247 : vector<8x196xf32>
    %c0_137 = arith.constant 0 : index
    %c0_138 = arith.constant 0 : index
    %249 = vector.load %arg23[%c0_137, %c0_138] : memref<8x196xf32, #tpu.memory_space<vmem>>, vector<8x196xf32>
    %250 = vector.broadcast %57 : f32 to vector<8x196xf32>
    %251 = arith.mulf %250, %249 : vector<8x196xf32>
    %252 = arith.addf %248, %251 : vector<8x196xf32>
    %c0_139 = arith.constant 0 : index
    %c0_140 = arith.constant 0 : index
    %253 = vector.load %arg14[%c0_139, %c0_140] : memref<8x196xf32, #tpu.memory_space<vmem>>, vector<8x196xf32>
    %254 = vector.broadcast %49 : f32 to vector<8x196xf32>
    %255 = arith.mulf %254, %253 : vector<8x196xf32>
    %c0_141 = arith.constant 0 : index
    %c0_142 = arith.constant 0 : index
    %256 = vector.load %arg15[%c0_141, %c0_142] : memref<8x196xf32, #tpu.memory_space<vmem>>, vector<8x196xf32>
    %257 = vector.broadcast %50 : f32 to vector<8x196xf32>
    %258 = arith.mulf %257, %256 : vector<8x196xf32>
    %259 = arith.addf %255, %258 : vector<8x196xf32>
    %c0_143 = arith.constant 0 : index
    %c0_144 = arith.constant 0 : index
    %260 = vector.load %arg16[%c0_143, %c0_144] : memref<8x196xf32, #tpu.memory_space<vmem>>, vector<8x196xf32>
    %261 = vector.broadcast %51 : f32 to vector<8x196xf32>
    %262 = arith.mulf %261, %260 : vector<8x196xf32>
    %263 = arith.addf %259, %262 : vector<8x196xf32>
    %c0_145 = arith.constant 0 : index
    %c0_146 = arith.constant 0 : index
    %264 = vector.load %arg18[%c0_145, %c0_146] : memref<8x196xf32, #tpu.memory_space<vmem>>, vector<8x196xf32>
    %265 = vector.broadcast %52 : f32 to vector<8x196xf32>
    %266 = arith.mulf %265, %264 : vector<8x196xf32>
    %267 = arith.addf %263, %266 : vector<8x196xf32>
    %c0_147 = arith.constant 0 : index
    %c0_148 = arith.constant 0 : index
    %268 = vector.load %arg19[%c0_147, %c0_148] : memref<8x196xf32, #tpu.memory_space<vmem>>, vector<8x196xf32>
    %269 = vector.broadcast %53 : f32 to vector<8x196xf32>
    %270 = arith.mulf %269, %268 : vector<8x196xf32>
    %271 = arith.addf %267, %270 : vector<8x196xf32>
    %c0_149 = arith.constant 0 : index
    %c0_150 = arith.constant 0 : index
    %272 = vector.load %arg20[%c0_149, %c0_150] : memref<8x196xf32, #tpu.memory_space<vmem>>, vector<8x196xf32>
    %273 = vector.broadcast %54 : f32 to vector<8x196xf32>
    %274 = arith.mulf %273, %272 : vector<8x196xf32>
    %275 = arith.addf %271, %274 : vector<8x196xf32>
    %c0_151 = arith.constant 0 : index
    %c0_152 = arith.constant 0 : index
    %276 = vector.load %arg22[%c0_151, %c0_152] : memref<8x196xf32, #tpu.memory_space<vmem>>, vector<8x196xf32>
    %277 = vector.broadcast %55 : f32 to vector<8x196xf32>
    %278 = arith.mulf %277, %276 : vector<8x196xf32>
    %279 = arith.addf %275, %278 : vector<8x196xf32>
    %c0_153 = arith.constant 0 : index
    %c0_154 = arith.constant 0 : index
    %280 = vector.load %arg23[%c0_153, %c0_154] : memref<8x196xf32, #tpu.memory_space<vmem>>, vector<8x196xf32>
    %281 = vector.broadcast %56 : f32 to vector<8x196xf32>
    %282 = arith.mulf %281, %280 : vector<8x196xf32>
    %283 = arith.addf %279, %282 : vector<8x196xf32>
    %c0_155 = arith.constant 0 : index
    %c0_156 = arith.constant 0 : index
    %284 = vector.load %arg24[%c0_155, %c0_156] : memref<8x196xf32, #tpu.memory_space<vmem>>, vector<8x196xf32>
    %285 = vector.broadcast %57 : f32 to vector<8x196xf32>
    %286 = arith.mulf %285, %284 : vector<8x196xf32>
    %287 = arith.addf %283, %286 : vector<8x196xf32>
    %288 = arith.maximumf %252, %287 : vector<8x196xf32>
    %c0_157 = arith.constant 0 : index
    %c0_158 = arith.constant 0 : index
    %289 = vector.load %arg17[%c0_157, %c0_158] : memref<8x196xf32, #tpu.memory_space<vmem>>, vector<8x196xf32>
    %290 = vector.broadcast %49 : f32 to vector<8x196xf32>
    %291 = arith.mulf %290, %289 : vector<8x196xf32>
    %c0_159 = arith.constant 0 : index
    %c0_160 = arith.constant 0 : index
    %292 = vector.load %arg18[%c0_159, %c0_160] : memref<8x196xf32, #tpu.memory_space<vmem>>, vector<8x196xf32>
    %293 = vector.broadcast %50 : f32 to vector<8x196xf32>
    %294 = arith.mulf %293, %292 : vector<8x196xf32>
    %295 = arith.addf %291, %294 : vector<8x196xf32>
    %c0_161 = arith.constant 0 : index
    %c0_162 = arith.constant 0 : index
    %296 = vector.load %arg19[%c0_161, %c0_162] : memref<8x196xf32, #tpu.memory_space<vmem>>, vector<8x196xf32>
    %297 = vector.broadcast %51 : f32 to vector<8x196xf32>
    %298 = arith.mulf %297, %296 : vector<8x196xf32>
    %299 = arith.addf %295, %298 : vector<8x196xf32>
    %c0_163 = arith.constant 0 : index
    %c0_164 = arith.constant 0 : index
    %300 = vector.load %arg21[%c0_163, %c0_164] : memref<8x196xf32, #tpu.memory_space<vmem>>, vector<8x196xf32>
    %301 = vector.broadcast %52 : f32 to vector<8x196xf32>
    %302 = arith.mulf %301, %300 : vector<8x196xf32>
    %303 = arith.addf %299, %302 : vector<8x196xf32>
    %c0_165 = arith.constant 0 : index
    %c0_166 = arith.constant 0 : index
    %304 = vector.load %arg22[%c0_165, %c0_166] : memref<8x196xf32, #tpu.memory_space<vmem>>, vector<8x196xf32>
    %305 = vector.broadcast %53 : f32 to vector<8x196xf32>
    %306 = arith.mulf %305, %304 : vector<8x196xf32>
    %307 = arith.addf %303, %306 : vector<8x196xf32>
    %c0_167 = arith.constant 0 : index
    %c0_168 = arith.constant 0 : index
    %308 = vector.load %arg23[%c0_167, %c0_168] : memref<8x196xf32, #tpu.memory_space<vmem>>, vector<8x196xf32>
    %309 = vector.broadcast %54 : f32 to vector<8x196xf32>
    %310 = arith.mulf %309, %308 : vector<8x196xf32>
    %311 = arith.addf %307, %310 : vector<8x196xf32>
    %c0_169 = arith.constant 0 : index
    %c0_170 = arith.constant 0 : index
    %312 = vector.load %arg25[%c0_169, %c0_170] : memref<8x196xf32, #tpu.memory_space<vmem>>, vector<8x196xf32>
    %313 = vector.broadcast %55 : f32 to vector<8x196xf32>
    %314 = arith.mulf %313, %312 : vector<8x196xf32>
    %315 = arith.addf %311, %314 : vector<8x196xf32>
    %c0_171 = arith.constant 0 : index
    %c0_172 = arith.constant 0 : index
    %316 = vector.load %arg26[%c0_171, %c0_172] : memref<8x196xf32, #tpu.memory_space<vmem>>, vector<8x196xf32>
    %317 = vector.broadcast %56 : f32 to vector<8x196xf32>
    %318 = arith.mulf %317, %316 : vector<8x196xf32>
    %319 = arith.addf %315, %318 : vector<8x196xf32>
    %c0_173 = arith.constant 0 : index
    %c0_174 = arith.constant 0 : index
    %320 = vector.load %arg27[%c0_173, %c0_174] : memref<8x196xf32, #tpu.memory_space<vmem>>, vector<8x196xf32>
    %321 = vector.broadcast %57 : f32 to vector<8x196xf32>
    %322 = arith.mulf %321, %320 : vector<8x196xf32>
    %323 = arith.addf %319, %322 : vector<8x196xf32>
    %324 = arith.maximumf %288, %323 : vector<8x196xf32>
    %c0_175 = arith.constant 0 : index
    %c0_176 = arith.constant 0 : index
    %325 = vector.load %arg18[%c0_175, %c0_176] : memref<8x196xf32, #tpu.memory_space<vmem>>, vector<8x196xf32>
    %326 = vector.broadcast %49 : f32 to vector<8x196xf32>
    %327 = arith.mulf %326, %325 : vector<8x196xf32>
    %c0_177 = arith.constant 0 : index
    %c0_178 = arith.constant 0 : index
    %328 = vector.load %arg19[%c0_177, %c0_178] : memref<8x196xf32, #tpu.memory_space<vmem>>, vector<8x196xf32>
    %329 = vector.broadcast %50 : f32 to vector<8x196xf32>
    %330 = arith.mulf %329, %328 : vector<8x196xf32>
    %331 = arith.addf %327, %330 : vector<8x196xf32>
    %c0_179 = arith.constant 0 : index
    %c0_180 = arith.constant 0 : index
    %332 = vector.load %arg20[%c0_179, %c0_180] : memref<8x196xf32, #tpu.memory_space<vmem>>, vector<8x196xf32>
    %333 = vector.broadcast %51 : f32 to vector<8x196xf32>
    %334 = arith.mulf %333, %332 : vector<8x196xf32>
    %335 = arith.addf %331, %334 : vector<8x196xf32>
    %c0_181 = arith.constant 0 : index
    %c0_182 = arith.constant 0 : index
    %336 = vector.load %arg22[%c0_181, %c0_182] : memref<8x196xf32, #tpu.memory_space<vmem>>, vector<8x196xf32>
    %337 = vector.broadcast %52 : f32 to vector<8x196xf32>
    %338 = arith.mulf %337, %336 : vector<8x196xf32>
    %339 = arith.addf %335, %338 : vector<8x196xf32>
    %c0_183 = arith.constant 0 : index
    %c0_184 = arith.constant 0 : index
    %340 = vector.load %arg23[%c0_183, %c0_184] : memref<8x196xf32, #tpu.memory_space<vmem>>, vector<8x196xf32>
    %341 = vector.broadcast %53 : f32 to vector<8x196xf32>
    %342 = arith.mulf %341, %340 : vector<8x196xf32>
    %343 = arith.addf %339, %342 : vector<8x196xf32>
    %c0_185 = arith.constant 0 : index
    %c0_186 = arith.constant 0 : index
    %344 = vector.load %arg24[%c0_185, %c0_186] : memref<8x196xf32, #tpu.memory_space<vmem>>, vector<8x196xf32>
    %345 = vector.broadcast %54 : f32 to vector<8x196xf32>
    %346 = arith.mulf %345, %344 : vector<8x196xf32>
    %347 = arith.addf %343, %346 : vector<8x196xf32>
    %c0_187 = arith.constant 0 : index
    %c0_188 = arith.constant 0 : index
    %348 = vector.load %arg26[%c0_187, %c0_188] : memref<8x196xf32, #tpu.memory_space<vmem>>, vector<8x196xf32>
    %349 = vector.broadcast %55 : f32 to vector<8x196xf32>
    %350 = arith.mulf %349, %348 : vector<8x196xf32>
    %351 = arith.addf %347, %350 : vector<8x196xf32>
    %c0_189 = arith.constant 0 : index
    %c0_190 = arith.constant 0 : index
    %352 = vector.load %arg27[%c0_189, %c0_190] : memref<8x196xf32, #tpu.memory_space<vmem>>, vector<8x196xf32>
    %353 = vector.broadcast %56 : f32 to vector<8x196xf32>
    %354 = arith.mulf %353, %352 : vector<8x196xf32>
    %355 = arith.addf %351, %354 : vector<8x196xf32>
    %c0_191 = arith.constant 0 : index
    %c0_192 = arith.constant 0 : index
    %356 = vector.load %arg28[%c0_191, %c0_192] : memref<8x196xf32, #tpu.memory_space<vmem>>, vector<8x196xf32>
    %357 = vector.broadcast %57 : f32 to vector<8x196xf32>
    %358 = arith.mulf %357, %356 : vector<8x196xf32>
    %359 = arith.addf %355, %358 : vector<8x196xf32>
    %360 = arith.maximumf %324, %359 : vector<8x196xf32>
    %361 = vector.broadcast %68 : f32 to vector<8x196xf32>
    %362 = arith.addf %360, %361 : vector<8x196xf32>
    %363 = arith.truncf %362 : vector<8x196xf32> to vector<8x196xbf16>
    %c0_193 = arith.constant 0 : index
    %c0_194 = arith.constant 0 : index
    %364 = vector.load %arg5[%c0_193, %c0_194] : memref<196x512xbf16, #tpu.memory_space<vmem>>, vector<196x512xbf16>
    %cst_195 = arith.constant dense<0.000000e+00> : vector<8x512xf32>
    %365 = tpu.matmul %363, %364, %cst_195 {dimension_numbers = #tpu.dot_dimension_numbers<[1], [0], [0], [1], [0, 0, 1, 1], [], []>} : vector<8x196xbf16>, vector<196x512xbf16>, vector<8x512xf32> -> vector<8x512xf32>
    %366 = arith.addf %217, %365 : vector<8x512xf32>
    %c0_196 = arith.constant 0 : index
    %c0_197 = arith.constant 0 : index
    %367 = vector.load %arg13[%c0_196, %c0_197] : memref<8x196xf32, #tpu.memory_space<vmem>>, vector<8x196xf32>
    %368 = vector.broadcast %58 : f32 to vector<8x196xf32>
    %369 = arith.mulf %368, %367 : vector<8x196xf32>
    %c0_198 = arith.constant 0 : index
    %c0_199 = arith.constant 0 : index
    %370 = vector.load %arg14[%c0_198, %c0_199] : memref<8x196xf32, #tpu.memory_space<vmem>>, vector<8x196xf32>
    %371 = vector.broadcast %59 : f32 to vector<8x196xf32>
    %372 = arith.mulf %371, %370 : vector<8x196xf32>
    %373 = arith.addf %369, %372 : vector<8x196xf32>
    %c0_200 = arith.constant 0 : index
    %c0_201 = arith.constant 0 : index
    %374 = vector.load %arg15[%c0_200, %c0_201] : memref<8x196xf32, #tpu.memory_space<vmem>>, vector<8x196xf32>
    %375 = vector.broadcast %60 : f32 to vector<8x196xf32>
    %376 = arith.mulf %375, %374 : vector<8x196xf32>
    %377 = arith.addf %373, %376 : vector<8x196xf32>
    %c0_202 = arith.constant 0 : index
    %c0_203 = arith.constant 0 : index
    %378 = vector.load %arg17[%c0_202, %c0_203] : memref<8x196xf32, #tpu.memory_space<vmem>>, vector<8x196xf32>
    %379 = vector.broadcast %61 : f32 to vector<8x196xf32>
    %380 = arith.mulf %379, %378 : vector<8x196xf32>
    %381 = arith.addf %377, %380 : vector<8x196xf32>
    %c0_204 = arith.constant 0 : index
    %c0_205 = arith.constant 0 : index
    %382 = vector.load %arg18[%c0_204, %c0_205] : memref<8x196xf32, #tpu.memory_space<vmem>>, vector<8x196xf32>
    %383 = vector.broadcast %62 : f32 to vector<8x196xf32>
    %384 = arith.mulf %383, %382 : vector<8x196xf32>
    %385 = arith.addf %381, %384 : vector<8x196xf32>
    %c0_206 = arith.constant 0 : index
    %c0_207 = arith.constant 0 : index
    %386 = vector.load %arg19[%c0_206, %c0_207] : memref<8x196xf32, #tpu.memory_space<vmem>>, vector<8x196xf32>
    %387 = vector.broadcast %63 : f32 to vector<8x196xf32>
    %388 = arith.mulf %387, %386 : vector<8x196xf32>
    %389 = arith.addf %385, %388 : vector<8x196xf32>
    %c0_208 = arith.constant 0 : index
    %c0_209 = arith.constant 0 : index
    %390 = vector.load %arg21[%c0_208, %c0_209] : memref<8x196xf32, #tpu.memory_space<vmem>>, vector<8x196xf32>
    %391 = vector.broadcast %64 : f32 to vector<8x196xf32>
    %392 = arith.mulf %391, %390 : vector<8x196xf32>
    %393 = arith.addf %389, %392 : vector<8x196xf32>
    %c0_210 = arith.constant 0 : index
    %c0_211 = arith.constant 0 : index
    %394 = vector.load %arg22[%c0_210, %c0_211] : memref<8x196xf32, #tpu.memory_space<vmem>>, vector<8x196xf32>
    %395 = vector.broadcast %65 : f32 to vector<8x196xf32>
    %396 = arith.mulf %395, %394 : vector<8x196xf32>
    %397 = arith.addf %393, %396 : vector<8x196xf32>
    %c0_212 = arith.constant 0 : index
    %c0_213 = arith.constant 0 : index
    %398 = vector.load %arg23[%c0_212, %c0_213] : memref<8x196xf32, #tpu.memory_space<vmem>>, vector<8x196xf32>
    %399 = vector.broadcast %66 : f32 to vector<8x196xf32>
    %400 = arith.mulf %399, %398 : vector<8x196xf32>
    %401 = arith.addf %397, %400 : vector<8x196xf32>
    %c0_214 = arith.constant 0 : index
    %c0_215 = arith.constant 0 : index
    %402 = vector.load %arg14[%c0_214, %c0_215] : memref<8x196xf32, #tpu.memory_space<vmem>>, vector<8x196xf32>
    %403 = vector.broadcast %58 : f32 to vector<8x196xf32>
    %404 = arith.mulf %403, %402 : vector<8x196xf32>
    %c0_216 = arith.constant 0 : index
    %c0_217 = arith.constant 0 : index
    %405 = vector.load %arg15[%c0_216, %c0_217] : memref<8x196xf32, #tpu.memory_space<vmem>>, vector<8x196xf32>
    %406 = vector.broadcast %59 : f32 to vector<8x196xf32>
    %407 = arith.mulf %406, %405 : vector<8x196xf32>
    %408 = arith.addf %404, %407 : vector<8x196xf32>
    %c0_218 = arith.constant 0 : index
    %c0_219 = arith.constant 0 : index
    %409 = vector.load %arg16[%c0_218, %c0_219] : memref<8x196xf32, #tpu.memory_space<vmem>>, vector<8x196xf32>
    %410 = vector.broadcast %60 : f32 to vector<8x196xf32>
    %411 = arith.mulf %410, %409 : vector<8x196xf32>
    %412 = arith.addf %408, %411 : vector<8x196xf32>
    %c0_220 = arith.constant 0 : index
    %c0_221 = arith.constant 0 : index
    %413 = vector.load %arg18[%c0_220, %c0_221] : memref<8x196xf32, #tpu.memory_space<vmem>>, vector<8x196xf32>
    %414 = vector.broadcast %61 : f32 to vector<8x196xf32>
    %415 = arith.mulf %414, %413 : vector<8x196xf32>
    %416 = arith.addf %412, %415 : vector<8x196xf32>
    %c0_222 = arith.constant 0 : index
    %c0_223 = arith.constant 0 : index
    %417 = vector.load %arg19[%c0_222, %c0_223] : memref<8x196xf32, #tpu.memory_space<vmem>>, vector<8x196xf32>
    %418 = vector.broadcast %62 : f32 to vector<8x196xf32>
    %419 = arith.mulf %418, %417 : vector<8x196xf32>
    %420 = arith.addf %416, %419 : vector<8x196xf32>
    %c0_224 = arith.constant 0 : index
    %c0_225 = arith.constant 0 : index
    %421 = vector.load %arg20[%c0_224, %c0_225] : memref<8x196xf32, #tpu.memory_space<vmem>>, vector<8x196xf32>
    %422 = vector.broadcast %63 : f32 to vector<8x196xf32>
    %423 = arith.mulf %422, %421 : vector<8x196xf32>
    %424 = arith.addf %420, %423 : vector<8x196xf32>
    %c0_226 = arith.constant 0 : index
    %c0_227 = arith.constant 0 : index
    %425 = vector.load %arg22[%c0_226, %c0_227] : memref<8x196xf32, #tpu.memory_space<vmem>>, vector<8x196xf32>
    %426 = vector.broadcast %64 : f32 to vector<8x196xf32>
    %427 = arith.mulf %426, %425 : vector<8x196xf32>
    %428 = arith.addf %424, %427 : vector<8x196xf32>
    %c0_228 = arith.constant 0 : index
    %c0_229 = arith.constant 0 : index
    %429 = vector.load %arg23[%c0_228, %c0_229] : memref<8x196xf32, #tpu.memory_space<vmem>>, vector<8x196xf32>
    %430 = vector.broadcast %65 : f32 to vector<8x196xf32>
    %431 = arith.mulf %430, %429 : vector<8x196xf32>
    %432 = arith.addf %428, %431 : vector<8x196xf32>
    %c0_230 = arith.constant 0 : index
    %c0_231 = arith.constant 0 : index
    %433 = vector.load %arg24[%c0_230, %c0_231] : memref<8x196xf32, #tpu.memory_space<vmem>>, vector<8x196xf32>
    %434 = vector.broadcast %66 : f32 to vector<8x196xf32>
    %435 = arith.mulf %434, %433 : vector<8x196xf32>
    %436 = arith.addf %432, %435 : vector<8x196xf32>
    %437 = arith.maximumf %401, %436 : vector<8x196xf32>
    %c0_232 = arith.constant 0 : index
    %c0_233 = arith.constant 0 : index
    %438 = vector.load %arg17[%c0_232, %c0_233] : memref<8x196xf32, #tpu.memory_space<vmem>>, vector<8x196xf32>
    %439 = vector.broadcast %58 : f32 to vector<8x196xf32>
    %440 = arith.mulf %439, %438 : vector<8x196xf32>
    %c0_234 = arith.constant 0 : index
    %c0_235 = arith.constant 0 : index
    %441 = vector.load %arg18[%c0_234, %c0_235] : memref<8x196xf32, #tpu.memory_space<vmem>>, vector<8x196xf32>
    %442 = vector.broadcast %59 : f32 to vector<8x196xf32>
    %443 = arith.mulf %442, %441 : vector<8x196xf32>
    %444 = arith.addf %440, %443 : vector<8x196xf32>
    %c0_236 = arith.constant 0 : index
    %c0_237 = arith.constant 0 : index
    %445 = vector.load %arg19[%c0_236, %c0_237] : memref<8x196xf32, #tpu.memory_space<vmem>>, vector<8x196xf32>
    %446 = vector.broadcast %60 : f32 to vector<8x196xf32>
    %447 = arith.mulf %446, %445 : vector<8x196xf32>
    %448 = arith.addf %444, %447 : vector<8x196xf32>
    %c0_238 = arith.constant 0 : index
    %c0_239 = arith.constant 0 : index
    %449 = vector.load %arg21[%c0_238, %c0_239] : memref<8x196xf32, #tpu.memory_space<vmem>>, vector<8x196xf32>
    %450 = vector.broadcast %61 : f32 to vector<8x196xf32>
    %451 = arith.mulf %450, %449 : vector<8x196xf32>
    %452 = arith.addf %448, %451 : vector<8x196xf32>
    %c0_240 = arith.constant 0 : index
    %c0_241 = arith.constant 0 : index
    %453 = vector.load %arg22[%c0_240, %c0_241] : memref<8x196xf32, #tpu.memory_space<vmem>>, vector<8x196xf32>
    %454 = vector.broadcast %62 : f32 to vector<8x196xf32>
    %455 = arith.mulf %454, %453 : vector<8x196xf32>
    %456 = arith.addf %452, %455 : vector<8x196xf32>
    %c0_242 = arith.constant 0 : index
    %c0_243 = arith.constant 0 : index
    %457 = vector.load %arg23[%c0_242, %c0_243] : memref<8x196xf32, #tpu.memory_space<vmem>>, vector<8x196xf32>
    %458 = vector.broadcast %63 : f32 to vector<8x196xf32>
    %459 = arith.mulf %458, %457 : vector<8x196xf32>
    %460 = arith.addf %456, %459 : vector<8x196xf32>
    %c0_244 = arith.constant 0 : index
    %c0_245 = arith.constant 0 : index
    %461 = vector.load %arg25[%c0_244, %c0_245] : memref<8x196xf32, #tpu.memory_space<vmem>>, vector<8x196xf32>
    %462 = vector.broadcast %64 : f32 to vector<8x196xf32>
    %463 = arith.mulf %462, %461 : vector<8x196xf32>
    %464 = arith.addf %460, %463 : vector<8x196xf32>
    %c0_246 = arith.constant 0 : index
    %c0_247 = arith.constant 0 : index
    %465 = vector.load %arg26[%c0_246, %c0_247] : memref<8x196xf32, #tpu.memory_space<vmem>>, vector<8x196xf32>
    %466 = vector.broadcast %65 : f32 to vector<8x196xf32>
    %467 = arith.mulf %466, %465 : vector<8x196xf32>
    %468 = arith.addf %464, %467 : vector<8x196xf32>
    %c0_248 = arith.constant 0 : index
    %c0_249 = arith.constant 0 : index
    %469 = vector.load %arg27[%c0_248, %c0_249] : memref<8x196xf32, #tpu.memory_space<vmem>>, vector<8x196xf32>
    %470 = vector.broadcast %66 : f32 to vector<8x196xf32>
    %471 = arith.mulf %470, %469 : vector<8x196xf32>
    %472 = arith.addf %468, %471 : vector<8x196xf32>
    %473 = arith.maximumf %437, %472 : vector<8x196xf32>
    %c0_250 = arith.constant 0 : index
    %c0_251 = arith.constant 0 : index
    %474 = vector.load %arg18[%c0_250, %c0_251] : memref<8x196xf32, #tpu.memory_space<vmem>>, vector<8x196xf32>
    %475 = vector.broadcast %58 : f32 to vector<8x196xf32>
    %476 = arith.mulf %475, %474 : vector<8x196xf32>
    %c0_252 = arith.constant 0 : index
    %c0_253 = arith.constant 0 : index
    %477 = vector.load %arg19[%c0_252, %c0_253] : memref<8x196xf32, #tpu.memory_space<vmem>>, vector<8x196xf32>
    %478 = vector.broadcast %59 : f32 to vector<8x196xf32>
    %479 = arith.mulf %478, %477 : vector<8x196xf32>
    %480 = arith.addf %476, %479 : vector<8x196xf32>
    %c0_254 = arith.constant 0 : index
    %c0_255 = arith.constant 0 : index
    %481 = vector.load %arg20[%c0_254, %c0_255] : memref<8x196xf32, #tpu.memory_space<vmem>>, vector<8x196xf32>
    %482 = vector.broadcast %60 : f32 to vector<8x196xf32>
    %483 = arith.mulf %482, %481 : vector<8x196xf32>
    %484 = arith.addf %480, %483 : vector<8x196xf32>
    %c0_256 = arith.constant 0 : index
    %c0_257 = arith.constant 0 : index
    %485 = vector.load %arg22[%c0_256, %c0_257] : memref<8x196xf32, #tpu.memory_space<vmem>>, vector<8x196xf32>
    %486 = vector.broadcast %61 : f32 to vector<8x196xf32>
    %487 = arith.mulf %486, %485 : vector<8x196xf32>
    %488 = arith.addf %484, %487 : vector<8x196xf32>
    %c0_258 = arith.constant 0 : index
    %c0_259 = arith.constant 0 : index
    %489 = vector.load %arg23[%c0_258, %c0_259] : memref<8x196xf32, #tpu.memory_space<vmem>>, vector<8x196xf32>
    %490 = vector.broadcast %62 : f32 to vector<8x196xf32>
    %491 = arith.mulf %490, %489 : vector<8x196xf32>
    %492 = arith.addf %488, %491 : vector<8x196xf32>
    %c0_260 = arith.constant 0 : index
    %c0_261 = arith.constant 0 : index
    %493 = vector.load %arg24[%c0_260, %c0_261] : memref<8x196xf32, #tpu.memory_space<vmem>>, vector<8x196xf32>
    %494 = vector.broadcast %63 : f32 to vector<8x196xf32>
    %495 = arith.mulf %494, %493 : vector<8x196xf32>
    %496 = arith.addf %492, %495 : vector<8x196xf32>
    %c0_262 = arith.constant 0 : index
    %c0_263 = arith.constant 0 : index
    %497 = vector.load %arg26[%c0_262, %c0_263] : memref<8x196xf32, #tpu.memory_space<vmem>>, vector<8x196xf32>
    %498 = vector.broadcast %64 : f32 to vector<8x196xf32>
    %499 = arith.mulf %498, %497 : vector<8x196xf32>
    %500 = arith.addf %496, %499 : vector<8x196xf32>
    %c0_264 = arith.constant 0 : index
    %c0_265 = arith.constant 0 : index
    %501 = vector.load %arg27[%c0_264, %c0_265] : memref<8x196xf32, #tpu.memory_space<vmem>>, vector<8x196xf32>
    %502 = vector.broadcast %65 : f32 to vector<8x196xf32>
    %503 = arith.mulf %502, %501 : vector<8x196xf32>
    %504 = arith.addf %500, %503 : vector<8x196xf32>
    %c0_266 = arith.constant 0 : index
    %c0_267 = arith.constant 0 : index
    %505 = vector.load %arg28[%c0_266, %c0_267] : memref<8x196xf32, #tpu.memory_space<vmem>>, vector<8x196xf32>
    %506 = vector.broadcast %66 : f32 to vector<8x196xf32>
    %507 = arith.mulf %506, %505 : vector<8x196xf32>
    %508 = arith.addf %504, %507 : vector<8x196xf32>
    %509 = arith.maximumf %473, %508 : vector<8x196xf32>
    %510 = vector.broadcast %69 : f32 to vector<8x196xf32>
    %511 = arith.addf %509, %510 : vector<8x196xf32>
    %512 = arith.truncf %511 : vector<8x196xf32> to vector<8x196xbf16>
    %c0_268 = arith.constant 0 : index
    %c0_269 = arith.constant 0 : index
    %513 = vector.load %arg6[%c0_268, %c0_269] : memref<196x512xbf16, #tpu.memory_space<vmem>>, vector<196x512xbf16>
    %cst_270 = arith.constant dense<0.000000e+00> : vector<8x512xf32>
    %514 = tpu.matmul %512, %513, %cst_270 {dimension_numbers = #tpu.dot_dimension_numbers<[1], [0], [0], [1], [0, 0, 1, 1], [], []>} : vector<8x196xbf16>, vector<196x512xbf16>, vector<8x512xf32> -> vector<8x512xf32>
    %515 = arith.addf %366, %514 : vector<8x512xf32>
    %c0_271 = arith.constant 0 : index
    %c0_272 = arith.constant 0 : index
    %516 = vector.load %arg7[%c0_271, %c0_272] : memref<1x512xf32, #tpu.memory_space<vmem>>, vector<1x512xf32>
    %517 = vector.broadcast %516 : vector<1x512xf32> to vector<8x512xf32>
    %518 = arith.addf %515, %517 : vector<8x512xf32>
    %cst_273 = arith.constant 0.000000e+00 : f32
    %519 = vector.broadcast %cst_273 : f32 to vector<8x512xf32>
    %520 = arith.maximumf %518, %519 : vector<8x512xf32>
    %521 = arith.truncf %520 : vector<8x512xf32> to vector<8x512xbf16>
    %c0_274 = arith.constant 0 : index
    %c0_275 = arith.constant 0 : index
    %522 = vector.load %arg8[%c0_274, %c0_275] : memref<512x512xbf16, #tpu.memory_space<vmem>>, vector<512x512xbf16>
    %cst_276 = arith.constant dense<0.000000e+00> : vector<8x512xf32>
    %523 = tpu.matmul %521, %522, %cst_276 {dimension_numbers = #tpu.dot_dimension_numbers<[1], [0], [0], [1], [0, 0, 1, 1], [], []>} : vector<8x512xbf16>, vector<512x512xbf16>, vector<8x512xf32> -> vector<8x512xf32>
    %c0_277 = arith.constant 0 : index
    %c0_278 = arith.constant 0 : index
    %524 = vector.load %arg9[%c0_277, %c0_278] : memref<1x512xf32, #tpu.memory_space<vmem>>, vector<1x512xf32>
    %525 = vector.broadcast %524 : vector<1x512xf32> to vector<8x512xf32>
    %526 = arith.addf %523, %525 : vector<8x512xf32>
    %cst_279 = arith.constant 0.000000e+00 : f32
    %527 = vector.broadcast %cst_279 : f32 to vector<8x512xf32>
    %528 = arith.maximumf %526, %527 : vector<8x512xf32>
    %529 = arith.truncf %528 : vector<8x512xf32> to vector<8x512xbf16>
    %c0_280 = arith.constant 0 : index
    %c0_281 = arith.constant 0 : index
    %530 = vector.load %arg10[%c0_280, %c0_281] : memref<512x128xbf16, #tpu.memory_space<vmem>>, vector<512x128xbf16>
    %cst_282 = arith.constant dense<0.000000e+00> : vector<8x128xf32>
    %531 = tpu.matmul %529, %530, %cst_282 {dimension_numbers = #tpu.dot_dimension_numbers<[1], [0], [0], [1], [0, 0, 1, 1], [], []>} : vector<8x512xbf16>, vector<512x128xbf16>, vector<8x128xf32> -> vector<8x128xf32>
    %c0_283 = arith.constant 0 : index
    %c0_284 = arith.constant 0 : index
    %532 = vector.load %arg11[%c0_283, %c0_284] : memref<1x128xf32, #tpu.memory_space<vmem>>, vector<1x128xf32>
    %533 = vector.broadcast %532 : vector<1x128xf32> to vector<8x128xf32>
    %534 = arith.addf %531, %533 : vector<8x128xf32>
    %c0_285 = arith.constant 0 : index
    %c0_286 = arith.constant 0 : index
    %535 = vector.load %arg12[%c0_285, %c0_286] : memref<8x128xf32, #tpu.memory_space<vmem>>, vector<8x128xf32>
    tpu.vector_store %arg12[%c0_285, %c0_286], %534 {strides = array<i32>} : memref<8x128xf32, #tpu.memory_space<vmem>>, vector<8x128xf32>,
    return
  }
  func.func @transform_0(%arg0: i32) -> i32 {
    %c0_i32 = arith.constant 0 : i32
    %c0_i32_0 = arith.constant 0 : i32
    return %c0_i32 : i32
  }
  func.func @transform_1(%arg0: i32) -> i32 {
    %c0_i32 = arith.constant 0 : i32
    %c0_i32_0 = arith.constant 0 : i32
    return %c0_i32 : i32
  }
  func.func @transform_2(%arg0: i32) -> (i32, i32, i32) {
    %c0_i32 = arith.constant 0 : i32
    %c0_i32_0 = arith.constant 0 : i32
    %c0_i32_1 = arith.constant 0 : i32
    return %c0_i32, %arg0, %c0_i32_0 : i32, i32, i32
  }
  func.func @transform_3(%arg0: i32) -> (i32, i32) {
    %c0_i32 = arith.constant 0 : i32
    %c0_i32_0 = arith.constant 0 : i32
    %c0_i32_1 = arith.constant 0 : i32
    return %c0_i32, %c0_i32_0 : i32, i32
  }
  func.func @transform_4(%arg0: i32) -> (i32, i32) {
    %c0_i32 = arith.constant 0 : i32
    %c0_i32_0 = arith.constant 0 : i32
    %c0_i32_1 = arith.constant 0 : i32
    return %c0_i32, %c0_i32_0 : i32, i32
  }
  func.func @transform_5(%arg0: i32) -> (i32, i32) {
    %c0_i32 = arith.constant 0 : i32
    %c0_i32_0 = arith.constant 0 : i32
    %c0_i32_1 = arith.constant 0 : i32
    return %c0_i32, %c0_i32_0 : i32, i32
  }
  func.func @transform_6(%arg0: i32) -> (i32, i32) {
    %c0_i32 = arith.constant 0 : i32
    %c0_i32_0 = arith.constant 0 : i32
    %c0_i32_1 = arith.constant 0 : i32
    return %c0_i32, %c0_i32_0 : i32, i32
  }
  func.func @transform_7(%arg0: i32) -> (i32, i32) {
    %c0_i32 = arith.constant 0 : i32
    %c0_i32_0 = arith.constant 0 : i32
    %c0_i32_1 = arith.constant 0 : i32
    return %c0_i32, %c0_i32_0 : i32, i32
  }
  func.func @transform_8(%arg0: i32) -> (i32, i32) {
    %c0_i32 = arith.constant 0 : i32
    %c0_i32_0 = arith.constant 0 : i32
    %c0_i32_1 = arith.constant 0 : i32
    return %c0_i32, %c0_i32_0 : i32, i32
  }
  func.func @transform_9(%arg0: i32) -> (i32, i32) {
    %c0_i32 = arith.constant 0 : i32
    %c0_i32_0 = arith.constant 0 : i32
    %c0_i32_1 = arith.constant 0 : i32
    return %c0_i32, %c0_i32_0 : i32, i32
  }
  func.func @transform_10(%arg0: i32) -> (i32, i32) {
    %c0_i32 = arith.constant 0 : i32
    %c0_i32_0 = arith.constant 0 : i32
    %c0_i32_1 = arith.constant 0 : i32
    return %c0_i32, %c0_i32_0 : i32, i32
  }
  func.func @transform_11(%arg0: i32) -> (i32, i32) {
    %c0_i32 = arith.constant 0 : i32
    %c0_i32_0 = arith.constant 0 : i32
    return %arg0, %c0_i32 : i32, i32
  }
}

</mosaic_0001>

<llo_original>
// kernel: squeeze.1
$region0: #{squeeze.1}
  %s0 = inlined_call_operand.vmem [shape: f32[2,1,28,28], index: 0, kind: input, shape index: {}]
  %s1 = inlined_call_operand.vmem [shape: f32[2,14,2,14,2], index: 1, kind: output, shape index: {}]
  $region1: #{squeeze.1} parent=0
    #allocation0 [shape = 'u8[114688]{0}', space=vmem, size = 0x1c000, scoped, tag = 'scoped mem for input reshape']
    %s3 = ssub.s32 4, 1
    %s4 = scalar_lea.vmem %s0, 54
    %v5 = vld [vmem:[%s4] sm:%s3]
    %s6 = scalar_lea.vmem [#allocation0], 216
    %7 = vst [vmem:[%s6] sm:%s3] %v5
    %s8 = scalar_lea.vmem %s0, 52
    %v9 = vld [vmem:[%s8] sm:%s3]
    %s10 = scalar_lea.vmem [#allocation0], 208
    %11 = vst [vmem:[%s10] sm:%s3] %v9
    %s12 = scalar_lea.vmem %s0, 50
    %v13 = vld [vmem:[%s12] sm:%s3]
    %s14 = scalar_lea.vmem [#allocation0], 200
    %15 = vst [vmem:[%s14] sm:%s3] %v13
    %s16 = scalar_lea.vmem %s0, 48
    %v17 = vld [vmem:[%s16] sm:%s3]
    %s18 = scalar_lea.vmem [#allocation0], 192
    %19 = vst [vmem:[%s18] sm:%s3] %v17
    %s20 = scalar_lea.vmem %s0, 46
    %v21 = vld [vmem:[%s20] sm:%s3]
    %s22 = scalar_lea.vmem [#allocation0], 184
    %23 = vst [vmem:[%s22] sm:%s3] %v21
    %s24 = scalar_lea.vmem %s0, 44
    %v25 = vld [vmem:[%s24] sm:%s3]
    %s26 = scalar_lea.vmem [#allocation0], 176
    %27 = vst [vmem:[%s26] sm:%s3] %v25
    %s28 = scalar_lea.vmem %s0, 42
    %v29 = vld [vmem:[%s28] sm:%s3]
    %s30 = scalar_lea.vmem [#allocation0], 168
    %31 = vst [vmem:[%s30] sm:%s3] %v29
    %s32 = scalar_lea.vmem %s0, 40
    %v33 = vld [vmem:[%s32] sm:%s3]
    %s34 = scalar_lea.vmem [#allocation0], 160
    %35 = vst [vmem:[%s34] sm:%s3] %v33
    %s36 = scalar_lea.vmem %s0, 38
    %v37 = vld [vmem:[%s36] sm:%s3]
    %s38 = scalar_lea.vmem [#allocation0], 152
    %39 = vst [vmem:[%s38] sm:%s3] %v37
    %s40 = scalar_lea.vmem %s0, 36
    %v41 = vld [vmem:[%s40] sm:%s3]
    %s42 = scalar_lea.vmem [#allocation0], 144
    %43 = vst [vmem:[%s42] sm:%s3] %v41
    %s44 = scalar_lea.vmem %s0, 34
    %v45 = vld [vmem:[%s44] sm:%s3]
    %s46 = scalar_lea.vmem [#allocation0], 136
    %47 = vst [vmem:[%s46] sm:%s3] %v45
    %s48 = scalar_lea.vmem %s0, 32
    %v49 = vld [vmem:[%s48] sm:%s3]
    %s50 = scalar_lea.vmem [#allocation0], 128
    %51 = vst [vmem:[%s50] sm:%s3] %v49
    %s52 = scalar_lea.vmem %s0, 30
    %v53 = vld [vmem:[%s52] sm:%s3]
    %s54 = scalar_lea.vmem [#allocation0], 120
    %55 = vst [vmem:[%s54] sm:%s3] %v53
    %s56 = scalar_lea.vmem %s0, 28
    %v57 = vld [vmem:[%s56] sm:%s3]
    %s58 = scalar_lea.vmem [#allocation0], 112
    %59 = vst [vmem:[%s58] sm:%s3] %v57
    %s60 = scalar_lea.vmem %s0, 26
    %v61 = vld [vmem:[%s60] sm:%s3]
    %s62 = scalar_lea.vmem [#allocation0], 104
    %63 = vst [vmem:[%s62] sm:%s3] %v61
    %s64 = scalar_lea.vmem %s0, 24
    %v65 = vld [vmem:[%s64] sm:%s3]
    %s66 = scalar_lea.vmem [#allocation0], 96
    %67 = vst [vmem:[%s66] sm:%s3] %v65
    %s68 = scalar_lea.vmem %s0, 22
    %v69 = vld [vmem:[%s68] sm:%s3]
    %s70 = scalar_lea.vmem [#allocation0], 88
    %71 = vst [vmem:[%s70] sm:%s3] %v69
    %s72 = scalar_lea.vmem %s0, 20
    %v73 = vld [vmem:[%s72] sm:%s3]
    %s74 = scalar_lea.vmem [#allocation0], 80
    %75 = vst [vmem:[%s74] sm:%s3] %v73
    %s76 = scalar_lea.vmem %s0, 18
    %v77 = vld [vmem:[%s76] sm:%s3]
    %s78 = scalar_lea.vmem [#allocation0], 72
    %79 = vst [vmem:[%s78] sm:%s3] %v77
    %s80 = scalar_lea.vmem %s0, 16
    %v81 = vld [vmem:[%s80] sm:%s3]
    %s82 = scalar_lea.vmem [#allocation0], 64
    %83 = vst [vmem:[%s82] sm:%s3] %v81
    %s84 = scalar_lea.vmem %s0, 14
    %v85 = vld [vmem:[%s84] sm:%s3]
    %s86 = scalar_lea.vmem [#allocation0], 56
    %87 = vst [vmem:[%s86] sm:%s3] %v85
    %s88 = scalar_lea.vmem %s0, 12
    %v89 = vld [vmem:[%s88] sm:%s3]
    %s90 = scalar_lea.vmem [#allocation0], 48
    %91 = vst [vmem:[%s90] sm:%s3] %v89
    %s92 = scalar_lea.vmem %s0, 10
    %v93 = vld [vmem:[%s92] sm:%s3]
    %s94 = scalar_lea.vmem [#allocation0], 40
    %95 = vst [vmem:[%s94] sm:%s3] %v93
    %s96 = scalar_lea.vmem %s0, 8
    %v97 = vld [vmem:[%s96] sm:%s3]
    %s98 = scalar_lea.vmem [#allocation0], 32
    %99 = vst [vmem:[%s98] sm:%s3] %v97
    %s100 = scalar_lea.vmem %s0, 6
    %v101 = vld [vmem:[%s100] sm:%s3]
    %s102 = scalar_lea.vmem [#allocation0], 24
    %103 = vst [vmem:[%s102] sm:%s3] %v101
    %s104 = scalar_lea.vmem %s0, 4
    %v105 = vld [vmem:[%s104] sm:%s3]
    %s106 = scalar_lea.vmem [#allocation0], 16
    %107 = vst [vmem:[%s106] sm:%s3] %v105
    %s108 = scalar_lea.vmem %s0, 2
    %v109 = vld [vmem:[%s108] sm:%s3]
    %s110 = scalar_lea.vmem [#allocation0], 8
    %111 = vst [vmem:[%s110] sm:%s3] %v109
    %v112 = vld [vmem:[%s0] sm:%s3]
    %113 = vst [vmem:[#allocation0] sm:%s3] %v112
    %v114 = vld [vmem:[#allocation0] sm:$0x3]
    %vm115 = vcmask 15360
    %116 = vst.msk [vmem:[%s1] ss:$16 sm:$0x3] %vm115, %v114
    %s117 = scalar_lea.vmem [#allocation0], 8
    %v118 = vld [vmem:[%s117] sm:$0x3]
    %vm119 = vcmask 15360
    %s120 = scalar_lea.vmem %s1, 32
    %121 = vst.msk [vmem:[%s120] ss:$16 sm:$0x3] %vm119, %v118
    %s122 = scalar_lea.vmem [#allocation0], 16
    %v123 = vld [vmem:[%s122] sm:$0x3]
    %vm124 = vcmask 15360
    %s125 = scalar_lea.vmem %s1, 64
    %126 = vst.msk [vmem:[%s125] ss:$16 sm:$0x3] %vm124, %v123
    %s127 = scalar_lea.vmem [#allocation0], 24
    %v128 = vld [vmem:[%s127] sm:$0x3]
    %vm129 = vcmask 15360
    %s130 = scalar_lea.vmem %s1, 96
    %131 = vst.msk [vmem:[%s130] ss:$16 sm:$0x3] %vm129, %v128
    %s132 = scalar_lea.vmem [#allocation0], 32
    %v133 = vld [vmem:[%s132] sm:$0x3]
    %vm134 = vcmask 15360
    %s135 = scalar_lea.vmem %s1, 128
    %136 = vst.msk [vmem:[%s135] ss:$16 sm:$0x3] %vm134, %v133
    %s137 = scalar_lea.vmem [#allocation0], 40
    %v138 = vld [vmem:[%s137] sm:$0x3]
    %vm139 = vcmask 15360
    %s140 = scalar_lea.vmem %s1, 160
    %141 = vst.msk [vmem:[%s140] ss:$16 sm:$0x3] %vm139, %v138
    %s142 = scalar_lea.vmem [#allocation0], 48
    %v143 = vld [vmem:[%s142] sm:$0x3]
    %vm144 = vcmask 15360
    %s145 = scalar_lea.vmem %s1, 192
    %146 = vst.msk [vmem:[%s145] ss:$16 sm:$0x3] %vm144, %v143
    %s147 = scalar_lea.vmem [#allocation0], 56
    %v148 = vld [vmem:[%s147] sm:$0x3]
    %vm149 = vcmask 15360
    %s150 = scalar_lea.vmem %s1, 224
    %151 = vst.msk [vmem:[%s150] ss:$16 sm:$0x3] %vm149, %v148
    %s152 = scalar_lea.vmem [#allocation0], 64
    %v153 = vld [vmem:[%s152] sm:$0x3]
    %vm154 = vcmask 15360
    %s155 = scalar_lea.vmem %s1, 256
    %156 = vst.msk [vmem:[%s155] ss:$16 sm:$0x3] %vm154, %v153
    %s157 = scalar_lea.vmem [#allocation0], 72
    %v158 = vld [vmem:[%s157] sm:$0x3]
    %vm159 = vcmask 15360
    %s160 = scalar_lea.vmem %s1, 288
    %161 = vst.msk [vmem:[%s160] ss:$16 sm:$0x3] %vm159, %v158
    %s162 = scalar_lea.vmem [#allocation0], 80
    %v163 = vld [vmem:[%s162] sm:$0x3]
    %vm164 = vcmask 15360
    %s165 = scalar_lea.vmem %s1, 320
    %166 = vst.msk [vmem:[%s165] ss:$16 sm:$0x3] %vm164, %v163
    %s167 = scalar_lea.vmem [#allocation0], 88
    %v168 = vld [vmem:[%s167] sm:$0x3]
    %vm169 = vcmask 15360
    %s170 = scalar_lea.vmem %s1, 352
    %171 = vst.msk [vmem:[%s170] ss:$16 sm:$0x3] %vm169, %v168
    %s172 = scalar_lea.vmem [#allocation0], 96
    %v173 = vld [vmem:[%s172] sm:$0x3]
    %vm174 = vcmask 15360
    %s175 = scalar_lea.vmem %s1, 384
    %176 = vst.msk [vmem:[%s175] ss:$16 sm:$0x3] %vm174, %v173
    %s177 = scalar_lea.vmem [#allocation0], 104
    %v178 = vld [vmem:[%s177] sm:$0x3]
    %vm179 = vcmask 15360
    %s180 = scalar_lea.vmem %s1, 416
    %181 = vst.msk [vmem:[%s180] ss:$16 sm:$0x3] %vm179, %v178
    %s182 = scalar_lea.vmem [#allocation0], 112
    %v183 = vld [vmem:[%s182] sm:$0x3]
    %vm184 = vcmask 15360
    %s185 = scalar_lea.vmem %s1, 448
    %186 = vst.msk [vmem:[%s185] ss:$16 sm:$0x3] %vm184, %v183
    %s187 = scalar_lea.vmem [#allocation0], 120
    %v188 = vld [vmem:[%s187] sm:$0x3]
    %vm189 = vcmask 15360
    %s190 = scalar_lea.vmem %s1, 480
    %191 = vst.msk [vmem:[%s190] ss:$16 sm:$0x3] %vm189, %v188
    %s192 = scalar_lea.vmem [#allocation0], 128
    %v193 = vld [vmem:[%s192] sm:$0x3]
    %vm194 = vcmask 15360
    %s195 = scalar_lea.vmem %s1, 512
    %196 = vst.msk [vmem:[%s195] ss:$16 sm:$0x3] %vm194, %v193
    %s197 = scalar_lea.vmem [#allocation0], 136
    %v198 = vld [vmem:[%s197] sm:$0x3]
    %vm199 = vcmask 15360
    %s200 = scalar_lea.vmem %s1, 544
    %201 = vst.msk [vmem:[%s200] ss:$16 sm:$0x3] %vm199, %v198
    %s202 = scalar_lea.vmem [#allocation0], 144
    %v203 = vld [vmem:[%s202] sm:$0x3]
    %vm204 = vcmask 15360
    %s205 = scalar_lea.vmem %s1, 576
    %206 = vst.msk [vmem:[%s205] ss:$16 sm:$0x3] %vm204, %v203
    %s207 = scalar_lea.vmem [#allocation0], 152
    %v208 = vld [vmem:[%s207] sm:$0x3]
    %vm209 = vcmask 15360
    %s210 = scalar_lea.vmem %s1, 608
    %211 = vst.msk [vmem:[%s210] ss:$16 sm:$0x3] %vm209, %v208
    %s212 = scalar_lea.vmem [#allocation0], 160
    %v213 = vld [vmem:[%s212] sm:$0x3]
    %vm214 = vcmask 15360
    %s215 = scalar_lea.vmem %s1, 640
    %216 = vst.msk [vmem:[%s215] ss:$16 sm:$0x3] %vm214, %v213
    %s217 = scalar_lea.vmem [#allocation0], 168
    %v218 = vld [vmem:[%s217] sm:$0x3]
    %vm219 = vcmask 15360
    %s220 = scalar_lea.vmem %s1, 672
    %221 = vst.msk [vmem:[%s220] ss:$16 sm:$0x3] %vm219, %v218
    %s222 = scalar_lea.vmem [#allocation0], 176
    %v223 = vld [vmem:[%s222] sm:$0x3]
    %vm224 = vcmask 15360
    %s225 = scalar_lea.vmem %s1, 704
    %226 = vst.msk [vmem:[%s225] ss:$16 sm:$0x3] %vm224, %v223
    %s227 = scalar_lea.vmem [#allocation0], 184
    %v228 = vld [vmem:[%s227] sm:$0x3]
    %vm229 = vcmask 15360
    %s230 = scalar_lea.vmem %s1, 736
    %231 = vst.msk [vmem:[%s230] ss:$16 sm:$0x3] %vm229, %v228
    %s232 = scalar_lea.vmem [#allocation0], 192
    %v233 = vld [vmem:[%s232] sm:$0x3]
    %vm234 = vcmask 15360
    %s235 = scalar_lea.vmem %s1, 768
    %236 = vst.msk [vmem:[%s235] ss:$16 sm:$0x3] %vm234, %v233
    %s237 = scalar_lea.vmem [#allocation0], 200
    %v238 = vld [vmem:[%s237] sm:$0x3]
    %vm239 = vcmask 15360
    %s240 = scalar_lea.vmem %s1, 800
    %241 = vst.msk [vmem:[%s240] ss:$16 sm:$0x3] %vm239, %v238
    %s242 = scalar_lea.vmem [#allocation0], 208
    %v243 = vld [vmem:[%s242] sm:$0x3]
    %vm244 = vcmask 15360
    %s245 = scalar_lea.vmem %s1, 832
    %246 = vst.msk [vmem:[%s245] ss:$16 sm:$0x3] %vm244, %v243
    %s247 = scalar_lea.vmem [#allocation0], 216
    %v248 = vld [vmem:[%s247] sm:$0x3]
    %vm249 = vcmask 15360
    %s250 = scalar_lea.vmem %s1, 864
    %251 = vst.msk [vmem:[%s250] ss:$16 sm:$0x3] %vm249, %v248
    %v252 = vld.sshfl [vmem:[#allocation0] sm:$0xff pattern:$0x99999810]
    %s253 = scalar_lea.vmem [#allocation0], 16
    %v254 = vld.sshfl [vmem:[%s253] sm:$0xff pattern:$0x98100000]
    %vm255 = vcmask 1047556
    %v256 = vsel %vm255, %v254, %v252
    %257 = vrot.lane.b32.xlu0 %v256, 126
    %v258 = vpop.permute.xlu0 %257
    %vm259 = vcmask 15360
    %s260 = scalar_lea.vmem %s1, 1
    %261 = vst.msk [vmem:[%s260] ss:$16 sm:$0x3] %vm259, %v258
    %s262 = scalar_lea.vmem %s1, 1
    %263 = vst.msk [vmem:[%s262] ss:$16 sm:$0xc] %vm259, %v258
    %s264 = scalar_lea.vmem %s1, 1
    %265 = vst.msk [vmem:[%s264] ss:$16 sm:$0x30] %vm259, %v258
    %s266 = scalar_lea.vmem %s1, 1
    %267 = vst.msk [vmem:[%s266] ss:$16 sm:$0xc0] %vm259, %v258
    %s268 = scalar_lea.vmem [#allocation0], 32
    %v269 = vld.sshfl [vmem:[%s268] sm:$0xff pattern:$0x99999810]
    %s270 = scalar_lea.vmem [#allocation0], 48
    %v271 = vld.sshfl [vmem:[%s270] sm:$0xff pattern:$0x98100000]
    %vm272 = vcmask 1047556
    %v273 = vsel %vm272, %v271, %v269
    %274 = vrot.lane.b32.xlu0 %v273, 126
    %v275 = vpop.permute.xlu0 %274
    %vm276 = vcmask 15360
    %s277 = scalar_lea.vmem %s1, 129
    %278 = vst.msk [vmem:[%s277] ss:$16 sm:$0x3] %vm276, %v275
    %s279 = scalar_lea.vmem %s1, 129
    %280 = vst.msk [vmem:[%s279] ss:$16 sm:$0xc] %vm276, %v275
    %s281 = scalar_lea.vmem %s1, 129
    %282 = vst.msk [vmem:[%s281] ss:$16 sm:$0x30] %vm276, %v275
    %s283 = scalar_lea.vmem %s1, 129
    %284 = vst.msk [vmem:[%s283] ss:$16 sm:$0xc0] %vm276, %v275
    %s285 = scalar_lea.vmem [#allocation0], 64
    %v286 = vld.sshfl [vmem:[%s285] sm:$0xff pattern:$0x99999810]
    %s287 = scalar_lea.vmem [#allocation0], 80
    %v288 = vld.sshfl [vmem:[%s287] sm:$0xff pattern:$0x98100000]
    %vm289 = vcmask 1047556
    %v290 = vsel %vm289, %v288, %v286
    %291 = vrot.lane.b32.xlu0 %v290, 126
    %v292 = vpop.permute.xlu0 %291
    %vm293 = vcmask 15360
    %s294 = scalar_lea.vmem %s1, 257
    %295 = vst.msk [vmem:[%s294] ss:$16 sm:$0x3] %vm293, %v292
    %s296 = scalar_lea.vmem %s1, 257
    %297 = vst.msk [vmem:[%s296] ss:$16 sm:$0xc] %vm293, %v292
    %s298 = scalar_lea.vmem %s1, 257
    %299 = vst.msk [vmem:[%s298] ss:$16 sm:$0x30] %vm293, %v292
    %s300 = scalar_lea.vmem %s1, 257
    %301 = vst.msk [vmem:[%s300] ss:$16 sm:$0xc0] %vm293, %v292
    %s302 = scalar_lea.vmem [#allocation0], 96
    %v303 = vld.sshfl [vmem:[%s302] sm:$0xff pattern:$0x99999810]
    %s304 = scalar_lea.vmem [#allocation0], 112
    %v305 = vld.sshfl [vmem:[%s304] sm:$0xff pattern:$0x98100000]
    %vm306 = vcmask 1047556
    %v307 = vsel %vm306, %v305, %v303
    %308 = vrot.lane.b32.xlu0 %v307, 126
    %v309 = vpop.permute.xlu0 %308
    %vm310 = vcmask 15360
    %s311 = scalar_lea.vmem %s1, 385
    %312 = vst.msk [vmem:[%s311] ss:$16 sm:$0x3] %vm310, %v309
    %s313 = scalar_lea.vmem %s1, 385
    %314 = vst.msk [vmem:[%s313] ss:$16 sm:$0xc] %vm310, %v309
    %s315 = scalar_lea.vmem %s1, 385
    %316 = vst.msk [vmem:[%s315] ss:$16 sm:$0x30] %vm310, %v309
    %s317 = scalar_lea.vmem %s1, 385
    %318 = vst.msk [vmem:[%s317] ss:$16 sm:$0xc0] %vm310, %v309
    %s319 = scalar_lea.vmem [#allocation0], 128
    %v320 = vld.sshfl [vmem:[%s319] sm:$0xff pattern:$0x99999810]
    %s321 = scalar_lea.vmem [#allocation0], 144
    %v322 = vld.sshfl [vmem:[%s321] sm:$0xff pattern:$0x98100000]
    %vm323 = vcmask 1047556
    %v324 = vsel %vm323, %v322, %v320
    %325 = vrot.lane.b32.xlu0 %v324, 126
    %v326 = vpop.permute.xlu0 %325
    %vm327 = vcmask 15360
    %s328 = scalar_lea.vmem %s1, 513
    %329 = vst.msk [vmem:[%s328] ss:$16 sm:$0x3] %vm327, %v326
    %s330 = scalar_lea.vmem %s1, 513
    %331 = vst.msk [vmem:[%s330] ss:$16 sm:$0xc] %vm327, %v326
    %s332 = scalar_lea.vmem %s1, 513
    %333 = vst.msk [vmem:[%s332] ss:$16 sm:$0x30] %vm327, %v326
    %s334 = scalar_lea.vmem %s1, 513
    %335 = vst.msk [vmem:[%s334] ss:$16 sm:$0xc0] %vm327, %v326
    %s336 = scalar_lea.vmem [#allocation0], 160
    %v337 = vld.sshfl [vmem:[%s336] sm:$0xff pattern:$0x99999810]
    %s338 = scalar_lea.vmem [#allocation0], 176
    %v339 = vld.sshfl [vmem:[%s338] sm:$0xff pattern:$0x98100000]
    %vm340 = vcmask 1047556
    %v341 = vsel %vm340, %v339, %v337
    %342 = vrot.lane.b32.xlu0 %v341, 126
    %v343 = vpop.permute.xlu0 %342
    %vm344 = vcmask 15360
    %s345 = scalar_lea.vmem %s1, 641
    %346 = vst.msk [vmem:[%s345] ss:$16 sm:$0x3] %vm344, %v343
    %s347 = scalar_lea.vmem %s1, 641
    %348 = vst.msk [vmem:[%s347] ss:$16 sm:$0xc] %vm344, %v343
    %s349 = scalar_lea.vmem %s1, 641
    %350 = vst.msk [vmem:[%s349] ss:$16 sm:$0x30] %vm344, %v343
    %s351 = scalar_lea.vmem %s1, 641
    %352 = vst.msk [vmem:[%s351] ss:$16 sm:$0xc0] %vm344, %v343
    %s353 = scalar_lea.vmem [#allocation0], 192
    %v354 = vld.sshfl [vmem:[%s353] sm:$0xff pattern:$0x99999810]
    %s355 = scalar_lea.vmem [#allocation0], 208
    %v356 = vld.sshfl [vmem:[%s355] sm:$0xff pattern:$0x98100000]
    %vm357 = vcmask 1047556
    %v358 = vsel %vm357, %v356, %v354
    %359 = vrot.lane.b32.xlu0 %v358, 126
    %v360 = vpop.permute.xlu0 %359
    %vm361 = vcmask 15360
    %s362 = scalar_lea.vmem %s1, 769
    %363 = vst.msk [vmem:[%s362] ss:$16 sm:$0x3] %vm361, %v360
    %s364 = scalar_lea.vmem %s1, 769
    %365 = vst.msk [vmem:[%s364] ss:$16 sm:$0xc] %vm361, %v360
    %s366 = scalar_lea.vmem %s1, 769
    %367 = vst.msk [vmem:[%s366] ss:$16 sm:$0x30] %vm361, %v360
    %s368 = scalar_lea.vmem %s1, 769
    %369 = vst.msk [vmem:[%s368] ss:$16 sm:$0xc0] %vm361, %v360
    %v370 = vld.sshfl [vmem:[#allocation0] sm:$0xff pattern:$0x99999810]
    %s371 = scalar_lea.vmem [#allocation0], 16
    %v372 = vld.sshfl [vmem:[%s371] sm:$0xff pattern:$0x98100000]
    %vm373 = vcmask 1047556
    %v374 = vsel %vm373, %v372, %v370
    %375 = vrot.lane.b32.xlu0 %v374, 124
    %v376 = vpop.permute.xlu0 %375
    %vm377 = vcmask 15360
    %s378 = scalar_lea.vmem %s1, 2
    %379 = vst.msk [vmem:[%s378] ss:$16 sm:$0x3] %vm377, %v376
    %s380 = scalar_lea.vmem %s1, 2
    %381 = vst.msk [vmem:[%s380] ss:$16 sm:$0xc] %vm377, %v376
    %s382 = scalar_lea.vmem %s1, 2
    %383 = vst.msk [vmem:[%s382] ss:$16 sm:$0x30] %vm377, %v376
    %s384 = scalar_lea.vmem %s1, 2
    %385 = vst.msk [vmem:[%s384] ss:$16 sm:$0xc0] %vm377, %v376
    %s386 = scalar_lea.vmem [#allocation0], 32
    %v387 = vld.sshfl [vmem:[%s386] sm:$0xff pattern:$0x99999810]
    %s388 = scalar_lea.vmem [#allocation0], 48
    %v389 = vld.sshfl [vmem:[%s388] sm:$0xff pattern:$0x98100000]
    %vm390 = vcmask 1047556
    %v391 = vsel %vm390, %v389, %v387
    %392 = vrot.lane.b32.xlu0 %v391, 124
    %v393 = vpop.permute.xlu0 %392
    %vm394 = vcmask 15360
    %s395 = scalar_lea.vmem %s1, 130
    %396 = vst.msk [vmem:[%s395] ss:$16 sm:$0x3] %vm394, %v393
    %s397 = scalar_lea.vmem %s1, 130
    %398 = vst.msk [vmem:[%s397] ss:$16 sm:$0xc] %vm394, %v393
    %s399 = scalar_lea.vmem %s1, 130
    %400 = vst.msk [vmem:[%s399] ss:$16 sm:$0x30] %vm394, %v393
    %s401 = scalar_lea.vmem %s1, 130
    %402 = vst.msk [vmem:[%s401] ss:$16 sm:$0xc0] %vm394, %v393
    %s403 = scalar_lea.vmem [#allocation0], 64
    %v404 = vld.sshfl [vmem:[%s403] sm:$0xff pattern:$0x99999810]
    %s405 = scalar_lea.vmem [#allocation0], 80
    %v406 = vld.sshfl [vmem:[%s405] sm:$0xff pattern:$0x98100000]
    %vm407 = vcmask 1047556
    %v408 = vsel %vm407, %v406, %v404
    %409 = vrot.lane.b32.xlu0 %v408, 124
    %v410 = vpop.permute.xlu0 %409
    %vm411 = vcmask 15360
    %s412 = scalar_lea.vmem %s1, 258
    %413 = vst.msk [vmem:[%s412] ss:$16 sm:$0x3] %vm411, %v410
    %s414 = scalar_lea.vmem %s1, 258
    %415 = vst.msk [vmem:[%s414] ss:$16 sm:$0xc] %vm411, %v410
    %s416 = scalar_lea.vmem %s1, 258
    %417 = vst.msk [vmem:[%s416] ss:$16 sm:$0x30] %vm411, %v410
    %s418 = scalar_lea.vmem %s1, 258
    %419 = vst.msk [vmem:[%s418] ss:$16 sm:$0xc0] %vm411, %v410
    %s420 = scalar_lea.vmem [#allocation0], 96
    %v421 = vld.sshfl [vmem:[%s420] sm:$0xff pattern:$0x99999810]
    %s422 = scalar_lea.vmem [#allocation0], 112
    %v423 = vld.sshfl [vmem:[%s422] sm:$0xff pattern:$0x98100000]
    %vm424 = vcmask 1047556
    %v425 = vsel %vm424, %v423, %v421
    %426 = vrot.lane.b32.xlu0 %v425, 124
    %v427 = vpop.permute.xlu0 %426
    %vm428 = vcmask 15360
    %s429 = scalar_lea.vmem %s1, 386
    %430 = vst.msk [vmem:[%s429] ss:$16 sm:$0x3] %vm428, %v427
    %s431 = scalar_lea.vmem %s1, 386
    %432 = vst.msk [vmem:[%s431] ss:$16 sm:$0xc] %vm428, %v427
    %s433 = scalar_lea.vmem %s1, 386
    %434 = vst.msk [vmem:[%s433] ss:$16 sm:$0x30] %vm428, %v427
    %s435 = scalar_lea.vmem %s1, 386
    %436 = vst.msk [vmem:[%s435] ss:$16 sm:$0xc0] %vm428, %v427
    %s437 = scalar_lea.vmem [#allocation0], 128
    %v438 = vld.sshfl [vmem:[%s437] sm:$0xff pattern:$0x99999810]
    %s439 = scalar_lea.vmem [#allocation0], 144
    %v440 = vld.sshfl [vmem:[%s439] sm:$0xff pattern:$0x98100000]
    %vm441 = vcmask 1047556
    %v442 = vsel %vm441, %v440, %v438
    %443 = vrot.lane.b32.xlu0 %v442, 124
    %v444 = vpop.permute.xlu0 %443
    %vm445 = vcmask 15360
    %s446 = scalar_lea.vmem %s1, 514
    %447 = vst.msk [vmem:[%s446] ss:$16 sm:$0x3] %vm445, %v444
    %s448 = scalar_lea.vmem %s1, 514
    %449 = vst.msk [vmem:[%s448] ss:$16 sm:$0xc] %vm445, %v444
    %s450 = scalar_lea.vmem %s1, 514
    %451 = vst.msk [vmem:[%s450] ss:$16 sm:$0x30] %vm445, %v444
    %s452 = scalar_lea.vmem %s1, 514
    %453 = vst.msk [vmem:[%s452] ss:$16 sm:$0xc0] %vm445, %v444
    %s454 = scalar_lea.vmem [#allocation0], 160
    %v455 = vld.sshfl [vmem:[%s454] sm:$0xff pattern:$0x99999810]
    %s456 = scalar_lea.vmem [#allocation0], 176
    %v457 = vld.sshfl [vmem:[%s456] sm:$0xff pattern:$0x98100000]
    %vm458 = vcmask 1047556
    %v459 = vsel %vm458, %v457, %v455
    %460 = vrot.lane.b32.xlu0 %v459, 124
    %v461 = vpop.permute.xlu0 %460
    %vm462 = vcmask 15360
    %s463 = scalar_lea.vmem %s1, 642
    %464 = vst.msk [vmem:[%s463] ss:$16 sm:$0x3] %vm462, %v461
    %s465 = scalar_lea.vmem %s1, 642
    %466 = vst.msk [vmem:[%s465] ss:$16 sm:$0xc] %vm462, %v461
    %s467 = scalar_lea.vmem %s1, 642
    %468 = vst.msk [vmem:[%s467] ss:$16 sm:$0x30] %vm462, %v461
    %s469 = scalar_lea.vmem %s1, 642
    %470 = vst.msk [vmem:[%s469] ss:$16 sm:$0xc0] %vm462, %v461
    %s471 = scalar_lea.vmem [#allocation0], 192
    %v472 = vld.sshfl [vmem:[%s471] sm:$0xff pattern:$0x99999810]
    %s473 = scalar_lea.vmem [#allocation0], 208
    %v474 = vld.sshfl [vmem:[%s473] sm:$0xff pattern:$0x98100000]
    %vm475 = vcmask 1047556
    %v476 = vsel %vm475, %v474, %v472
    %477 = vrot.lane.b32.xlu0 %v476, 124
    %v478 = vpop.permute.xlu0 %477
    %vm479 = vcmask 15360
    %s480 = scalar_lea.vmem %s1, 770
    %481 = vst.msk [vmem:[%s480] ss:$16 sm:$0x3] %vm479, %v478
    %s482 = scalar_lea.vmem %s1, 770
    %483 = vst.msk [vmem:[%s482] ss:$16 sm:$0xc] %vm479, %v478
    %s484 = scalar_lea.vmem %s1, 770
    %485 = vst.msk [vmem:[%s484] ss:$16 sm:$0x30] %vm479, %v478
    %s486 = scalar_lea.vmem %s1, 770
    %487 = vst.msk [vmem:[%s486] ss:$16 sm:$0xc0] %vm479, %v478
    %v488 = vld.sshfl [vmem:[#allocation0] sm:$0xff pattern:$0x99999810]
    %s489 = scalar_lea.vmem [#allocation0], 16
    %v490 = vld.sshfl [vmem:[%s489] sm:$0xff pattern:$0x98100000]
    %vm491 = vcmask 1047556
    %v492 = vsel %vm491, %v490, %v488
    %493 = vrot.lane.b32.xlu0 %v492, 122
    %v494 = vpop.permute.xlu0 %493
    %vm495 = vcmask 15360
    %s496 = scalar_lea.vmem %s1, 3
    %497 = vst.msk [vmem:[%s496] ss:$16 sm:$0x3] %vm495, %v494
    %s498 = scalar_lea.vmem %s1, 3
    %499 = vst.msk [vmem:[%s498] ss:$16 sm:$0xc] %vm495, %v494
    %s500 = scalar_lea.vmem %s1, 3
    %501 = vst.msk [vmem:[%s500] ss:$16 sm:$0x30] %vm495, %v494
    %s502 = scalar_lea.vmem %s1, 3
    %503 = vst.msk [vmem:[%s502] ss:$16 sm:$0xc0] %vm495, %v494
    %s504 = scalar_lea.vmem [#allocation0], 32
    %v505 = vld.sshfl [vmem:[%s504] sm:$0xff pattern:$0x99999810]
    %s506 = scalar_lea.vmem [#allocation0], 48
    %v507 = vld.sshfl [vmem:[%s506] sm:$0xff pattern:$0x98100000]
    %vm508 = vcmask 1047556
    %v509 = vsel %vm508, %v507, %v505
    %510 = vrot.lane.b32.xlu0 %v509, 122
    %v511 = vpop.permute.xlu0 %510
    %vm512 = vcmask 15360
    %s513 = scalar_lea.vmem %s1, 131
    %514 = vst.msk [vmem:[%s513] ss:$16 sm:$0x3] %vm512, %v511
    %s515 = scalar_lea.vmem %s1, 131
    %516 = vst.msk [vmem:[%s515] ss:$16 sm:$0xc] %vm512, %v511
    %s517 = scalar_lea.vmem %s1, 131
    %518 = vst.msk [vmem:[%s517] ss:$16 sm:$0x30] %vm512, %v511
    %s519 = scalar_lea.vmem %s1, 131
    %520 = vst.msk [vmem:[%s519] ss:$16 sm:$0xc0] %vm512, %v511
    %s521 = scalar_lea.vmem [#allocation0], 64
    %v522 = vld.sshfl [vmem:[%s521] sm:$0xff pattern:$0x99999810]
    %s523 = scalar_lea.vmem [#allocation0], 80
    %v524 = vld.sshfl [vmem:[%s523] sm:$0xff pattern:$0x98100000]
    %vm525 = vcmask 1047556
    %v526 = vsel %vm525, %v524, %v522
    %527 = vrot.lane.b32.xlu0 %v526, 122
    %v528 = vpop.permute.xlu0 %527
    %vm529 = vcmask 15360
    %s530 = scalar_lea.vmem %s1, 259
    %531 = vst.msk [vmem:[%s530] ss:$16 sm:$0x3] %vm529, %v528
    %s532 = scalar_lea.vmem %s1, 259
    %533 = vst.msk [vmem:[%s532] ss:$16 sm:$0xc] %vm529, %v528
    %s534 = scalar_lea.vmem %s1, 259
    %535 = vst.msk [vmem:[%s534] ss:$16 sm:$0x30] %vm529, %v528
    %s536 = scalar_lea.vmem %s1, 259
    %537 = vst.msk [vmem:[%s536] ss:$16 sm:$0xc0] %vm529, %v528
    %s538 = scalar_lea.vmem [#allocation0], 96
    %v539 = vld.sshfl [vmem:[%s538] sm:$0xff pattern:$0x99999810]
    %s540 = scalar_lea.vmem [#allocation0], 112
    %v541 = vld.sshfl [vmem:[%s540] sm:$0xff pattern:$0x98100000]
    %vm542 = vcmask 1047556
    %v543 = vsel %vm542, %v541, %v539
    %544 = vrot.lane.b32.xlu0 %v543, 122
    %v545 = vpop.permute.xlu0 %544
    %vm546 = vcmask 15360
    %s547 = scalar_lea.vmem %s1, 387
    %548 = vst.msk [vmem:[%s547] ss:$16 sm:$0x3] %vm546, %v545
    %s549 = scalar_lea.vmem %s1, 387
    %550 = vst.msk [vmem:[%s549] ss:$16 sm:$0xc] %vm546, %v545
    %s551 = scalar_lea.vmem %s1, 387
    %552 = vst.msk [vmem:[%s551] ss:$16 sm:$0x30] %vm546, %v545
    %s553 = scalar_lea.vmem %s1, 387
    %554 = vst.msk [vmem:[%s553] ss:$16 sm:$0xc0] %vm546, %v545
    %s555 = scalar_lea.vmem [#allocation0], 128
    %v556 = vld.sshfl [vmem:[%s555] sm:$0xff pattern:$0x99999810]
    %s557 = scalar_lea.vmem [#allocation0], 144
    %v558 = vld.sshfl [vmem:[%s557] sm:$0xff pattern:$0x98100000]
    %vm559 = vcmask 1047556
    %v560 = vsel %vm559, %v558, %v556
    %561 = vrot.lane.b32.xlu0 %v560, 122
    %v562 = vpop.permute.xlu0 %561
    %vm563 = vcmask 15360
    %s564 = scalar_lea.vmem %s1, 515
    %565 = vst.msk [vmem:[%s564] ss:$16 sm:$0x3] %vm563, %v562
    %s566 = scalar_lea.vmem %s1, 515
    %567 = vst.msk [vmem:[%s566] ss:$16 sm:$0xc] %vm563, %v562
    %s568 = scalar_lea.vmem %s1, 515
    %569 = vst.msk [vmem:[%s568] ss:$16 sm:$0x30] %vm563, %v562
    %s570 = scalar_lea.vmem %s1, 515
    %571 = vst.msk [vmem:[%s570] ss:$16 sm:$0xc0] %vm563, %v562
    %s572 = scalar_lea.vmem [#allocation0], 160
    %v573 = vld.sshfl [vmem:[%s572] sm:$0xff pattern:$0x99999810]
    %s574 = scalar_lea.vmem [#allocation0], 176
    %v575 = vld.sshfl [vmem:[%s574] sm:$0xff pattern:$0x98100000]
    %vm576 = vcmask 1047556
    %v577 = vsel %vm576, %v575, %v573
    %578 = vrot.lane.b32.xlu0 %v577, 122
    %v579 = vpop.permute.xlu0 %578
    %vm580 = vcmask 15360
    %s581 = scalar_lea.vmem %s1, 643
    %582 = vst.msk [vmem:[%s581] ss:$16 sm:$0x3] %vm580, %v579
    %s583 = scalar_lea.vmem %s1, 643
    %584 = vst.msk [vmem:[%s583] ss:$16 sm:$0xc] %vm580, %v579
    %s585 = scalar_lea.vmem %s1, 643
    %586 = vst.msk [vmem:[%s585] ss:$16 sm:$0x30] %vm580, %v579
    %s587 = scalar_lea.vmem %s1, 643
    %588 = vst.msk [vmem:[%s587] ss:$16 sm:$0xc0] %vm580, %v579
    %s589 = scalar_lea.vmem [#allocation0], 192
    %v590 = vld.sshfl [vmem:[%s589] sm:$0xff pattern:$0x99999810]
    %s591 = scalar_lea.vmem [#allocation0], 208
    %v592 = vld.sshfl [vmem:[%s591] sm:$0xff pattern:$0x98100000]
    %vm593 = vcmask 1047556
    %v594 = vsel %vm593, %v592, %v590
    %595 = vrot.lane.b32.xlu0 %v594, 122
    %v596 = vpop.permute.xlu0 %595
    %vm597 = vcmask 15360
    %s598 = scalar_lea.vmem %s1, 771
    %599 = vst.msk [vmem:[%s598] ss:$16 sm:$0x3] %vm597, %v596
    %s600 = scalar_lea.vmem %s1, 771
    %601 = vst.msk [vmem:[%s600] ss:$16 sm:$0xc] %vm597, %v596
    %s602 = scalar_lea.vmem %s1, 771
    %603 = vst.msk [vmem:[%s602] ss:$16 sm:$0x30] %vm597, %v596
    %s604 = scalar_lea.vmem %s1, 771
    %605 = vst.msk [vmem:[%s604] ss:$16 sm:$0xc0] %vm597, %v596
    %v606 = vld.sshfl [vmem:[#allocation0] sm:$0xff pattern:$0x99999810]
    %s607 = scalar_lea.vmem [#allocation0], 16
    %v608 = vld.sshfl [vmem:[%s607] sm:$0xff pattern:$0x98100000]
    %vm609 = vcmask 1047556
    %v610 = vsel %vm609, %v608, %v606
    %611 = vrot.lane.b32.xlu0 %v610, 120
    %v612 = vpop.permute.xlu0 %611
    %vm613 = vcmask 15360
    %s614 = scalar_lea.vmem %s1, 4
    %615 = vst.msk [vmem:[%s614] ss:$16 sm:$0x3] %vm613, %v612
    %s616 = scalar_lea.vmem %s1, 4
    %617 = vst.msk [vmem:[%s616] ss:$16 sm:$0xc] %vm613, %v612
    %s618 = scalar_lea.vmem %s1, 4
    %619 = vst.msk [vmem:[%s618] ss:$16 sm:$0x30] %vm613, %v612
    %s620 = scalar_lea.vmem %s1, 4
    %621 = vst.msk [vmem:[%s620] ss:$16 sm:$0xc0] %vm613, %v612
    %s622 = scalar_lea.vmem [#allocation0], 32
    %v623 = vld.sshfl [vmem:[%s622] sm:$0xff pattern:$0x99999810]
    %s624 = scalar_lea.vmem [#allocation0], 48
    %v625 = vld.sshfl [vmem:[%s624] sm:$0xff pattern:$0x98100000]
    %vm626 = vcmask 1047556
    %v627 = vsel %vm626, %v625, %v623
    %628 = vrot.lane.b32.xlu0 %v627, 120
    %v629 = vpop.permute.xlu0 %628
    %vm630 = vcmask 15360
    %s631 = scalar_lea.vmem %s1, 132
    %632 = vst.msk [vmem:[%s631] ss:$16 sm:$0x3] %vm630, %v629
    %s633 = scalar_lea.vmem %s1, 132
    %634 = vst.msk [vmem:[%s633] ss:$16 sm:$0xc] %vm630, %v629
    %s635 = scalar_lea.vmem %s1, 132
    %636 = vst.msk [vmem:[%s635] ss:$16 sm:$0x30] %vm630, %v629
    %s637 = scalar_lea.vmem %s1, 132
    %638 = vst.msk [vmem:[%s637] ss:$16 sm:$0xc0] %vm630, %v629
    %s639 = scalar_lea.vmem [#allocation0], 64
    %v640 = vld.sshfl [vmem:[%s639] sm:$0xff pattern:$0x99999810]
    %s641 = scalar_lea.vmem [#allocation0], 80
    %v642 = vld.sshfl [vmem:[%s641] sm:$0xff pattern:$0x98100000]
    %vm643 = vcmask 1047556
    %v644 = vsel %vm643, %v642, %v640
    %645 = vrot.lane.b32.xlu0 %v644, 120
    %v646 = vpop.permute.xlu0 %645
    %vm647 = vcmask 15360
    %s648 = scalar_lea.vmem %s1, 260
    %649 = vst.msk [vmem:[%s648] ss:$16 sm:$0x3] %vm647, %v646
    %s650 = scalar_lea.vmem %s1, 260
    %651 = vst.msk [vmem:[%s650] ss:$16 sm:$0xc] %vm647, %v646
    %s652 = scalar_lea.vmem %s1, 260
    %653 = vst.msk [vmem:[%s652] ss:$16 sm:$0x30] %vm647, %v646
    %s654 = scalar_lea.vmem %s1, 260
    %655 = vst.msk [vmem:[%s654] ss:$16 sm:$0xc0] %vm647, %v646
    %s656 = scalar_lea.vmem [#allocation0], 96
    %v657 = vld.sshfl [vmem:[%s656] sm:$0xff pattern:$0x99999810]
    %s658 = scalar_lea.vmem [#allocation0], 112
    %v659 = vld.sshfl [vmem:[%s658] sm:$0xff pattern:$0x98100000]
    %vm660 = vcmask 1047556
    %v661 = vsel %vm660, %v659, %v657
    %662 = vrot.lane.b32.xlu0 %v661, 120
    %v663 = vpop.permute.xlu0 %662
    %vm664 = vcmask 15360
    %s665 = scalar_lea.vmem %s1, 388
    %666 = vst.msk [vmem:[%s665] ss:$16 sm:$0x3] %vm664, %v663
    %s667 = scalar_lea.vmem %s1, 388
    %668 = vst.msk [vmem:[%s667] ss:$16 sm:$0xc] %vm664, %v663
    %s669 = scalar_lea.vmem %s1, 388
    %670 = vst.msk [vmem:[%s669] ss:$16 sm:$0x30] %vm664, %v663
    %s671 = scalar_lea.vmem %s1, 388
    %672 = vst.msk [vmem:[%s671] ss:$16 sm:$0xc0] %vm664, %v663
    %s673 = scalar_lea.vmem [#allocation0], 128
    %v674 = vld.sshfl [vmem:[%s673] sm:$0xff pattern:$0x99999810]
    %s675 = scalar_lea.vmem [#allocation0], 144
    %v676 = vld.sshfl [vmem:[%s675] sm:$0xff pattern:$0x98100000]
    %vm677 = vcmask 1047556
    %v678 = vsel %vm677, %v676, %v674
    %679 = vrot.lane.b32.xlu0 %v678, 120
    %v680 = vpop.permute.xlu0 %679
    %vm681 = vcmask 15360
    %s682 = scalar_lea.vmem %s1, 516
    %683 = vst.msk [vmem:[%s682] ss:$16 sm:$0x3] %vm681, %v680
    %s684 = scalar_lea.vmem %s1, 516
    %685 = vst.msk [vmem:[%s684] ss:$16 sm:$0xc] %vm681, %v680
    %s686 = scalar_lea.vmem %s1, 516
    %687 = vst.msk [vmem:[%s686] ss:$16 sm:$0x30] %vm681, %v680
    %s688 = scalar_lea.vmem %s1, 516
    %689 = vst.msk [vmem:[%s688] ss:$16 sm:$0xc0] %vm681, %v680
    %s690 = scalar_lea.vmem [#allocation0], 160
    %v691 = vld.sshfl [vmem:[%s690] sm:$0xff pattern:$0x99999810]
    %s692 = scalar_lea.vmem [#allocation0], 176
    %v693 = vld.sshfl [vmem:[%s692] sm:$0xff pattern:$0x98100000]
    %vm694 = vcmask 1047556
    %v695 = vsel %vm694, %v693, %v691
    %696 = vrot.lane.b32.xlu0 %v695, 120
    %v697 = vpop.permute.xlu0 %696
    %vm698 = vcmask 15360
    %s699 = scalar_lea.vmem %s1, 644
    %700 = vst.msk [vmem:[%s699] ss:$16 sm:$0x3] %vm698, %v697
    %s701 = scalar_lea.vmem %s1, 644
    %702 = vst.msk [vmem:[%s701] ss:$16 sm:$0xc] %vm698, %v697
    %s703 = scalar_lea.vmem %s1, 644
    %704 = vst.msk [vmem:[%s703] ss:$16 sm:$0x30] %vm698, %v697
    %s705 = scalar_lea.vmem %s1, 644
    %706 = vst.msk [vmem:[%s705] ss:$16 sm:$0xc0] %vm698, %v697
    %s707 = scalar_lea.vmem [#allocation0], 192
    %v708 = vld.sshfl [vmem:[%s707] sm:$0xff pattern:$0x99999810]
    %s709 = scalar_lea.vmem [#allocation0], 208
    %v710 = vld.sshfl [vmem:[%s709] sm:$0xff pattern:$0x98100000]
    %vm711 = vcmask 1047556
    %v712 = vsel %vm711, %v710, %v708
    %713 = vrot.lane.b32.xlu0 %v712, 120
    %v714 = vpop.permute.xlu0 %713
    %vm715 = vcmask 15360
    %s716 = scalar_lea.vmem %s1, 772
    %717 = vst.msk [vmem:[%s716] ss:$16 sm:$0x3] %vm715, %v714
    %s718 = scalar_lea.vmem %s1, 772
    %719 = vst.msk [vmem:[%s718] ss:$16 sm:$0xc] %vm715, %v714
    %s720 = scalar_lea.vmem %s1, 772
    %721 = vst.msk [vmem:[%s720] ss:$16 sm:$0x30] %vm715, %v714
    %s722 = scalar_lea.vmem %s1, 772
    %723 = vst.msk [vmem:[%s722] ss:$16 sm:$0xc0] %vm715, %v714
    %v724 = vld.sshfl [vmem:[#allocation0] sm:$0xff pattern:$0x99999810]
    %s725 = scalar_lea.vmem [#allocation0], 16
    %v726 = vld.sshfl [vmem:[%s725] sm:$0xff pattern:$0x98100000]
    %vm727 = vcmask 1047556
    %v728 = vsel %vm727, %v726, %v724
    %729 = vrot.lane.b32.xlu0 %v728, 118
    %v730 = vpop.permute.xlu0 %729
    %vm731 = vcmask 15360
    %s732 = scalar_lea.vmem %s1, 5
    %733 = vst.msk [vmem:[%s732] ss:$16 sm:$0x3] %vm731, %v730
    %s734 = scalar_lea.vmem %s1, 5
    %735 = vst.msk [vmem:[%s734] ss:$16 sm:$0xc] %vm731, %v730
    %s736 = scalar_lea.vmem %s1, 5
    %737 = vst.msk [vmem:[%s736] ss:$16 sm:$0x30] %vm731, %v730
    %s738 = scalar_lea.vmem %s1, 5
    %739 = vst.msk [vmem:[%s738] ss:$16 sm:$0xc0] %vm731, %v730
    %s740 = scalar_lea.vmem [#allocation0], 32
    %v741 = vld.sshfl [vmem:[%s740] sm:$0xff pattern:$0x99999810]
    %s742 = scalar_lea.vmem [#allocation0], 48
    %v743 = vld.sshfl [vmem:[%s742] sm:$0xff pattern:$0x98100000]
    %vm744 = vcmask 1047556
    %v745 = vsel %vm744, %v743, %v741
    %746 = vrot.lane.b32.xlu0 %v745, 118
    %v747 = vpop.permute.xlu0 %746
    %vm748 = vcmask 15360
    %s749 = scalar_lea.vmem %s1, 133
    %750 = vst.msk [vmem:[%s749] ss:$16 sm:$0x3] %vm748, %v747
    %s751 = scalar_lea.vmem %s1, 133
    %752 = vst.msk [vmem:[%s751] ss:$16 sm:$0xc] %vm748, %v747
    %s753 = scalar_lea.vmem %s1, 133
    %754 = vst.msk [vmem:[%s753] ss:$16 sm:$0x30] %vm748, %v747
    %s755 = scalar_lea.vmem %s1, 133
    %756 = vst.msk [vmem:[%s755] ss:$16 sm:$0xc0] %vm748, %v747
    %s757 = scalar_lea.vmem [#allocation0], 64
    %v758 = vld.sshfl [vmem:[%s757] sm:$0xff pattern:$0x99999810]
    %s759 = scalar_lea.vmem [#allocation0], 80
    %v760 = vld.sshfl [vmem:[%s759] sm:$0xff pattern:$0x98100000]
    %vm761 = vcmask 1047556
    %v762 = vsel %vm761, %v760, %v758
    %763 = vrot.lane.b32.xlu0 %v762, 118
    %v764 = vpop.permute.xlu0 %763
    %vm765 = vcmask 15360
    %s766 = scalar_lea.vmem %s1, 261
    %767 = vst.msk [vmem:[%s766] ss:$16 sm:$0x3] %vm765, %v764
    %s768 = scalar_lea.vmem %s1, 261
    %769 = vst.msk [vmem:[%s768] ss:$16 sm:$0xc] %vm765, %v764
    %s770 = scalar_lea.vmem %s1, 261
    %771 = vst.msk [vmem:[%s770] ss:$16 sm:$0x30] %vm765, %v764
    %s772 = scalar_lea.vmem %s1, 261
    %773 = vst.msk [vmem:[%s772] ss:$16 sm:$0xc0] %vm765, %v764
    %s774 = scalar_lea.vmem [#allocation0], 96
    %v775 = vld.sshfl [vmem:[%s774] sm:$0xff pattern:$0x99999810]
    %s776 = scalar_lea.vmem [#allocation0], 112
    %v777 = vld.sshfl [vmem:[%s776] sm:$0xff pattern:$0x98100000]
    %vm778 = vcmask 1047556
    %v779 = vsel %vm778, %v777, %v775
    %780 = vrot.lane.b32.xlu0 %v779, 118
    %v781 = vpop.permute.xlu0 %780
    %vm782 = vcmask 15360
    %s783 = scalar_lea.vmem %s1, 389
    %784 = vst.msk [vmem:[%s783] ss:$16 sm:$0x3] %vm782, %v781
    %s785 = scalar_lea.vmem %s1, 389
    %786 = vst.msk [vmem:[%s785] ss:$16 sm:$0xc] %vm782, %v781
    %s787 = scalar_lea.vmem %s1, 389
    %788 = vst.msk [vmem:[%s787] ss:$16 sm:$0x30] %vm782, %v781
    %s789 = scalar_lea.vmem %s1, 389
    %790 = vst.msk [vmem:[%s789] ss:$16 sm:$0xc0] %vm782, %v781
    %s791 = scalar_lea.vmem [#allocation0], 128
    %v792 = vld.sshfl [vmem:[%s791] sm:$0xff pattern:$0x99999810]
    %s793 = scalar_lea.vmem [#allocation0], 144
    %v794 = vld.sshfl [vmem:[%s793] sm:$0xff pattern:$0x98100000]
    %vm795 = vcmask 1047556
    %v796 = vsel %vm795, %v794, %v792
    %797 = vrot.lane.b32.xlu0 %v796, 118
    %v798 = vpop.permute.xlu0 %797
    %vm799 = vcmask 15360
    %s800 = scalar_lea.vmem %s1, 517
    %801 = vst.msk [vmem:[%s800] ss:$16 sm:$0x3] %vm799, %v798
    %s802 = scalar_lea.vmem %s1, 517
    %803 = vst.msk [vmem:[%s802] ss:$16 sm:$0xc] %vm799, %v798
    %s804 = scalar_lea.vmem %s1, 517
    %805 = vst.msk [vmem:[%s804] ss:$16 sm:$0x30] %vm799, %v798
    %s806 = scalar_lea.vmem %s1, 517
    %807 = vst.msk [vmem:[%s806] ss:$16 sm:$0xc0] %vm799, %v798
    %s808 = scalar_lea.vmem [#allocation0], 160
    %v809 = vld.sshfl [vmem:[%s808] sm:$0xff pattern:$0x99999810]
    %s810 = scalar_lea.vmem [#allocation0], 176
    %v811 = vld.sshfl [vmem:[%s810] sm:$0xff pattern:$0x98100000]
    %vm812 = vcmask 1047556
    %v813 = vsel %vm812, %v811, %v809
    %814 = vrot.lane.b32.xlu0 %v813, 118
    %v815 = vpop.permute.xlu0 %814
    %vm816 = vcmask 15360
    %s817 = scalar_lea.vmem %s1, 645
    %818 = vst.msk [vmem:[%s817] ss:$16 sm:$0x3] %vm816, %v815
    %s819 = scalar_lea.vmem %s1, 645
    %820 = vst.msk [vmem:[%s819] ss:$16 sm:$0xc] %vm816, %v815
    %s821 = scalar_lea.vmem %s1, 645
    %822 = vst.msk [vmem:[%s821] ss:$16 sm:$0x30] %vm816, %v815
    %s823 = scalar_lea.vmem %s1, 645
    %824 = vst.msk [vmem:[%s823] ss:$16 sm:$0xc0] %vm816, %v815
    %s825 = scalar_lea.vmem [#allocation0], 192
    %v826 = vld.sshfl [vmem:[%s825] sm:$0xff pattern:$0x99999810]
    %s827 = scalar_lea.vmem [#allocation0], 208
    %v828 = vld.sshfl [vmem:[%s827] sm:$0xff pattern:$0x98100000]
    %vm829 = vcmask 1047556
    %v830 = vsel %vm829, %v828, %v826
    %831 = vrot.lane.b32.xlu0 %v830, 118
    %v832 = vpop.permute.xlu0 %831
    %vm833 = vcmask 15360
    %s834 = scalar_lea.vmem %s1, 773
    %835 = vst.msk [vmem:[%s834] ss:$16 sm:$0x3] %vm833, %v832
    %s836 = scalar_lea.vmem %s1, 773
    %837 = vst.msk [vmem:[%s836] ss:$16 sm:$0xc] %vm833, %v832
    %s838 = scalar_lea.vmem %s1, 773
    %839 = vst.msk [vmem:[%s838] ss:$16 sm:$0x30] %vm833, %v832
    %s840 = scalar_lea.vmem %s1, 773
    %841 = vst.msk [vmem:[%s840] ss:$16 sm:$0xc0] %vm833, %v832
    %v842 = vld.sshfl [vmem:[#allocation0] sm:$0xff pattern:$0x99999810]
    %s843 = scalar_lea.vmem [#allocation0], 16
    %v844 = vld.sshfl [vmem:[%s843] sm:$0xff pattern:$0x98100000]
    %vm845 = vcmask 1047556
    %v846 = vsel %vm845, %v844, %v842
    %847 = vrot.lane.b32.xlu0 %v846, 116
    %v848 = vpop.permute.xlu0 %847
    %vm849 = vcmask 15360
    %s850 = scalar_lea.vmem %s1, 6
    %851 = vst.msk [vmem:[%s850] ss:$16 sm:$0x3] %vm849, %v848
    %s852 = scalar_lea.vmem %s1, 6
    %853 = vst.msk [vmem:[%s852] ss:$16 sm:$0xc] %vm849, %v848
    %s854 = scalar_lea.vmem %s1, 6
    %855 = vst.msk [vmem:[%s854] ss:$16 sm:$0x30] %vm849, %v848
    %s856 = scalar_lea.vmem %s1, 6
    %857 = vst.msk [vmem:[%s856] ss:$16 sm:$0xc0] %vm849, %v848
    %s858 = scalar_lea.vmem [#allocation0], 32
    %v859 = vld.sshfl [vmem:[%s858] sm:$0xff pattern:$0x99999810]
    %s860 = scalar_lea.vmem [#allocation0], 48
    %v861 = vld.sshfl [vmem:[%s860] sm:$0xff pattern:$0x98100000]
    %vm862 = vcmask 1047556
    %v863 = vsel %vm862, %v861, %v859
    %864 = vrot.lane.b32.xlu0 %v863, 116
    %v865 = vpop.permute.xlu0 %864
    %vm866 = vcmask 15360
    %s867 = scalar_lea.vmem %s1, 134
    %868 = vst.msk [vmem:[%s867] ss:$16 sm:$0x3] %vm866, %v865
    %s869 = scalar_lea.vmem %s1, 134
    %870 = vst.msk [vmem:[%s869] ss:$16 sm:$0xc] %vm866, %v865
    %s871 = scalar_lea.vmem %s1, 134
    %872 = vst.msk [vmem:[%s871] ss:$16 sm:$0x30] %vm866, %v865
    %s873 = scalar_lea.vmem %s1, 134
    %874 = vst.msk [vmem:[%s873] ss:$16 sm:$0xc0] %vm866, %v865
    %s875 = scalar_lea.vmem [#allocation0], 64
    %v876 = vld.sshfl [vmem:[%s875] sm:$0xff pattern:$0x99999810]
    %s877 = scalar_lea.vmem [#allocation0], 80
    %v878 = vld.sshfl [vmem:[%s877] sm:$0xff pattern:$0x98100000]
    %vm879 = vcmask 1047556
    %v880 = vsel %vm879, %v878, %v876
    %881 = vrot.lane.b32.xlu0 %v880, 116
    %v882 = vpop.permute.xlu0 %881
    %vm883 = vcmask 15360
    %s884 = scalar_lea.vmem %s1, 262
    %885 = vst.msk [vmem:[%s884] ss:$16 sm:$0x3] %vm883, %v882
    %s886 = scalar_lea.vmem %s1, 262
    %887 = vst.msk [vmem:[%s886] ss:$16 sm:$0xc] %vm883, %v882
    %s888 = scalar_lea.vmem %s1, 262
    %889 = vst.msk [vmem:[%s888] ss:$16 sm:$0x30] %vm883, %v882
    %s890 = scalar_lea.vmem %s1, 262
    %891 = vst.msk [vmem:[%s890] ss:$16 sm:$0xc0] %vm883, %v882
    %s892 = scalar_lea.vmem [#allocation0], 96
    %v893 = vld.sshfl [vmem:[%s892] sm:$0xff pattern:$0x99999810]
    %s894 = scalar_lea.vmem [#allocation0], 112
    %v895 = vld.sshfl [vmem:[%s894] sm:$0xff pattern:$0x98100000]
    %vm896 = vcmask 1047556
    %v897 = vsel %vm896, %v895, %v893
    %898 = vrot.lane.b32.xlu0 %v897, 116
    %v899 = vpop.permute.xlu0 %898
    %vm900 = vcmask 15360
    %s901 = scalar_lea.vmem %s1, 390
    %902 = vst.msk [vmem:[%s901] ss:$16 sm:$0x3] %vm900, %v899
    %s903 = scalar_lea.vmem %s1, 390
    %904 = vst.msk [vmem:[%s903] ss:$16 sm:$0xc] %vm900, %v899
    %s905 = scalar_lea.vmem %s1, 390
    %906 = vst.msk [vmem:[%s905] ss:$16 sm:$0x30] %vm900, %v899
    %s907 = scalar_lea.vmem %s1, 390
    %908 = vst.msk [vmem:[%s907] ss:$16 sm:$0xc0] %vm900, %v899
    %s909 = scalar_lea.vmem [#allocation0], 128
    %v910 = vld.sshfl [vmem:[%s909] sm:$0xff pattern:$0x99999810]
    %s911 = scalar_lea.vmem [#allocation0], 144
    %v912 = vld.sshfl [vmem:[%s911] sm:$0xff pattern:$0x98100000]
    %vm913 = vcmask 1047556
    %v914 = vsel %vm913, %v912, %v910
    %915 = vrot.lane.b32.xlu0 %v914, 116
    %v916 = vpop.permute.xlu0 %915
    %vm917 = vcmask 15360
    %s918 = scalar_lea.vmem %s1, 518
    %919 = vst.msk [vmem:[%s918] ss:$16 sm:$0x3] %vm917, %v916
    %s920 = scalar_lea.vmem %s1, 518
    %921 = vst.msk [vmem:[%s920] ss:$16 sm:$0xc] %vm917, %v916
    %s922 = scalar_lea.vmem %s1, 518
    %923 = vst.msk [vmem:[%s922] ss:$16 sm:$0x30] %vm917, %v916
    %s924 = scalar_lea.vmem %s1, 518
    %925 = vst.msk [vmem:[%s924] ss:$16 sm:$0xc0] %vm917, %v916
    %s926 = scalar_lea.vmem [#allocation0], 160
    %v927 = vld.sshfl [vmem:[%s926] sm:$0xff pattern:$0x99999810]
    %s928 = scalar_lea.vmem [#allocation0], 176
    %v929 = vld.sshfl [vmem:[%s928] sm:$0xff pattern:$0x98100000]
    %vm930 = vcmask 1047556
    %v931 = vsel %vm930, %v929, %v927
    %932 = vrot.lane.b32.xlu0 %v931, 116
    %v933 = vpop.permute.xlu0 %932
    %vm934 = vcmask 15360
    %s935 = scalar_lea.vmem %s1, 646
    %936 = vst.msk [vmem:[%s935] ss:$16 sm:$0x3] %vm934, %v933
    %s937 = scalar_lea.vmem %s1, 646
    %938 = vst.msk [vmem:[%s937] ss:$16 sm:$0xc] %vm934, %v933
    %s939 = scalar_lea.vmem %s1, 646
    %940 = vst.msk [vmem:[%s939] ss:$16 sm:$0x30] %vm934, %v933
    %s941 = scalar_lea.vmem %s1, 646
    %942 = vst.msk [vmem:[%s941] ss:$16 sm:$0xc0] %vm934, %v933
    %s943 = scalar_lea.vmem [#allocation0], 192
    %v944 = vld.sshfl [vmem:[%s943] sm:$0xff pattern:$0x99999810]
    %s945 = scalar_lea.vmem [#allocation0], 208
    %v946 = vld.sshfl [vmem:[%s945] sm:$0xff pattern:$0x98100000]
    %vm947 = vcmask 1047556
    %v948 = vsel %vm947, %v946, %v944
    %949 = vrot.lane.b32.xlu0 %v948, 116
    %v950 = vpop.permute.xlu0 %949
    %vm951 = vcmask 15360
    %s952 = scalar_lea.vmem %s1, 774
    %953 = vst.msk [vmem:[%s952] ss:$16 sm:$0x3] %vm951, %v950
    %s954 = scalar_lea.vmem %s1, 774
    %955 = vst.msk [vmem:[%s954] ss:$16 sm:$0xc] %vm951, %v950
    %s956 = scalar_lea.vmem %s1, 774
    %957 = vst.msk [vmem:[%s956] ss:$16 sm:$0x30] %vm951, %v950
    %s958 = scalar_lea.vmem %s1, 774
    %959 = vst.msk [vmem:[%s958] ss:$16 sm:$0xc0] %vm951, %v950
    %v960 = vld.sshfl [vmem:[#allocation0] sm:$0xff pattern:$0x99999810]
    %s961 = scalar_lea.vmem [#allocation0], 16
    %v962 = vld.sshfl [vmem:[%s961] sm:$0xff pattern:$0x98100000]
    %vm963 = vcmask 1047556
    %v964 = vsel %vm963, %v962, %v960
    %965 = vrot.lane.b32.xlu0 %v964, 114
    %v966 = vpop.permute.xlu0 %965
    %vm967 = vcmask 15360
    %s968 = scalar_lea.vmem %s1, 7
    %969 = vst.msk [vmem:[%s968] ss:$16 sm:$0x3] %vm967, %v966
    %s970 = scalar_lea.vmem %s1, 7
    %971 = vst.msk [vmem:[%s970] ss:$16 sm:$0xc] %vm967, %v966
    %s972 = scalar_lea.vmem %s1, 7
    %973 = vst.msk [vmem:[%s972] ss:$16 sm:$0x30] %vm967, %v966
    %s974 = scalar_lea.vmem %s1, 7
    %975 = vst.msk [vmem:[%s974] ss:$16 sm:$0xc0] %vm967, %v966
    %s976 = scalar_lea.vmem [#allocation0], 32
    %v977 = vld.sshfl [vmem:[%s976] sm:$0xff pattern:$0x99999810]
    %s978 = scalar_lea.vmem [#allocation0], 48
    %v979 = vld.sshfl [vmem:[%s978] sm:$0xff pattern:$0x98100000]
    %vm980 = vcmask 1047556
    %v981 = vsel %vm980, %v979, %v977
    %982 = vrot.lane.b32.xlu0 %v981, 114
    %v983 = vpop.permute.xlu0 %982
    %vm984 = vcmask 15360
    %s985 = scalar_lea.vmem %s1, 135
    %986 = vst.msk [vmem:[%s985] ss:$16 sm:$0x3] %vm984, %v983
    %s987 = scalar_lea.vmem %s1, 135
    %988 = vst.msk [vmem:[%s987] ss:$16 sm:$0xc] %vm984, %v983
    %s989 = scalar_lea.vmem %s1, 135
    %990 = vst.msk [vmem:[%s989] ss:$16 sm:$0x30] %vm984, %v983
    %s991 = scalar_lea.vmem %s1, 135
    %992 = vst.msk [vmem:[%s991] ss:$16 sm:$0xc0] %vm984, %v983
    %s993 = scalar_lea.vmem [#allocation0], 64
    %v994 = vld.sshfl [vmem:[%s993] sm:$0xff pattern:$0x99999810]
    %s995 = scalar_lea.vmem [#allocation0], 80
    %v996 = vld.sshfl [vmem:[%s995] sm:$0xff pattern:$0x98100000]
    %vm997 = vcmask 1047556
    %v998 = vsel %vm997, %v996, %v994
    %999 = vrot.lane.b32.xlu0 %v998, 114
    %v1000 = vpop.permute.xlu0 %999
    %vm1001 = vcmask 15360
    %s1002 = scalar_lea.vmem %s1, 263
    %1003 = vst.msk [vmem:[%s1002] ss:$16 sm:$0x3] %vm1001, %v1000
    %s1004 = scalar_lea.vmem %s1, 263
    %1005 = vst.msk [vmem:[%s1004] ss:$16 sm:$0xc] %vm1001, %v1000
    %s1006 = scalar_lea.vmem %s1, 263
    %1007 = vst.msk [vmem:[%s1006] ss:$16 sm:$0x30] %vm1001, %v1000
    %s1008 = scalar_lea.vmem %s1, 263
    %1009 = vst.msk [vmem:[%s1008] ss:$16 sm:$0xc0] %vm1001, %v1000
    %s1010 = scalar_lea.vmem [#allocation0], 96
    %v1011 = vld.sshfl [vmem:[%s1010] sm:$0xff pattern:$0x99999810]
    %s1012 = scalar_lea.vmem [#allocation0], 112
    %v1013 = vld.sshfl [vmem:[%s1012] sm:$0xff pattern:$0x98100000]
    %vm1014 = vcmask 1047556
    %v1015 = vsel %vm1014, %v1013, %v1011
    %1016 = vrot.lane.b32.xlu0 %v1015, 114
    %v1017 = vpop.permute.xlu0 %1016
    %vm1018 = vcmask 15360
    %s1019 = scalar_lea.vmem %s1, 391
    %1020 = vst.msk [vmem:[%s1019] ss:$16 sm:$0x3] %vm1018, %v1017
    %s1021 = scalar_lea.vmem %s1, 391
    %1022 = vst.msk [vmem:[%s1021] ss:$16 sm:$0xc] %vm1018, %v1017
    %s1023 = scalar_lea.vmem %s1, 391
    %1024 = vst.msk [vmem:[%s1023] ss:$16 sm:$0x30] %vm1018, %v1017
    %s1025 = scalar_lea.vmem %s1, 391
    %1026 = vst.msk [vmem:[%s1025] ss:$16 sm:$0xc0] %vm1018, %v1017
    %s1027 = scalar_lea.vmem [#allocation0], 128
    %v1028 = vld.sshfl [vmem:[%s1027] sm:$0xff pattern:$0x99999810]
    %s1029 = scalar_lea.vmem [#allocation0], 144
    %v1030 = vld.sshfl [vmem:[%s1029] sm:$0xff pattern:$0x98100000]
    %vm1031 = vcmask 1047556
    %v1032 = vsel %vm1031, %v1030, %v1028
    %1033 = vrot.lane.b32.xlu0 %v1032, 114
    %v1034 = vpop.permute.xlu0 %1033
    %vm1035 = vcmask 15360
    %s1036 = scalar_lea.vmem %s1, 519
    %1037 = vst.msk [vmem:[%s1036] ss:$16 sm:$0x3] %vm1035, %v1034
    %s1038 = scalar_lea.vmem %s1, 519
    %1039 = vst.msk [vmem:[%s1038] ss:$16 sm:$0xc] %vm1035, %v1034
    %s1040 = scalar_lea.vmem %s1, 519
    %1041 = vst.msk [vmem:[%s1040] ss:$16 sm:$0x30] %vm1035, %v1034
    %s1042 = scalar_lea.vmem %s1, 519
    %1043 = vst.msk [vmem:[%s1042] ss:$16 sm:$0xc0] %vm1035, %v1034
    %s1044 = scalar_lea.vmem [#allocation0], 160
    %v1045 = vld.sshfl [vmem:[%s1044] sm:$0xff pattern:$0x99999810]
    %s1046 = scalar_lea.vmem [#allocation0], 176
    %v1047 = vld.sshfl [vmem:[%s1046] sm:$0xff pattern:$0x98100000]
    %vm1048 = vcmask 1047556
    %v1049 = vsel %vm1048, %v1047, %v1045
    %1050 = vrot.lane.b32.xlu0 %v1049, 114
    %v1051 = vpop.permute.xlu0 %1050
    %vm1052 = vcmask 15360
    %s1053 = scalar_lea.vmem %s1, 647
    %1054 = vst.msk [vmem:[%s1053] ss:$16 sm:$0x3] %vm1052, %v1051
    %s1055 = scalar_lea.vmem %s1, 647
    %1056 = vst.msk [vmem:[%s1055] ss:$16 sm:$0xc] %vm1052, %v1051
    %s1057 = scalar_lea.vmem %s1, 647
    %1058 = vst.msk [vmem:[%s1057] ss:$16 sm:$0x30] %vm1052, %v1051
    %s1059 = scalar_lea.vmem %s1, 647
    %1060 = vst.msk [vmem:[%s1059] ss:$16 sm:$0xc0] %vm1052, %v1051
    %s1061 = scalar_lea.vmem [#allocation0], 192
    %v1062 = vld.sshfl [vmem:[%s1061] sm:$0xff pattern:$0x99999810]
    %s1063 = scalar_lea.vmem [#allocation0], 208
    %v1064 = vld.sshfl [vmem:[%s1063] sm:$0xff pattern:$0x98100000]
    %vm1065 = vcmask 1047556
    %v1066 = vsel %vm1065, %v1064, %v1062
    %1067 = vrot.lane.b32.xlu0 %v1066, 114
    %v1068 = vpop.permute.xlu0 %1067
    %vm1069 = vcmask 15360
    %s1070 = scalar_lea.vmem %s1, 775
    %1071 = vst.msk [vmem:[%s1070] ss:$16 sm:$0x3] %vm1069, %v1068
    %s1072 = scalar_lea.vmem %s1, 775
    %1073 = vst.msk [vmem:[%s1072] ss:$16 sm:$0xc] %vm1069, %v1068
    %s1074 = scalar_lea.vmem %s1, 775
    %1075 = vst.msk [vmem:[%s1074] ss:$16 sm:$0x30] %vm1069, %v1068
    %s1076 = scalar_lea.vmem %s1, 775
    %1077 = vst.msk [vmem:[%s1076] ss:$16 sm:$0xc0] %vm1069, %v1068
    %v1078 = vld.sshfl [vmem:[#allocation0] sm:$0xff pattern:$0x99999810]
    %s1079 = scalar_lea.vmem [#allocation0], 16
    %v1080 = vld.sshfl [vmem:[%s1079] sm:$0xff pattern:$0x98100000]
    %vm1081 = vcmask 1047556
    %v1082 = vsel %vm1081, %v1080, %v1078
    %1083 = vrot.lane.b32.xlu0 %v1082, 112
    %v1084 = vpop.permute.xlu0 %1083
    %vm1085 = vcmask 15360
    %s1086 = scalar_lea.vmem %s1, 8
    %1087 = vst.msk [vmem:[%s1086] ss:$16 sm:$0x3] %vm1085, %v1084
    %s1088 = scalar_lea.vmem %s1, 8
    %1089 = vst.msk [vmem:[%s1088] ss:$16 sm:$0xc] %vm1085, %v1084
    %s1090 = scalar_lea.vmem %s1, 8
    %1091 = vst.msk [vmem:[%s1090] ss:$16 sm:$0x30] %vm1085, %v1084
    %s1092 = scalar_lea.vmem %s1, 8
    %1093 = vst.msk [vmem:[%s1092] ss:$16 sm:$0xc0] %vm1085, %v1084
    %s1094 = scalar_lea.vmem [#allocation0], 32
    %v1095 = vld.sshfl [vmem:[%s1094] sm:$0xff pattern:$0x99999810]
    %s1096 = scalar_lea.vmem [#allocation0], 48
    %v1097 = vld.sshfl [vmem:[%s1096] sm:$0xff pattern:$0x98100000]
    %vm1098 = vcmask 1047556
    %v1099 = vsel %vm1098, %v1097, %v1095
    %1100 = vrot.lane.b32.xlu0 %v1099, 112
    %v1101 = vpop.permute.xlu0 %1100
    %vm1102 = vcmask 15360
    %s1103 = scalar_lea.vmem %s1, 136
    %1104 = vst.msk [vmem:[%s1103] ss:$16 sm:$0x3] %vm1102, %v1101
    %s1105 = scalar_lea.vmem %s1, 136
    %1106 = vst.msk [vmem:[%s1105] ss:$16 sm:$0xc] %vm1102, %v1101
    %s1107 = scalar_lea.vmem %s1, 136
    %1108 = vst.msk [vmem:[%s1107] ss:$16 sm:$0x30] %vm1102, %v1101
    %s1109 = scalar_lea.vmem %s1, 136
    %1110 = vst.msk [vmem:[%s1109] ss:$16 sm:$0xc0] %vm1102, %v1101
    %s1111 = scalar_lea.vmem [#allocation0], 64
    %v1112 = vld.sshfl [vmem:[%s1111] sm:$0xff pattern:$0x99999810]
    %s1113 = scalar_lea.vmem [#allocation0], 80
    %v1114 = vld.sshfl [vmem:[%s1113] sm:$0xff pattern:$0x98100000]
    %vm1115 = vcmask 1047556
    %v1116 = vsel %vm1115, %v1114, %v1112
    %1117 = vrot.lane.b32.xlu0 %v1116, 112
    %v1118 = vpop.permute.xlu0 %1117
    %vm1119 = vcmask 15360
    %s1120 = scalar_lea.vmem %s1, 264
    %1121 = vst.msk [vmem:[%s1120] ss:$16 sm:$0x3] %vm1119, %v1118
    %s1122 = scalar_lea.vmem %s1, 264
    %1123 = vst.msk [vmem:[%s1122] ss:$16 sm:$0xc] %vm1119, %v1118
    %s1124 = scalar_lea.vmem %s1, 264
    %1125 = vst.msk [vmem:[%s1124] ss:$16 sm:$0x30] %vm1119, %v1118
    %s1126 = scalar_lea.vmem %s1, 264
    %1127 = vst.msk [vmem:[%s1126] ss:$16 sm:$0xc0] %vm1119, %v1118
    %s1128 = scalar_lea.vmem [#allocation0], 96
    %v1129 = vld.sshfl [vmem:[%s1128] sm:$0xff pattern:$0x99999810]
    %s1130 = scalar_lea.vmem [#allocation0], 112
    %v1131 = vld.sshfl [vmem:[%s1130] sm:$0xff pattern:$0x98100000]
    %vm1132 = vcmask 1047556
    %v1133 = vsel %vm1132, %v1131, %v1129
    %1134 = vrot.lane.b32.xlu0 %v1133, 112
    %v1135 = vpop.permute.xlu0 %1134
    %vm1136 = vcmask 15360
    %s1137 = scalar_lea.vmem %s1, 392
    %1138 = vst.msk [vmem:[%s1137] ss:$16 sm:$0x3] %vm1136, %v1135
    %s1139 = scalar_lea.vmem %s1, 392
    %1140 = vst.msk [vmem:[%s1139] ss:$16 sm:$0xc] %vm1136, %v1135
    %s1141 = scalar_lea.vmem %s1, 392
    %1142 = vst.msk [vmem:[%s1141] ss:$16 sm:$0x30] %vm1136, %v1135
    %s1143 = scalar_lea.vmem %s1, 392
    %1144 = vst.msk [vmem:[%s1143] ss:$16 sm:$0xc0] %vm1136, %v1135
    %s1145 = scalar_lea.vmem [#allocation0], 128
    %v1146 = vld.sshfl [vmem:[%s1145] sm:$0xff pattern:$0x99999810]
    %s1147 = scalar_lea.vmem [#allocation0], 144
    %v1148 = vld.sshfl [vmem:[%s1147] sm:$0xff pattern:$0x98100000]
    %vm1149 = vcmask 1047556
    %v1150 = vsel %vm1149, %v1148, %v1146
    %1151 = vrot.lane.b32.xlu0 %v1150, 112
    %v1152 = vpop.permute.xlu0 %1151
    %vm1153 = vcmask 15360
    %s1154 = scalar_lea.vmem %s1, 520
    %1155 = vst.msk [vmem:[%s1154] ss:$16 sm:$0x3] %vm1153, %v1152
    %s1156 = scalar_lea.vmem %s1, 520
    %1157 = vst.msk [vmem:[%s1156] ss:$16 sm:$0xc] %vm1153, %v1152
    %s1158 = scalar_lea.vmem %s1, 520
    %1159 = vst.msk [vmem:[%s1158] ss:$16 sm:$0x30] %vm1153, %v1152
    %s1160 = scalar_lea.vmem %s1, 520
    %1161 = vst.msk [vmem:[%s1160] ss:$16 sm:$0xc0] %vm1153, %v1152
    %s1162 = scalar_lea.vmem [#allocation0], 160
    %v1163 = vld.sshfl [vmem:[%s1162] sm:$0xff pattern:$0x99999810]
    %s1164 = scalar_lea.vmem [#allocation0], 176
    %v1165 = vld.sshfl [vmem:[%s1164] sm:$0xff pattern:$0x98100000]
    %vm1166 = vcmask 1047556
    %v1167 = vsel %vm1166, %v1165, %v1163
    %1168 = vrot.lane.b32.xlu0 %v1167, 112
    %v1169 = vpop.permute.xlu0 %1168
    %vm1170 = vcmask 15360
    %s1171 = scalar_lea.vmem %s1, 648
    %1172 = vst.msk [vmem:[%s1171] ss:$16 sm:$0x3] %vm1170, %v1169
    %s1173 = scalar_lea.vmem %s1, 648
    %1174 = vst.msk [vmem:[%s1173] ss:$16 sm:$0xc] %vm1170, %v1169
    %s1175 = scalar_lea.vmem %s1, 648
    %1176 = vst.msk [vmem:[%s1175] ss:$16 sm:$0x30] %vm1170, %v1169
    %s1177 = scalar_lea.vmem %s1, 648
    %1178 = vst.msk [vmem:[%s1177] ss:$16 sm:$0xc0] %vm1170, %v1169
    %s1179 = scalar_lea.vmem [#allocation0], 192
    %v1180 = vld.sshfl [vmem:[%s1179] sm:$0xff pattern:$0x99999810]
    %s1181 = scalar_lea.vmem [#allocation0], 208
    %v1182 = vld.sshfl [vmem:[%s1181] sm:$0xff pattern:$0x98100000]
    %vm1183 = vcmask 1047556
    %v1184 = vsel %vm1183, %v1182, %v1180
    %1185 = vrot.lane.b32.xlu0 %v1184, 112
    %v1186 = vpop.permute.xlu0 %1185
    %vm1187 = vcmask 15360
    %s1188 = scalar_lea.vmem %s1, 776
    %1189 = vst.msk [vmem:[%s1188] ss:$16 sm:$0x3] %vm1187, %v1186
    %s1190 = scalar_lea.vmem %s1, 776
    %1191 = vst.msk [vmem:[%s1190] ss:$16 sm:$0xc] %vm1187, %v1186
    %s1192 = scalar_lea.vmem %s1, 776
    %1193 = vst.msk [vmem:[%s1192] ss:$16 sm:$0x30] %vm1187, %v1186
    %s1194 = scalar_lea.vmem %s1, 776
    %1195 = vst.msk [vmem:[%s1194] ss:$16 sm:$0xc0] %vm1187, %v1186
    %v1196 = vld.sshfl [vmem:[#allocation0] sm:$0xff pattern:$0x99999810]
    %s1197 = scalar_lea.vmem [#allocation0], 16
    %v1198 = vld.sshfl [vmem:[%s1197] sm:$0xff pattern:$0x98100000]
    %vm1199 = vcmask 1047556
    %v1200 = vsel %vm1199, %v1198, %v1196
    %1201 = vrot.lane.b32.xlu0 %v1200, 110
    %v1202 = vpop.permute.xlu0 %1201
    %vm1203 = vcmask 15360
    %s1204 = scalar_lea.vmem %s1, 9
    %1205 = vst.msk [vmem:[%s1204] ss:$16 sm:$0x3] %vm1203, %v1202
    %s1206 = scalar_lea.vmem %s1, 9
    %1207 = vst.msk [vmem:[%s1206] ss:$16 sm:$0xc] %vm1203, %v1202
    %s1208 = scalar_lea.vmem %s1, 9
    %1209 = vst.msk [vmem:[%s1208] ss:$16 sm:$0x30] %vm1203, %v1202
    %s1210 = scalar_lea.vmem %s1, 9
    %1211 = vst.msk [vmem:[%s1210] ss:$16 sm:$0xc0] %vm1203, %v1202
    %s1212 = scalar_lea.vmem [#allocation0], 32
    %v1213 = vld.sshfl [vmem:[%s1212] sm:$0xff pattern:$0x99999810]
    %s1214 = scalar_lea.vmem [#allocation0], 48
    %v1215 = vld.sshfl [vmem:[%s1214] sm:$0xff pattern:$0x98100000]
    %vm1216 = vcmask 1047556
    %v1217 = vsel %vm1216, %v1215, %v1213
    %1218 = vrot.lane.b32.xlu0 %v1217, 110
    %v1219 = vpop.permute.xlu0 %1218
    %vm1220 = vcmask 15360
    %s1221 = scalar_lea.vmem %s1, 137
    %1222 = vst.msk [vmem:[%s1221] ss:$16 sm:$0x3] %vm1220, %v1219
    %s1223 = scalar_lea.vmem %s1, 137
    %1224 = vst.msk [vmem:[%s1223] ss:$16 sm:$0xc] %vm1220, %v1219
    %s1225 = scalar_lea.vmem %s1, 137
    %1226 = vst.msk [vmem:[%s1225] ss:$16 sm:$0x30] %vm1220, %v1219
    %s1227 = scalar_lea.vmem %s1, 137
    %1228 = vst.msk [vmem:[%s1227] ss:$16 sm:$0xc0] %vm1220, %v1219
    %s1229 = scalar_lea.vmem [#allocation0], 64
    %v1230 = vld.sshfl [vmem:[%s1229] sm:$0xff pattern:$0x99999810]
    %s1231 = scalar_lea.vmem [#allocation0], 80
    %v1232 = vld.sshfl [vmem:[%s1231] sm:$0xff pattern:$0x98100000]
    %vm1233 = vcmask 1047556
    %v1234 = vsel %vm1233, %v1232, %v1230
    %1235 = vrot.lane.b32.xlu0 %v1234, 110
    %v1236 = vpop.permute.xlu0 %1235
    %vm1237 = vcmask 15360
    %s1238 = scalar_lea.vmem %s1, 265
    %1239 = vst.msk [vmem:[%s1238] ss:$16 sm:$0x3] %vm1237, %v1236
    %s1240 = scalar_lea.vmem %s1, 265
    %1241 = vst.msk [vmem:[%s1240] ss:$16 sm:$0xc] %vm1237, %v1236
    %s1242 = scalar_lea.vmem %s1, 265
    %1243 = vst.msk [vmem:[%s1242] ss:$16 sm:$0x30] %vm1237, %v1236
    %s1244 = scalar_lea.vmem %s1, 265
    %1245 = vst.msk [vmem:[%s1244] ss:$16 sm:$0xc0] %vm1237, %v1236
    %s1246 = scalar_lea.vmem [#allocation0], 96
    %v1247 = vld.sshfl [vmem:[%s1246] sm:$0xff pattern:$0x99999810]
    %s1248 = scalar_lea.vmem [#allocation0], 112
    %v1249 = vld.sshfl [vmem:[%s1248] sm:$0xff pattern:$0x98100000]
    %vm1250 = vcmask 1047556
    %v1251 = vsel %vm1250, %v1249, %v1247
    %1252 = vrot.lane.b32.xlu0 %v1251, 110
    %v1253 = vpop.permute.xlu0 %1252
    %vm1254 = vcmask 15360
    %s1255 = scalar_lea.vmem %s1, 393
    %1256 = vst.msk [vmem:[%s1255] ss:$16 sm:$0x3] %vm1254, %v1253
    %s1257 = scalar_lea.vmem %s1, 393
    %1258 = vst.msk [vmem:[%s1257] ss:$16 sm:$0xc] %vm1254, %v1253
    %s1259 = scalar_lea.vmem %s1, 393
    %1260 = vst.msk [vmem:[%s1259] ss:$16 sm:$0x30] %vm1254, %v1253
    %s1261 = scalar_lea.vmem %s1, 393
    %1262 = vst.msk [vmem:[%s1261] ss:$16 sm:$0xc0] %vm1254, %v1253
    %s1263 = scalar_lea.vmem [#allocation0], 128
    %v1264 = vld.sshfl [vmem:[%s1263] sm:$0xff pattern:$0x99999810]
    %s1265 = scalar_lea.vmem [#allocation0], 144
    %v1266 = vld.sshfl [vmem:[%s1265] sm:$0xff pattern:$0x98100000]
    %vm1267 = vcmask 1047556
    %v1268 = vsel %vm1267, %v1266, %v1264
    %1269 = vrot.lane.b32.xlu0 %v1268, 110
    %v1270 = vpop.permute.xlu0 %1269
    %vm1271 = vcmask 15360
    %s1272 = scalar_lea.vmem %s1, 521
    %1273 = vst.msk [vmem:[%s1272] ss:$16 sm:$0x3] %vm1271, %v1270
    %s1274 = scalar_lea.vmem %s1, 521
    %1275 = vst.msk [vmem:[%s1274] ss:$16 sm:$0xc] %vm1271, %v1270
    %s1276 = scalar_lea.vmem %s1, 521
    %1277 = vst.msk [vmem:[%s1276] ss:$16 sm:$0x30] %vm1271, %v1270
    %s1278 = scalar_lea.vmem %s1, 521
    %1279 = vst.msk [vmem:[%s1278] ss:$16 sm:$0xc0] %vm1271, %v1270
    %s1280 = scalar_lea.vmem [#allocation0], 160
    %v1281 = vld.sshfl [vmem:[%s1280] sm:$0xff pattern:$0x99999810]
    %s1282 = scalar_lea.vmem [#allocation0], 176
    %v1283 = vld.sshfl [vmem:[%s1282] sm:$0xff pattern:$0x98100000]
    %vm1284 = vcmask 1047556
    %v1285 = vsel %vm1284, %v1283, %v1281
    %1286 = vrot.lane.b32.xlu0 %v1285, 110
    %v1287 = vpop.permute.xlu0 %1286
    %vm1288 = vcmask 15360
    %s1289 = scalar_lea.vmem %s1, 649
    %1290 = vst.msk [vmem:[%s1289] ss:$16 sm:$0x3] %vm1288, %v1287
    %s1291 = scalar_lea.vmem %s1, 649
    %1292 = vst.msk [vmem:[%s1291] ss:$16 sm:$0xc] %vm1288, %v1287
    %s1293 = scalar_lea.vmem %s1, 649
    %1294 = vst.msk [vmem:[%s1293] ss:$16 sm:$0x30] %vm1288, %v1287
    %s1295 = scalar_lea.vmem %s1, 649
    %1296 = vst.msk [vmem:[%s1295] ss:$16 sm:$0xc0] %vm1288, %v1287
    %s1297 = scalar_lea.vmem [#allocation0], 192
    %v1298 = vld.sshfl [vmem:[%s1297] sm:$0xff pattern:$0x99999810]
    %s1299 = scalar_lea.vmem [#allocation0], 208
    %v1300 = vld.sshfl [vmem:[%s1299] sm:$0xff pattern:$0x98100000]
    %vm1301 = vcmask 1047556
    %v1302 = vsel %vm1301, %v1300, %v1298
    %1303 = vrot.lane.b32.xlu0 %v1302, 110
    %v1304 = vpop.permute.xlu0 %1303
    %vm1305 = vcmask 15360
    %s1306 = scalar_lea.vmem %s1, 777
    %1307 = vst.msk [vmem:[%s1306] ss:$16 sm:$0x3] %vm1305, %v1304
    %s1308 = scalar_lea.vmem %s1, 777
    %1309 = vst.msk [vmem:[%s1308] ss:$16 sm:$0xc] %vm1305, %v1304
    %s1310 = scalar_lea.vmem %s1, 777
    %1311 = vst.msk [vmem:[%s1310] ss:$16 sm:$0x30] %vm1305, %v1304
    %s1312 = scalar_lea.vmem %s1, 777
    %1313 = vst.msk [vmem:[%s1312] ss:$16 sm:$0xc0] %vm1305, %v1304
    %v1314 = vld.sshfl [vmem:[#allocation0] sm:$0xff pattern:$0x99999810]
    %s1315 = scalar_lea.vmem [#allocation0], 16
    %v1316 = vld.sshfl [vmem:[%s1315] sm:$0xff pattern:$0x98100000]
    %vm1317 = vcmask 1047556
    %v1318 = vsel %vm1317, %v1316, %v1314
    %1319 = vrot.lane.b32.xlu0 %v1318, 108
    %v1320 = vpop.permute.xlu0 %1319
    %vm1321 = vcmask 15360
    %s1322 = scalar_lea.vmem %s1, 10
    %1323 = vst.msk [vmem:[%s1322] ss:$16 sm:$0x3] %vm1321, %v1320
    %s1324 = scalar_lea.vmem %s1, 10
    %1325 = vst.msk [vmem:[%s1324] ss:$16 sm:$0xc] %vm1321, %v1320
    %s1326 = scalar_lea.vmem %s1, 10
    %1327 = vst.msk [vmem:[%s1326] ss:$16 sm:$0x30] %vm1321, %v1320
    %s1328 = scalar_lea.vmem %s1, 10
    %1329 = vst.msk [vmem:[%s1328] ss:$16 sm:$0xc0] %vm1321, %v1320
    %s1330 = scalar_lea.vmem [#allocation0], 32
    %v1331 = vld.sshfl [vmem:[%s1330] sm:$0xff pattern:$0x99999810]
    %s1332 = scalar_lea.vmem [#allocation0], 48
    %v1333 = vld.sshfl [vmem:[%s1332] sm:$0xff pattern:$0x98100000]
    %vm1334 = vcmask 1047556
    %v1335 = vsel %vm1334, %v1333, %v1331
    %1336 = vrot.lane.b32.xlu0 %v1335, 108
    %v1337 = vpop.permute.xlu0 %1336
    %vm1338 = vcmask 15360
    %s1339 = scalar_lea.vmem %s1, 138
    %1340 = vst.msk [vmem:[%s1339] ss:$16 sm:$0x3] %vm1338, %v1337
    %s1341 = scalar_lea.vmem %s1, 138
    %1342 = vst.msk [vmem:[%s1341] ss:$16 sm:$0xc] %vm1338, %v1337
    %s1343 = scalar_lea.vmem %s1, 138
    %1344 = vst.msk [vmem:[%s1343] ss:$16 sm:$0x30] %vm1338, %v1337
    %s1345 = scalar_lea.vmem %s1, 138
    %1346 = vst.msk [vmem:[%s1345] ss:$16 sm:$0xc0] %vm1338, %v1337
    %s1347 = scalar_lea.vmem [#allocation0], 64
    %v1348 = vld.sshfl [vmem:[%s1347] sm:$0xff pattern:$0x99999810]
    %s1349 = scalar_lea.vmem [#allocation0], 80
    %v1350 = vld.sshfl [vmem:[%s1349] sm:$0xff pattern:$0x98100000]
    %vm1351 = vcmask 1047556
    %v1352 = vsel %vm1351, %v1350, %v1348
    %1353 = vrot.lane.b32.xlu0 %v1352, 108
    %v1354 = vpop.permute.xlu0 %1353
    %vm1355 = vcmask 15360
    %s1356 = scalar_lea.vmem %s1, 266
    %1357 = vst.msk [vmem:[%s1356] ss:$16 sm:$0x3] %vm1355, %v1354
    %s1358 = scalar_lea.vmem %s1, 266
    %1359 = vst.msk [vmem:[%s1358] ss:$16 sm:$0xc] %vm1355, %v1354
    %s1360 = scalar_lea.vmem %s1, 266
    %1361 = vst.msk [vmem:[%s1360] ss:$16 sm:$0x30] %vm1355, %v1354
    %s1362 = scalar_lea.vmem %s1, 266
    %1363 = vst.msk [vmem:[%s1362] ss:$16 sm:$0xc0] %vm1355, %v1354
    %s1364 = scalar_lea.vmem [#allocation0], 96
    %v1365 = vld.sshfl [vmem:[%s1364] sm:$0xff pattern:$0x99999810]
    %s1366 = scalar_lea.vmem [#allocation0], 112
    %v1367 = vld.sshfl [vmem:[%s1366] sm:$0xff pattern:$0x98100000]
    %vm1368 = vcmask 1047556
    %v1369 = vsel %vm1368, %v1367, %v1365
    %1370 = vrot.lane.b32.xlu0 %v1369, 108
    %v1371 = vpop.permute.xlu0 %1370
    %vm1372 = vcmask 15360
    %s1373 = scalar_lea.vmem %s1, 394
    %1374 = vst.msk [vmem:[%s1373] ss:$16 sm:$0x3] %vm1372, %v1371
    %s1375 = scalar_lea.vmem %s1, 394
    %1376 = vst.msk [vmem:[%s1375] ss:$16 sm:$0xc] %vm1372, %v1371
    %s1377 = scalar_lea.vmem %s1, 394
    %1378 = vst.msk [vmem:[%s1377] ss:$16 sm:$0x30] %vm1372, %v1371
    %s1379 = scalar_lea.vmem %s1, 394
    %1380 = vst.msk [vmem:[%s1379] ss:$16 sm:$0xc0] %vm1372, %v1371
    %s1381 = scalar_lea.vmem [#allocation0], 128
    %v1382 = vld.sshfl [vmem:[%s1381] sm:$0xff pattern:$0x99999810]
    %s1383 = scalar_lea.vmem [#allocation0], 144
    %v1384 = vld.sshfl [vmem:[%s1383] sm:$0xff pattern:$0x98100000]
    %vm1385 = vcmask 1047556
    %v1386 = vsel %vm1385, %v1384, %v1382
    %1387 = vrot.lane.b32.xlu0 %v1386, 108
    %v1388 = vpop.permute.xlu0 %1387
    %vm1389 = vcmask 15360
    %s1390 = scalar_lea.vmem %s1, 522
    %1391 = vst.msk [vmem:[%s1390] ss:$16 sm:$0x3] %vm1389, %v1388
    %s1392 = scalar_lea.vmem %s1, 522
    %1393 = vst.msk [vmem:[%s1392] ss:$16 sm:$0xc] %vm1389, %v1388
    %s1394 = scalar_lea.vmem %s1, 522
    %1395 = vst.msk [vmem:[%s1394] ss:$16 sm:$0x30] %vm1389, %v1388
    %s1396 = scalar_lea.vmem %s1, 522
    %1397 = vst.msk [vmem:[%s1396] ss:$16 sm:$0xc0] %vm1389, %v1388
    %s1398 = scalar_lea.vmem [#allocation0], 160
    %v1399 = vld.sshfl [vmem:[%s1398] sm:$0xff pattern:$0x99999810]
    %s1400 = scalar_lea.vmem [#allocation0], 176
    %v1401 = vld.sshfl [vmem:[%s1400] sm:$0xff pattern:$0x98100000]
    %vm1402 = vcmask 1047556
    %v1403 = vsel %vm1402, %v1401, %v1399
    %1404 = vrot.lane.b32.xlu0 %v1403, 108
    %v1405 = vpop.permute.xlu0 %1404
    %vm1406 = vcmask 15360
    %s1407 = scalar_lea.vmem %s1, 650
    %1408 = vst.msk [vmem:[%s1407] ss:$16 sm:$0x3] %vm1406, %v1405
    %s1409 = scalar_lea.vmem %s1, 650
    %1410 = vst.msk [vmem:[%s1409] ss:$16 sm:$0xc] %vm1406, %v1405
    %s1411 = scalar_lea.vmem %s1, 650
    %1412 = vst.msk [vmem:[%s1411] ss:$16 sm:$0x30] %vm1406, %v1405
    %s1413 = scalar_lea.vmem %s1, 650
    %1414 = vst.msk [vmem:[%s1413] ss:$16 sm:$0xc0] %vm1406, %v1405
    %s1415 = scalar_lea.vmem [#allocation0], 192
    %v1416 = vld.sshfl [vmem:[%s1415] sm:$0xff pattern:$0x99999810]
    %s1417 = scalar_lea.vmem [#allocation0], 208
    %v1418 = vld.sshfl [vmem:[%s1417] sm:$0xff pattern:$0x98100000]
    %vm1419 = vcmask 1047556
    %v1420 = vsel %vm1419, %v1418, %v1416
    %1421 = vrot.lane.b32.xlu0 %v1420, 108
    %v1422 = vpop.permute.xlu0 %1421
    %vm1423 = vcmask 15360
    %s1424 = scalar_lea.vmem %s1, 778
    %1425 = vst.msk [vmem:[%s1424] ss:$16 sm:$0x3] %vm1423, %v1422
    %s1426 = scalar_lea.vmem %s1, 778
    %1427 = vst.msk [vmem:[%s1426] ss:$16 sm:$0xc] %vm1423, %v1422
    %s1428 = scalar_lea.vmem %s1, 778
    %1429 = vst.msk [vmem:[%s1428] ss:$16 sm:$0x30] %vm1423, %v1422
    %s1430 = scalar_lea.vmem %s1, 778
    %1431 = vst.msk [vmem:[%s1430] ss:$16 sm:$0xc0] %vm1423, %v1422
    %v1432 = vld.sshfl [vmem:[#allocation0] sm:$0xff pattern:$0x99999810]
    %s1433 = scalar_lea.vmem [#allocation0], 16
    %v1434 = vld.sshfl [vmem:[%s1433] sm:$0xff pattern:$0x98100000]
    %vm1435 = vcmask 1047556
    %v1436 = vsel %vm1435, %v1434, %v1432
    %1437 = vrot.lane.b32.xlu0 %v1436, 106
    %v1438 = vpop.permute.xlu0 %1437
    %vm1439 = vcmask 15360
    %s1440 = scalar_lea.vmem %s1, 11
    %1441 = vst.msk [vmem:[%s1440] ss:$16 sm:$0x3] %vm1439, %v1438
    %s1442 = scalar_lea.vmem %s1, 11
    %1443 = vst.msk [vmem:[%s1442] ss:$16 sm:$0xc] %vm1439, %v1438
    %s1444 = scalar_lea.vmem %s1, 11
    %1445 = vst.msk [vmem:[%s1444] ss:$16 sm:$0x30] %vm1439, %v1438
    %s1446 = scalar_lea.vmem %s1, 11
    %1447 = vst.msk [vmem:[%s1446] ss:$16 sm:$0xc0] %vm1439, %v1438
    %s1448 = scalar_lea.vmem [#allocation0], 32
    %v1449 = vld.sshfl [vmem:[%s1448] sm:$0xff pattern:$0x99999810]
    %s1450 = scalar_lea.vmem [#allocation0], 48
    %v1451 = vld.sshfl [vmem:[%s1450] sm:$0xff pattern:$0x98100000]
    %vm1452 = vcmask 1047556
    %v1453 = vsel %vm1452, %v1451, %v1449
    %1454 = vrot.lane.b32.xlu0 %v1453, 106
    %v1455 = vpop.permute.xlu0 %1454
    %vm1456 = vcmask 15360
    %s1457 = scalar_lea.vmem %s1, 139
    %1458 = vst.msk [vmem:[%s1457] ss:$16 sm:$0x3] %vm1456, %v1455
    %s1459 = scalar_lea.vmem %s1, 139
    %1460 = vst.msk [vmem:[%s1459] ss:$16 sm:$0xc] %vm1456, %v1455
    %s1461 = scalar_lea.vmem %s1, 139
    %1462 = vst.msk [vmem:[%s1461] ss:$16 sm:$0x30] %vm1456, %v1455
    %s1463 = scalar_lea.vmem %s1, 139
    %1464 = vst.msk [vmem:[%s1463] ss:$16 sm:$0xc0] %vm1456, %v1455
    %s1465 = scalar_lea.vmem [#allocation0], 64
    %v1466 = vld.sshfl [vmem:[%s1465] sm:$0xff pattern:$0x99999810]
    %s1467 = scalar_lea.vmem [#allocation0], 80
    %v1468 = vld.sshfl [vmem:[%s1467] sm:$0xff pattern:$0x98100000]
    %vm1469 = vcmask 1047556
    %v1470 = vsel %vm1469, %v1468, %v1466
    %1471 = vrot.lane.b32.xlu0 %v1470, 106
    %v1472 = vpop.permute.xlu0 %1471
    %vm1473 = vcmask 15360
    %s1474 = scalar_lea.vmem %s1, 267
    %1475 = vst.msk [vmem:[%s1474] ss:$16 sm:$0x3] %vm1473, %v1472
    %s1476 = scalar_lea.vmem %s1, 267
    %1477 = vst.msk [vmem:[%s1476] ss:$16 sm:$0xc] %vm1473, %v1472
    %s1478 = scalar_lea.vmem %s1, 267
    %1479 = vst.msk [vmem:[%s1478] ss:$16 sm:$0x30] %vm1473, %v1472
    %s1480 = scalar_lea.vmem %s1, 267
    %1481 = vst.msk [vmem:[%s1480] ss:$16 sm:$0xc0] %vm1473, %v1472
    %s1482 = scalar_lea.vmem [#allocation0], 96
    %v1483 = vld.sshfl [vmem:[%s1482] sm:$0xff pattern:$0x99999810]
    %s1484 = scalar_lea.vmem [#allocation0], 112
    %v1485 = vld.sshfl [vmem:[%s1484] sm:$0xff pattern:$0x98100000]
    %vm1486 = vcmask 1047556
    %v1487 = vsel %vm1486, %v1485, %v1483
    %1488 = vrot.lane.b32.xlu0 %v1487, 106
    %v1489 = vpop.permute.xlu0 %1488
    %vm1490 = vcmask 15360
    %s1491 = scalar_lea.vmem %s1, 395
    %1492 = vst.msk [vmem:[%s1491] ss:$16 sm:$0x3] %vm1490, %v1489
    %s1493 = scalar_lea.vmem %s1, 395
    %1494 = vst.msk [vmem:[%s1493] ss:$16 sm:$0xc] %vm1490, %v1489
    %s1495 = scalar_lea.vmem %s1, 395
    %1496 = vst.msk [vmem:[%s1495] ss:$16 sm:$0x30] %vm1490, %v1489
    %s1497 = scalar_lea.vmem %s1, 395
    %1498 = vst.msk [vmem:[%s1497] ss:$16 sm:$0xc0] %vm1490, %v1489
    %s1499 = scalar_lea.vmem [#allocation0], 128
    %v1500 = vld.sshfl [vmem:[%s1499] sm:$0xff pattern:$0x99999810]
    %s1501 = scalar_lea.vmem [#allocation0], 144
    %v1502 = vld.sshfl [vmem:[%s1501] sm:$0xff pattern:$0x98100000]
    %vm1503 = vcmask 1047556
    %v1504 = vsel %vm1503, %v1502, %v1500
    %1505 = vrot.lane.b32.xlu0 %v1504, 106
    %v1506 = vpop.permute.xlu0 %1505
    %vm1507 = vcmask 15360
    %s1508 = scalar_lea.vmem %s1, 523
    %1509 = vst.msk [vmem:[%s1508] ss:$16 sm:$0x3] %vm1507, %v1506
    %s1510 = scalar_lea.vmem %s1, 523
    %1511 = vst.msk [vmem:[%s1510] ss:$16 sm:$0xc] %vm1507, %v1506
    %s1512 = scalar_lea.vmem %s1, 523
    %1513 = vst.msk [vmem:[%s1512] ss:$16 sm:$0x30] %vm1507, %v1506
    %s1514 = scalar_lea.vmem %s1, 523
    %1515 = vst.msk [vmem:[%s1514] ss:$16 sm:$0xc0] %vm1507, %v1506
    %s1516 = scalar_lea.vmem [#allocation0], 160
    %v1517 = vld.sshfl [vmem:[%s1516] sm:$0xff pattern:$0x99999810]
    %s1518 = scalar_lea.vmem [#allocation0], 176
    %v1519 = vld.sshfl [vmem:[%s1518] sm:$0xff pattern:$0x98100000]
    %vm1520 = vcmask 1047556
    %v1521 = vsel %vm1520, %v1519, %v1517
    %1522 = vrot.lane.b32.xlu0 %v1521, 106
    %v1523 = vpop.permute.xlu0 %1522
    %vm1524 = vcmask 15360
    %s1525 = scalar_lea.vmem %s1, 651
    %1526 = vst.msk [vmem:[%s1525] ss:$16 sm:$0x3] %vm1524, %v1523
    %s1527 = scalar_lea.vmem %s1, 651
    %1528 = vst.msk [vmem:[%s1527] ss:$16 sm:$0xc] %vm1524, %v1523
    %s1529 = scalar_lea.vmem %s1, 651
    %1530 = vst.msk [vmem:[%s1529] ss:$16 sm:$0x30] %vm1524, %v1523
    %s1531 = scalar_lea.vmem %s1, 651
    %1532 = vst.msk [vmem:[%s1531] ss:$16 sm:$0xc0] %vm1524, %v1523
    %s1533 = scalar_lea.vmem [#allocation0], 192
    %v1534 = vld.sshfl [vmem:[%s1533] sm:$0xff pattern:$0x99999810]
    %s1535 = scalar_lea.vmem [#allocation0], 208
    %v1536 = vld.sshfl [vmem:[%s1535] sm:$0xff pattern:$0x98100000]
    %vm1537 = vcmask 1047556
    %v1538 = vsel %vm1537, %v1536, %v1534
    %1539 = vrot.lane.b32.xlu0 %v1538, 106
    %v1540 = vpop.permute.xlu0 %1539
    %vm1541 = vcmask 15360
    %s1542 = scalar_lea.vmem %s1, 779
    %1543 = vst.msk [vmem:[%s1542] ss:$16 sm:$0x3] %vm1541, %v1540
    %s1544 = scalar_lea.vmem %s1, 779
    %1545 = vst.msk [vmem:[%s1544] ss:$16 sm:$0xc] %vm1541, %v1540
    %s1546 = scalar_lea.vmem %s1, 779
    %1547 = vst.msk [vmem:[%s1546] ss:$16 sm:$0x30] %vm1541, %v1540
    %s1548 = scalar_lea.vmem %s1, 779
    %1549 = vst.msk [vmem:[%s1548] ss:$16 sm:$0xc0] %vm1541, %v1540
    %v1550 = vld.sshfl [vmem:[#allocation0] sm:$0xff pattern:$0x99999810]
    %s1551 = scalar_lea.vmem [#allocation0], 16
    %v1552 = vld.sshfl [vmem:[%s1551] sm:$0xff pattern:$0x98100000]
    %vm1553 = vcmask 1047556
    %v1554 = vsel %vm1553, %v1552, %v1550
    %1555 = vrot.lane.b32.xlu0 %v1554, 104
    %v1556 = vpop.permute.xlu0 %1555
    %vm1557 = vcmask 15360
    %s1558 = scalar_lea.vmem %s1, 12
    %1559 = vst.msk [vmem:[%s1558] ss:$16 sm:$0x3] %vm1557, %v1556
    %s1560 = scalar_lea.vmem %s1, 12
    %1561 = vst.msk [vmem:[%s1560] ss:$16 sm:$0xc] %vm1557, %v1556
    %s1562 = scalar_lea.vmem %s1, 12
    %1563 = vst.msk [vmem:[%s1562] ss:$16 sm:$0x30] %vm1557, %v1556
    %s1564 = scalar_lea.vmem %s1, 12
    %1565 = vst.msk [vmem:[%s1564] ss:$16 sm:$0xc0] %vm1557, %v1556
    %s1566 = scalar_lea.vmem [#allocation0], 32
    %v1567 = vld.sshfl [vmem:[%s1566] sm:$0xff pattern:$0x99999810]
    %s1568 = scalar_lea.vmem [#allocation0], 48
    %v1569 = vld.sshfl [vmem:[%s1568] sm:$0xff pattern:$0x98100000]
    %vm1570 = vcmask 1047556
    %v1571 = vsel %vm1570, %v1569, %v1567
    %1572 = vrot.lane.b32.xlu0 %v1571, 104
    %v1573 = vpop.permute.xlu0 %1572
    %vm1574 = vcmask 15360
    %s1575 = scalar_lea.vmem %s1, 140
    %1576 = vst.msk [vmem:[%s1575] ss:$16 sm:$0x3] %vm1574, %v1573
    %s1577 = scalar_lea.vmem %s1, 140
    %1578 = vst.msk [vmem:[%s1577] ss:$16 sm:$0xc] %vm1574, %v1573
    %s1579 = scalar_lea.vmem %s1, 140
    %1580 = vst.msk [vmem:[%s1579] ss:$16 sm:$0x30] %vm1574, %v1573
    %s1581 = scalar_lea.vmem %s1, 140
    %1582 = vst.msk [vmem:[%s1581] ss:$16 sm:$0xc0] %vm1574, %v1573
    %s1583 = scalar_lea.vmem [#allocation0], 64
    %v1584 = vld.sshfl [vmem:[%s1583] sm:$0xff pattern:$0x99999810]
    %s1585 = scalar_lea.vmem [#allocation0], 80
    %v1586 = vld.sshfl [vmem:[%s1585] sm:$0xff pattern:$0x98100000]
    %vm1587 = vcmask 1047556
    %v1588 = vsel %vm1587, %v1586, %v1584
    %1589 = vrot.lane.b32.xlu0 %v1588, 104
    %v1590 = vpop.permute.xlu0 %1589
    %vm1591 = vcmask 15360
    %s1592 = scalar_lea.vmem %s1, 268
    %1593 = vst.msk [vmem:[%s1592] ss:$16 sm:$0x3] %vm1591, %v1590
    %s1594 = scalar_lea.vmem %s1, 268
    %1595 = vst.msk [vmem:[%s1594] ss:$16 sm:$0xc] %vm1591, %v1590
    %s1596 = scalar_lea.vmem %s1, 268
    %1597 = vst.msk [vmem:[%s1596] ss:$16 sm:$0x30] %vm1591, %v1590
    %s1598 = scalar_lea.vmem %s1, 268
    %1599 = vst.msk [vmem:[%s1598] ss:$16 sm:$0xc0] %vm1591, %v1590
    %s1600 = scalar_lea.vmem [#allocation0], 96
    %v1601 = vld.sshfl [vmem:[%s1600] sm:$0xff pattern:$0x99999810]
    %s1602 = scalar_lea.vmem [#allocation0], 112
    %v1603 = vld.sshfl [vmem:[%s1602] sm:$0xff pattern:$0x98100000]
    %vm1604 = vcmask 1047556
    %v1605 = vsel %vm1604, %v1603, %v1601
    %1606 = vrot.lane.b32.xlu0 %v1605, 104
    %v1607 = vpop.permute.xlu0 %1606
    %vm1608 = vcmask 15360
    %s1609 = scalar_lea.vmem %s1, 396
    %1610 = vst.msk [vmem:[%s1609] ss:$16 sm:$0x3] %vm1608, %v1607
    %s1611 = scalar_lea.vmem %s1, 396
    %1612 = vst.msk [vmem:[%s1611] ss:$16 sm:$0xc] %vm1608, %v1607
    %s1613 = scalar_lea.vmem %s1, 396
    %1614 = vst.msk [vmem:[%s1613] ss:$16 sm:$0x30] %vm1608, %v1607
    %s1615 = scalar_lea.vmem %s1, 396
    %1616 = vst.msk [vmem:[%s1615] ss:$16 sm:$0xc0] %vm1608, %v1607
    %s1617 = scalar_lea.vmem [#allocation0], 128
    %v1618 = vld.sshfl [vmem:[%s1617] sm:$0xff pattern:$0x99999810]
    %s1619 = scalar_lea.vmem [#allocation0], 144
    %v1620 = vld.sshfl [vmem:[%s1619] sm:$0xff pattern:$0x98100000]
    %vm1621 = vcmask 1047556
    %v1622 = vsel %vm1621, %v1620, %v1618
    %1623 = vrot.lane.b32.xlu0 %v1622, 104
    %v1624 = vpop.permute.xlu0 %1623
    %vm1625 = vcmask 15360
    %s1626 = scalar_lea.vmem %s1, 524
    %1627 = vst.msk [vmem:[%s1626] ss:$16 sm:$0x3] %vm1625, %v1624
    %s1628 = scalar_lea.vmem %s1, 524
    %1629 = vst.msk [vmem:[%s1628] ss:$16 sm:$0xc] %vm1625, %v1624
    %s1630 = scalar_lea.vmem %s1, 524
    %1631 = vst.msk [vmem:[%s1630] ss:$16 sm:$0x30] %vm1625, %v1624
    %s1632 = scalar_lea.vmem %s1, 524
    %1633 = vst.msk [vmem:[%s1632] ss:$16 sm:$0xc0] %vm1625, %v1624
    %s1634 = scalar_lea.vmem [#allocation0], 160
    %v1635 = vld.sshfl [vmem:[%s1634] sm:$0xff pattern:$0x99999810]
    %s1636 = scalar_lea.vmem [#allocation0], 176
    %v1637 = vld.sshfl [vmem:[%s1636] sm:$0xff pattern:$0x98100000]
    %vm1638 = vcmask 1047556
    %v1639 = vsel %vm1638, %v1637, %v1635
    %1640 = vrot.lane.b32.xlu0 %v1639, 104
    %v1641 = vpop.permute.xlu0 %1640
    %vm1642 = vcmask 15360
    %s1643 = scalar_lea.vmem %s1, 652
    %1644 = vst.msk [vmem:[%s1643] ss:$16 sm:$0x3] %vm1642, %v1641
    %s1645 = scalar_lea.vmem %s1, 652
    %1646 = vst.msk [vmem:[%s1645] ss:$16 sm:$0xc] %vm1642, %v1641
    %s1647 = scalar_lea.vmem %s1, 652
    %1648 = vst.msk [vmem:[%s1647] ss:$16 sm:$0x30] %vm1642, %v1641
    %s1649 = scalar_lea.vmem %s1, 652
    %1650 = vst.msk [vmem:[%s1649] ss:$16 sm:$0xc0] %vm1642, %v1641
    %s1651 = scalar_lea.vmem [#allocation0], 192
    %v1652 = vld.sshfl [vmem:[%s1651] sm:$0xff pattern:$0x99999810]
    %s1653 = scalar_lea.vmem [#allocation0], 208
    %v1654 = vld.sshfl [vmem:[%s1653] sm:$0xff pattern:$0x98100000]
    %vm1655 = vcmask 1047556
    %v1656 = vsel %vm1655, %v1654, %v1652
    %1657 = vrot.lane.b32.xlu0 %v1656, 104
    %v1658 = vpop.permute.xlu0 %1657
    %vm1659 = vcmask 15360
    %s1660 = scalar_lea.vmem %s1, 780
    %1661 = vst.msk [vmem:[%s1660] ss:$16 sm:$0x3] %vm1659, %v1658
    %s1662 = scalar_lea.vmem %s1, 780
    %1663 = vst.msk [vmem:[%s1662] ss:$16 sm:$0xc] %vm1659, %v1658
    %s1664 = scalar_lea.vmem %s1, 780
    %1665 = vst.msk [vmem:[%s1664] ss:$16 sm:$0x30] %vm1659, %v1658
    %s1666 = scalar_lea.vmem %s1, 780
    %1667 = vst.msk [vmem:[%s1666] ss:$16 sm:$0xc0] %vm1659, %v1658
    %v1668 = vld.sshfl [vmem:[#allocation0] sm:$0xff pattern:$0x99999810]
    %s1669 = scalar_lea.vmem [#allocation0], 16
    %v1670 = vld.sshfl [vmem:[%s1669] sm:$0xff pattern:$0x98100000]
    %vm1671 = vcmask 1047556
    %v1672 = vsel %vm1671, %v1670, %v1668
    %1673 = vrot.lane.b32.xlu0 %v1672, 102
    %v1674 = vpop.permute.xlu0 %1673
    %vm1675 = vcmask 15360
    %s1676 = scalar_lea.vmem %s1, 13
    %1677 = vst.msk [vmem:[%s1676] ss:$16 sm:$0x3] %vm1675, %v1674
    %s1678 = scalar_lea.vmem %s1, 13
    %1679 = vst.msk [vmem:[%s1678] ss:$16 sm:$0xc] %vm1675, %v1674
    %s1680 = scalar_lea.vmem %s1, 13
    %1681 = vst.msk [vmem:[%s1680] ss:$16 sm:$0x30] %vm1675, %v1674
    %s1682 = scalar_lea.vmem %s1, 13
    %1683 = vst.msk [vmem:[%s1682] ss:$16 sm:$0xc0] %vm1675, %v1674
    %s1684 = scalar_lea.vmem [#allocation0], 32
    %v1685 = vld.sshfl [vmem:[%s1684] sm:$0xff pattern:$0x99999810]
    %s1686 = scalar_lea.vmem [#allocation0], 48
    %v1687 = vld.sshfl [vmem:[%s1686] sm:$0xff pattern:$0x98100000]
    %vm1688 = vcmask 1047556
    %v1689 = vsel %vm1688, %v1687, %v1685
    %1690 = vrot.lane.b32.xlu0 %v1689, 102
    %v1691 = vpop.permute.xlu0 %1690
    %vm1692 = vcmask 15360
    %s1693 = scalar_lea.vmem %s1, 141
    %1694 = vst.msk [vmem:[%s1693] ss:$16 sm:$0x3] %vm1692, %v1691
    %s1695 = scalar_lea.vmem %s1, 141
    %1696 = vst.msk [vmem:[%s1695] ss:$16 sm:$0xc] %vm1692, %v1691
    %s1697 = scalar_lea.vmem %s1, 141
    %1698 = vst.msk [vmem:[%s1697] ss:$16 sm:$0x30] %vm1692, %v1691
    %s1699 = scalar_lea.vmem %s1, 141
    %1700 = vst.msk [vmem:[%s1699] ss:$16 sm:$0xc0] %vm1692, %v1691
    %s1701 = scalar_lea.vmem [#allocation0], 64
    %v1702 = vld.sshfl [vmem:[%s1701] sm:$0xff pattern:$0x99999810]
    %s1703 = scalar_lea.vmem [#allocation0], 80
    %v1704 = vld.sshfl [vmem:[%s1703] sm:$0xff pattern:$0x98100000]
    %vm1705 = vcmask 1047556
    %v1706 = vsel %vm1705, %v1704, %v1702
    %1707 = vrot.lane.b32.xlu0 %v1706, 102
    %v1708 = vpop.permute.xlu0 %1707
    %vm1709 = vcmask 15360
    %s1710 = scalar_lea.vmem %s1, 269
    %1711 = vst.msk [vmem:[%s1710] ss:$16 sm:$0x3] %vm1709, %v1708
    %s1712 = scalar_lea.vmem %s1, 269
    %1713 = vst.msk [vmem:[%s1712] ss:$16 sm:$0xc] %vm1709, %v1708
    %s1714 = scalar_lea.vmem %s1, 269
    %1715 = vst.msk [vmem:[%s1714] ss:$16 sm:$0x30] %vm1709, %v1708
    %s1716 = scalar_lea.vmem %s1, 269
    %1717 = vst.msk [vmem:[%s1716] ss:$16 sm:$0xc0] %vm1709, %v1708
    %s1718 = scalar_lea.vmem [#allocation0], 96
    %v1719 = vld.sshfl [vmem:[%s1718] sm:$0xff pattern:$0x99999810]
    %s1720 = scalar_lea.vmem [#allocation0], 112
    %v1721 = vld.sshfl [vmem:[%s1720] sm:$0xff pattern:$0x98100000]
    %vm1722 = vcmask 1047556
    %v1723 = vsel %vm1722, %v1721, %v1719
    %1724 = vrot.lane.b32.xlu0 %v1723, 102
    %v1725 = vpop.permute.xlu0 %1724
    %vm1726 = vcmask 15360
    %s1727 = scalar_lea.vmem %s1, 397
    %1728 = vst.msk [vmem:[%s1727] ss:$16 sm:$0x3] %vm1726, %v1725
    %s1729 = scalar_lea.vmem %s1, 397
    %1730 = vst.msk [vmem:[%s1729] ss:$16 sm:$0xc] %vm1726, %v1725
    %s1731 = scalar_lea.vmem %s1, 397
    %1732 = vst.msk [vmem:[%s1731] ss:$16 sm:$0x30] %vm1726, %v1725
    %s1733 = scalar_lea.vmem %s1, 397
    %1734 = vst.msk [vmem:[%s1733] ss:$16 sm:$0xc0] %vm1726, %v1725
    %s1735 = scalar_lea.vmem [#allocation0], 128
    %v1736 = vld.sshfl [vmem:[%s1735] sm:$0xff pattern:$0x99999810]
    %s1737 = scalar_lea.vmem [#allocation0], 144
    %v1738 = vld.sshfl [vmem:[%s1737] sm:$0xff pattern:$0x98100000]
    %vm1739 = vcmask 1047556
    %v1740 = vsel %vm1739, %v1738, %v1736
    %1741 = vrot.lane.b32.xlu0 %v1740, 102
    %v1742 = vpop.permute.xlu0 %1741
    %vm1743 = vcmask 15360
    %s1744 = scalar_lea.vmem %s1, 525
    %1745 = vst.msk [vmem:[%s1744] ss:$16 sm:$0x3] %vm1743, %v1742
    %s1746 = scalar_lea.vmem %s1, 525
    %1747 = vst.msk [vmem:[%s1746] ss:$16 sm:$0xc] %vm1743, %v1742
    %s1748 = scalar_lea.vmem %s1, 525
    %1749 = vst.msk [vmem:[%s1748] ss:$16 sm:$0x30] %vm1743, %v1742
    %s1750 = scalar_lea.vmem %s1, 525
    %1751 = vst.msk [vmem:[%s1750] ss:$16 sm:$0xc0] %vm1743, %v1742
    %s1752 = scalar_lea.vmem [#allocation0], 160
    %v1753 = vld.sshfl [vmem:[%s1752] sm:$0xff pattern:$0x99999810]
    %s1754 = scalar_lea.vmem [#allocation0], 176
    %v1755 = vld.sshfl [vmem:[%s1754] sm:$0xff pattern:$0x98100000]
    %vm1756 = vcmask 1047556
    %v1757 = vsel %vm1756, %v1755, %v1753
    %1758 = vrot.lane.b32.xlu0 %v1757, 102
    %v1759 = vpop.permute.xlu0 %1758
    %vm1760 = vcmask 15360
    %s1761 = scalar_lea.vmem %s1, 653
    %1762 = vst.msk [vmem:[%s1761] ss:$16 sm:$0x3] %vm1760, %v1759
    %s1763 = scalar_lea.vmem %s1, 653
    %1764 = vst.msk [vmem:[%s1763] ss:$16 sm:$0xc] %vm1760, %v1759
    %s1765 = scalar_lea.vmem %s1, 653
    %1766 = vst.msk [vmem:[%s1765] ss:$16 sm:$0x30] %vm1760, %v1759
    %s1767 = scalar_lea.vmem %s1, 653
    %1768 = vst.msk [vmem:[%s1767] ss:$16 sm:$0xc0] %vm1760, %v1759
    %s1769 = scalar_lea.vmem [#allocation0], 192
    %v1770 = vld.sshfl [vmem:[%s1769] sm:$0xff pattern:$0x99999810]
    %s1771 = scalar_lea.vmem [#allocation0], 208
    %v1772 = vld.sshfl [vmem:[%s1771] sm:$0xff pattern:$0x98100000]
    %vm1773 = vcmask 1047556
    %v1774 = vsel %vm1773, %v1772, %v1770
    %1775 = vrot.lane.b32.xlu0 %v1774, 102
    %v1776 = vpop.permute.xlu0 %1775
    %vm1777 = vcmask 15360
    %s1778 = scalar_lea.vmem %s1, 781
    %1779 = vst.msk [vmem:[%s1778] ss:$16 sm:$0x3] %vm1777, %v1776
    %s1780 = scalar_lea.vmem %s1, 781
    %1781 = vst.msk [vmem:[%s1780] ss:$16 sm:$0xc] %vm1777, %v1776
    %s1782 = scalar_lea.vmem %s1, 781
    %1783 = vst.msk [vmem:[%s1782] ss:$16 sm:$0x30] %vm1777, %v1776
    %s1784 = scalar_lea.vmem %s1, 781
    %1785 = vst.msk [vmem:[%s1784] ss:$16 sm:$0xc0] %vm1777, %v1776

// kernel: neuralnet_forward.1
$region0: #{neuralnet_forward.1}
  #allocation0 [shape = 'u32[]', space=smem, size = 0x4, offset = 0x4, fixed_abs, tag = 'smem constant byte address 0x4 - core index']
  #allocation1 [shape = 'u32[72,128]{1,0:T(1,128)}', space=vmem, size = 0x9000, scoped, tag = 'internal scratch']
  #allocation2 [shape = 'f32[8,196]{1,0:T(8,128)}', space=vmem, size = 0x2000, scoped, tag = 'scratch operand']
  #allocation3 [shape = 'f32[8,196]{1,0:T(8,128)}', space=vmem, size = 0x2000, scoped, tag = 'scratch operand']
  #allocation4 [shape = 'f32[8,196]{1,0:T(8,128)}', space=vmem, size = 0x2000, scoped, tag = 'scratch operand']
  #allocation5 [shape = 'f32[8,196]{1,0:T(8,128)}', space=vmem, size = 0x2000, scoped, tag = 'scratch operand']
  #allocation6 [shape = 'f32[8,196]{1,0:T(8,128)}', space=vmem, size = 0x2000, scoped, tag = 'scratch operand']
  #allocation7 [shape = 'f32[8,196]{1,0:T(8,128)}', space=vmem, size = 0x2000, scoped, tag = 'scratch operand']
  #allocation8 [shape = 'f32[8,196]{1,0:T(8,128)}', space=vmem, size = 0x2000, scoped, tag = 'scratch operand']
  #allocation9 [shape = 'f32[8,196]{1,0:T(8,128)}', space=vmem, size = 0x2000, scoped, tag = 'scratch operand']
  #allocation10 [shape = 'f32[8,196]{1,0:T(8,128)}', space=vmem, size = 0x2000, scoped, tag = 'scratch operand']
  #allocation11 [shape = 'f32[8,196]{1,0:T(8,128)}', space=vmem, size = 0x2000, scoped, tag = 'scratch operand']
  #allocation12 [shape = 'f32[8,196]{1,0:T(8,128)}', space=vmem, size = 0x2000, scoped, tag = 'scratch operand']
  #allocation13 [shape = 'f32[8,196]{1,0:T(8,128)}', space=vmem, size = 0x2000, scoped, tag = 'scratch operand']
  #allocation14 [shape = 'f32[8,196]{1,0:T(8,128)}', space=vmem, size = 0x2000, scoped, tag = 'scratch operand']
  #allocation15 [shape = 'f32[8,196]{1,0:T(8,128)}', space=vmem, size = 0x2000, scoped, tag = 'scratch operand']
  #allocation16 [shape = 'f32[8,196]{1,0:T(8,128)}', space=vmem, size = 0x2000, scoped, tag = 'scratch operand']
  #allocation17 [shape = 'f32[8,196]{1,0:T(8,128)}', space=vmem, size = 0x2000, scoped, tag = 'scratch operand']
  %s0 = inlined_call_operand.vmem [shape: f32[27], index: 0, kind: input, shape index: {}]
  %s1 = inlined_call_operand.vmem [shape: f32[3], index: 1, kind: input, shape index: {}]
  %s2 = inlined_call_operand.vmem [shape: f32[4,8,224], index: 2, kind: input, shape index: {}]
  %s3 = inlined_call_operand.vmem [shape: bf16[196,512], index: 3, kind: input, shape index: {}]
  %s4 = inlined_call_operand.vmem [shape: bf16[196,512], index: 4, kind: input, shape index: {}]
  %s5 = inlined_call_operand.vmem [shape: bf16[196,512], index: 5, kind: input, shape index: {}]
  %s6 = inlined_call_operand.vmem [shape: f32[1,512], index: 6, kind: input, shape index: {}]
  %s7 = inlined_call_operand.vmem [shape: bf16[512,512], index: 7, kind: input, shape index: {}]
  %s8 = inlined_call_operand.vmem [shape: f32[1,512], index: 8, kind: input, shape index: {}]
  %s9 = inlined_call_operand.vmem [shape: bf16[512,128], index: 9, kind: input, shape index: {}]
  %s10 = inlined_call_operand.vmem [shape: f32[1,128], index: 10, kind: input, shape index: {}]
  %s11 = inlined_call_operand.vmem [shape: f32[8,128], index: 11, kind: output, shape index: {}]
  %s12 = sld [smem:[#allocation0]]
  $region62: #{neuralnet_forward.1} parent=0
    _
  %s14 = ssub.s32 1, %s12
  %s15 = scalar_select 0, %s14, %s12
  $region1: #{neuralnet_forward.1} parent=0
    #allocation18 [shape = 'u8[512]{0}', space=smem, size = 0x200, scoped, tag = 'input window, operand 0, single buffered']
    #allocation19 [shape = 's32[1]{0}', space=sflag, size = 0x4, scoped, tag = 'scoped memory for neuralnet_forward.1']
    #allocation20 [shape = 'u8[512]{0}', space=smem, size = 0x200, scoped, tag = 'input window, operand 1, single buffered']
    #allocation21 [shape = 's32[1]{0}', space=sflag, size = 0x4, scoped, tag = 'scoped memory for neuralnet_forward.1']
    %16 = vsyncpa [#allocation19], 0
    %17 = vsyncpa [#allocation21], 0
    // Predicated region
    $region2: #{neuralnet_forward.1} parent=1 // pred_check
      _
    $region3: #{neuralnet_forward.1} parent=1 // pred_check_branch
      %19 = sbr.rel (0) target = $region5
    $region4: #{neuralnet_forward.1} parent=1 // pred_region
      %21 = vsyncadd [#allocation19], 0
      %s23 = sshll.u32 %s0, 4
      %s24 = int_to_ptr.vmem [resolvable:$true] %s23
      %26 = dma.vmem_to_smem %s24, 16, [#allocation18], [#allocation19]
    $region5: #{neuralnet_forward.1} parent=1 // pred_fallthru
      _
    // Predicated region
    $region6: #{neuralnet_forward.1} parent=1 // pred_check
      _
    $region7: #{neuralnet_forward.1} parent=1 // pred_check_branch
      %28 = sbr.rel (0) target = $region9
    $region8: #{neuralnet_forward.1} parent=1 // pred_region
      %30 = vsyncadd [#allocation21], 0
      %s32 = sshll.u32 %s1, 4
      %s33 = int_to_ptr.vmem [resolvable:$true] %s32
      %35 = dma.vmem_to_smem %s33, 16, [#allocation20], [#allocation21]
    $region9: #{neuralnet_forward.1} parent=1 // pred_fallthru
      _
    // Predicated region
    $region10: #{neuralnet_forward.1} parent=1 // pred_check
      _
    $region11: #{neuralnet_forward.1} parent=1 // pred_check_branch
      %37 = sbr.rel (0) target = $region13
    $region12: #{neuralnet_forward.1} parent=1 // pred_region
      _
    $region13: #{neuralnet_forward.1} parent=1 // pred_fallthru
      _
    // Predicated region
    $region14: #{neuralnet_forward.1} parent=1 // pred_check
      _
    $region15: #{neuralnet_forward.1} parent=1 // pred_check_branch
      %39 = sbr.rel (0) target = $region17
    $region16: #{neuralnet_forward.1} parent=1 // pred_region
      _
    $region17: #{neuralnet_forward.1} parent=1 // pred_fallthru
      _
    // Predicated region
    $region18: #{neuralnet_forward.1} parent=1 // pred_check
      _
    $region19: #{neuralnet_forward.1} parent=1 // pred_check_branch
      %41 = sbr.rel (0) target = $region21
    $region20: #{neuralnet_forward.1} parent=1 // pred_region
      _
    $region21: #{neuralnet_forward.1} parent=1 // pred_fallthru
      _
    // Predicated region
    $region22: #{neuralnet_forward.1} parent=1 // pred_check
      _
    $region23: #{neuralnet_forward.1} parent=1 // pred_check_branch
      %43 = sbr.rel (0) target = $region25
    $region24: #{neuralnet_forward.1} parent=1 // pred_region
      _
    $region25: #{neuralnet_forward.1} parent=1 // pred_fallthru
      _
    // Predicated region
    $region26: #{neuralnet_forward.1} parent=1 // pred_check
      _
    $region27: #{neuralnet_forward.1} parent=1 // pred_check_branch
      %45 = sbr.rel (0) target = $region29
    $region28: #{neuralnet_forward.1} parent=1 // pred_region
      _
    $region29: #{neuralnet_forward.1} parent=1 // pred_fallthru
      _
    // Predicated region
    $region30: #{neuralnet_forward.1} parent=1 // pred_check
      _
    $region31: #{neuralnet_forward.1} parent=1 // pred_check_branch
      %47 = sbr.rel (0) target = $region33
    $region32: #{neuralnet_forward.1} parent=1 // pred_region
      _
    $region33: #{neuralnet_forward.1} parent=1 // pred_fallthru
      _
    // Predicated region
    $region34: #{neuralnet_forward.1} parent=1 // pred_check
      _
    $region35: #{neuralnet_forward.1} parent=1 // pred_check_branch
      %49 = sbr.rel (0) target = $region37
    $region36: #{neuralnet_forward.1} parent=1 // pred_region
      _
    $region37: #{neuralnet_forward.1} parent=1 // pred_fallthru
      _
    // Predicated region
    $region38: #{neuralnet_forward.1} parent=1 // pred_check
      _
    $region39: #{neuralnet_forward.1} parent=1 // pred_check_branch
      %51 = sbr.rel (0) target = $region41
    $region40: #{neuralnet_forward.1} parent=1 // pred_region
      _
    $region41: #{neuralnet_forward.1} parent=1 // pred_fallthru
      _
    // Predicated region
    $region42: #{neuralnet_forward.1} parent=1 // pred_check
      _
    $region43: #{neuralnet_forward.1} parent=1 // pred_check_branch
      %53 = sbr.rel (0) target = $region45
    $region44: #{neuralnet_forward.1} parent=1 // pred_region
      _
    $region45: #{neuralnet_forward.1} parent=1 // pred_fallthru
      _
    // Predicated region
    $region46: #{neuralnet_forward.1} parent=1 // pred_check
      _
    $region47: #{neuralnet_forward.1} parent=1 // pred_check_branch
      %55 = sbr.rel (0) target = $region49
    $region48: #{neuralnet_forward.1} parent=1 // pred_region
      %57 = dma.done [#allocation19], 16
    $region49: #{neuralnet_forward.1} parent=1 // pred_fallthru
      _
    // Predicated region
    $region50: #{neuralnet_forward.1} parent=1 // pred_check
      _
    $region51: #{neuralnet_forward.1} parent=1 // pred_check_branch
      %59 = sbr.rel (0) target = $region53
    $region52: #{neuralnet_forward.1} parent=1 // pred_region
      %61 = dma.done [#allocation21], 16
    $region53: #{neuralnet_forward.1} parent=1 // pred_fallthru
      _
    %62 = sfence
    %v64 = vld [vmem:[%s2] sm:$0xff]
    %v65 = vld [vmem:[%s2 + $0x8] sm:$0xff]
    %66 = vst [vmem:[#allocation2] sm:$0xff] %v64
    %vm67 = vcmask 556032
    %68 = vst.msk [vmem:[#allocation2 + $0x8] sm:$0xff] %vm67, %v65
    %71 = vrot.lane.b32.xlu0 %v64, 127
    %v72 = vpop.permute.xlu0 %71
    %73 = vrot.lane.b32.xlu0 %v65, 127
    %v74 = vpop.permute.xlu0 %73
    %vm75 = vcmask 1039360
    %v76 = vsel %vm75, %v72, %v74
    %79 = vst [vmem:[#allocation4] sm:$0xff] %v76
    %80 = vst.msk [vmem:[#allocation4 + $0x8] sm:$0xff] %vm67, %v74
    %81 = vrot.lane.b32.xlu0 %v64, 114
    %v82 = vpop.permute.xlu0 %81
    %83 = vrot.lane.b32.xlu0 %v65, 114
    %v84 = vpop.permute.xlu0 %83
    %vm85 = vcmask 932864
    %v86 = vsel %vm85, %v82, %v84
    %89 = vst [vmem:[#allocation10] sm:$0xff] %v86
    %90 = vst.msk [vmem:[#allocation10 + $0x8] sm:$0xff] %vm67, %v84
    %91 = vrot.lane.b32.xlu0 %v64, 113
    %v92 = vpop.permute.xlu0 %91
    %93 = vrot.lane.b32.xlu0 %v65, 113
    %v94 = vpop.permute.xlu0 %93
    %vm95 = vcmask 924672
    %v96 = vsel %vm95, %v92, %v94
    %99 = vst [vmem:[#allocation12] sm:$0xff] %v96
    %100 = vst.msk [vmem:[#allocation12 + $0x8] sm:$0xff] %vm67, %v94
    %s101 = scalar_lea.vmem %s2, 16
    %v102 = vld [vmem:[%s101] sm:$0xff]
    %v103 = vld [vmem:[%s101 + $0x8] sm:$0xff]
    %104 = vst [vmem:[#allocation3] sm:$0xff] %v102
    %105 = vst.msk [vmem:[#allocation3 + $0x8] sm:$0xff] %vm67, %v103
    %108 = vrot.lane.b32.xlu0 %v102, 127
    %v109 = vpop.permute.xlu0 %108
    %110 = vrot.lane.b32.xlu0 %v103, 127
    %v111 = vpop.permute.xlu0 %110
    %v112 = vsel %vm75, %v109, %v111
    %115 = vst [vmem:[#allocation5] sm:$0xff] %v112
    %116 = vst.msk [vmem:[#allocation5 + $0x8] sm:$0xff] %vm67, %v111
    %117 = vrot.lane.b32.xlu0 %v102, 114
    %v118 = vpop.permute.xlu0 %117
    %119 = vrot.lane.b32.xlu0 %v103, 114
    %v120 = vpop.permute.xlu0 %119
    %v121 = vsel %vm85, %v118, %v120
    %124 = vst [vmem:[#allocation11] sm:$0xff] %v121
    %125 = vst.msk [vmem:[#allocation11 + $0x8] sm:$0xff] %vm67, %v120
    %126 = vrot.lane.b32.xlu0 %v102, 113
    %v127 = vpop.permute.xlu0 %126
    %128 = vrot.lane.b32.xlu0 %v103, 113
    %v129 = vpop.permute.xlu0 %128
    %v130 = vsel %vm95, %v127, %v129
    %133 = vst [vmem:[#allocation13] sm:$0xff] %v130
    %134 = vst.msk [vmem:[#allocation13 + $0x8] sm:$0xff] %vm67, %v129
    %s135 = scalar_lea.vmem %s2, 32
    %v136 = vld [vmem:[%s135] sm:$0xff]
    %v137 = vld [vmem:[%s135 + $0x8] sm:$0xff]
    %138 = vst [vmem:[#allocation6] sm:$0xff] %v136
    %139 = vst.msk [vmem:[#allocation6 + $0x8] sm:$0xff] %vm67, %v137
    %142 = vrot.lane.b32.xlu0 %v136, 127
    %v143 = vpop.permute.xlu0 %142
    %144 = vrot.lane.b32.xlu0 %v137, 127
    %v145 = vpop.permute.xlu0 %144
    %v146 = vsel %vm75, %v143, %v145
    %149 = vst [vmem:[#allocation8] sm:$0xff] %v146
    %150 = vst.msk [vmem:[#allocation8 + $0x8] sm:$0xff] %vm67, %v145
    %151 = vrot.lane.b32.xlu0 %v136, 114
    %v152 = vpop.permute.xlu0 %151
    %153 = vrot.lane.b32.xlu0 %v137, 114
    %v154 = vpop.permute.xlu0 %153
    %v155 = vsel %vm85, %v152, %v154
    %158 = vst [vmem:[#allocation14] sm:$0xff] %v155
    %159 = vst.msk [vmem:[#allocation14 + $0x8] sm:$0xff] %vm67, %v154
    %160 = vrot.lane.b32.xlu0 %v136, 113
    %v161 = vpop.permute.xlu0 %160
    %162 = vrot.lane.b32.xlu0 %v137, 113
    %v163 = vpop.permute.xlu0 %162
    %v164 = vsel %vm95, %v161, %v163
    %167 = vst [vmem:[#allocation16] sm:$0xff] %v164
    %168 = vst.msk [vmem:[#allocation16 + $0x8] sm:$0xff] %vm67, %v163
    %s169 = scalar_lea.vmem %s2, 48
    %v170 = vld [vmem:[%s169] sm:$0xff]
    %v171 = vld [vmem:[%s169 + $0x8] sm:$0xff]
    %172 = vst [vmem:[#allocation7] sm:$0xff] %v170
    %173 = vst.msk [vmem:[#allocation7 + $0x8] sm:$0xff] %vm67, %v171
    %176 = vrot.lane.b32.xlu0 %v170, 127
    %v177 = vpop.permute.xlu0 %176
    %178 = vrot.lane.b32.xlu0 %v171, 127
    %v179 = vpop.permute.xlu0 %178
    %v180 = vsel %vm75, %v177, %v179
    %183 = vst [vmem:[#allocation9] sm:$0xff] %v180
    %184 = vst.msk [vmem:[#allocation9 + $0x8] sm:$0xff] %vm67, %v179
    %185 = vrot.lane.b32.xlu0 %v170, 114
    %v186 = vpop.permute.xlu0 %185
    %187 = vrot.lane.b32.xlu0 %v171, 114
    %v188 = vpop.permute.xlu0 %187
    %v189 = vsel %vm85, %v186, %v188
    %192 = vst [vmem:[#allocation15] sm:$0xff] %v189
    %193 = vst.msk [vmem:[#allocation15 + $0x8] sm:$0xff] %vm67, %v188
    %194 = vrot.lane.b32.xlu0 %v170, 113
    %v195 = vpop.permute.xlu0 %194
    %196 = vrot.lane.b32.xlu0 %v171, 113
    %v197 = vpop.permute.xlu0 %196
    %v198 = vsel %vm95, %v195, %v197
    %201 = vst [vmem:[#allocation17] sm:$0xff] %v198
    %202 = vst.msk [vmem:[#allocation17 + $0x8] sm:$0xff] %vm67, %v197
    %s203 = sld [smem:[#allocation18]]
    %s204 = sld [smem:[#allocation18 + $0x1]]
    %s205 = sld [smem:[#allocation18 + $0x2]]
    %s206 = sld [smem:[#allocation18 + $0x3]]
    %s207 = sld [smem:[#allocation18 + $0x4]]
    %s208 = sld [smem:[#allocation18 + $0x5]]
    %s209 = sld [smem:[#allocation18 + $0x6]]
    %s210 = sld [smem:[#allocation18 + $0x7]]
    %s211 = sld [smem:[#allocation18 + $0x8]]
    %s212 = sld [smem:[#allocation18 + $0x9]]
    %s213 = sld [smem:[#allocation18 + $0xa]]
    %s214 = sld [smem:[#allocation18 + $0xb]]
    %s215 = sld [smem:[#allocation18 + $0xc]]
    %s216 = sld [smem:[#allocation18 + $0xd]]
    %s217 = sld [smem:[#allocation18 + $0xe]]
    %s218 = sld [smem:[#allocation18 + $0xf]]
    %s219 = sld [smem:[#allocation18 + $0x10]]
    %s220 = sld [smem:[#allocation18 + $0x11]]
    %s221 = sld [smem:[#allocation18 + $0x12]]
    %s222 = sld [smem:[#allocation18 + $0x13]]
    %s223 = sld [smem:[#allocation18 + $0x14]]
    %s224 = sld [smem:[#allocation18 + $0x15]]
    %s225 = sld [smem:[#allocation18 + $0x16]]
    %s226 = sld [smem:[#allocation18 + $0x17]]
    %s227 = sld [smem:[#allocation18 + $0x18]]
    %s228 = sld [smem:[#allocation18 + $0x19]]
    %s229 = sld [smem:[#allocation18 + $0x1a]]
    %s230 = sld [smem:[#allocation20]]
    %s231 = sld [smem:[#allocation20 + $0x1]]
    %s232 = sld [smem:[#allocation20 + $0x2]]
    %v233 = vld [vmem:[#allocation2] sm:$0xff]
    %v234 = vld [vmem:[#allocation2 + $0x8] sm:$0xff]
    %v235 = vstv %s203
    %v236 = vmul.f32 %v235, %v233
    %v237 = vmul.f32 %v235, %v234
    %v238 = vld [vmem:[#allocation3] sm:$0xff]
    %v239 = vld [vmem:[#allocation3 + $0x8] sm:$0xff]
    %v240 = vstv %s204
    %v241 = vmul.f32 %v240, %v238
    %v242 = vmul.f32 %v240, %v239
    %v243 = vadd.f32 %v236, %v241
    %v244 = vadd.f32 %v237, %v242
    %v245 = vld [vmem:[#allocation4] sm:$0xff]
    %v246 = vld [vmem:[#allocation4 + $0x8] sm:$0xff]
    %v247 = vstv %s205
    %v248 = vmul.f32 %v247, %v245
    %v249 = vmul.f32 %v247, %v246
    %v250 = vadd.f32 %v243, %v248
    %v251 = vadd.f32 %v244, %v249
    %v252 = vld [vmem:[#allocation6] sm:$0xff]
    %v253 = vld [vmem:[#allocation6 + $0x8] sm:$0xff]
    %v254 = vstv %s206
    %v255 = vmul.f32 %v254, %v252
    %v256 = vmul.f32 %v254, %v253
    %v257 = vadd.f32 %v250, %v255
    %v258 = vadd.f32 %v251, %v256
    %v259 = vld [vmem:[#allocation7] sm:$0xff]
    %v260 = vld [vmem:[#allocation7 + $0x8] sm:$0xff]
    %v261 = vstv %s207
    %v262 = vmul.f32 %v261, %v259
    %v263 = vmul.f32 %v261, %v260
    %v264 = vadd.f32 %v257, %v262
    %v265 = vadd.f32 %v258, %v263
    %v266 = vld [vmem:[#allocation8] sm:$0xff]
    %v267 = vld [vmem:[#allocation8 + $0x8] sm:$0xff]
    %v268 = vstv %s208
    %v269 = vmul.f32 %v268, %v266
    %v270 = vmul.f32 %v268, %v267
    %v271 = vadd.f32 %v264, %v269
    %v272 = vadd.f32 %v265, %v270
    %v273 = vld [vmem:[#allocation10] sm:$0xff]
    %v274 = vld [vmem:[#allocation10 + $0x8] sm:$0xff]
    %v275 = vstv %s209
    %v276 = vmul.f32 %v275, %v273
    %v277 = vmul.f32 %v275, %v274
    %v278 = vadd.f32 %v271, %v276
    %v279 = vadd.f32 %v272, %v277
    %v280 = vld [vmem:[#allocation11] sm:$0xff]
    %v281 = vld [vmem:[#allocation11 + $0x8] sm:$0xff]
    %v282 = vstv %s210
    %v283 = vmul.f32 %v282, %v280
    %v284 = vmul.f32 %v282, %v281
    %v285 = vadd.f32 %v278, %v283
    %v286 = vadd.f32 %v279, %v284
    %v287 = vld [vmem:[#allocation12] sm:$0xff]
    %v288 = vld [vmem:[#allocation12 + $0x8] sm:$0xff]
    %v289 = vstv %s211
    %v290 = vmul.f32 %v289, %v287
    %v291 = vmul.f32 %v289, %v288
    %v292 = vadd.f32 %v285, %v290
    %v293 = vadd.f32 %v286, %v291
    %v294 = vmul.f32 %v235, %v238
    %v295 = vmul.f32 %v235, %v239
    %v296 = vmul.f32 %v240, %v245
    %v297 = vmul.f32 %v240, %v246
    %v298 = vadd.f32 %v294, %v296
    %v299 = vadd.f32 %v295, %v297
    %v300 = vld [vmem:[#allocation5] sm:$0xff]
    %v301 = vld [vmem:[#allocation5 + $0x8] sm:$0xff]
    %v302 = vmul.f32 %v247, %v300
    %v303 = vmul.f32 %v247, %v301
    %v304 = vadd.f32 %v298, %v302
    %v305 = vadd.f32 %v299, %v303
    %v306 = vmul.f32 %v254, %v259
    %v307 = vmul.f32 %v254, %v260
    %v308 = vadd.f32 %v304, %v306
    %v309 = vadd.f32 %v305, %v307
    %v310 = vmul.f32 %v261, %v266
    %v311 = vmul.f32 %v261, %v267
    %v312 = vadd.f32 %v308, %v310
    %v313 = vadd.f32 %v309, %v311
    %v314 = vld [vmem:[#allocation9] sm:$0xff]
    %v315 = vld [vmem:[#allocation9 + $0x8] sm:$0xff]
    %v316 = vmul.f32 %v268, %v314
    %v317 = vmul.f32 %v268, %v315
    %v318 = vadd.f32 %v312, %v316
    %v319 = vadd.f32 %v313, %v317
    %v320 = vmul.f32 %v275, %v280
    %v321 = vmul.f32 %v275, %v281
    %v322 = vadd.f32 %v318, %v320
    %v323 = vadd.f32 %v319, %v321
    %v324 = vmul.f32 %v282, %v287
    %v325 = vmul.f32 %v282, %v288
    %v326 = vadd.f32 %v322, %v324
    %v327 = vadd.f32 %v323, %v325
    %v328 = vld [vmem:[#allocation13] sm:$0xff]
    %v329 = vld [vmem:[#allocation13 + $0x8] sm:$0xff]
    %v330 = vmul.f32 %v289, %v328
    %v331 = vmul.f32 %v289, %v329
    %v332 = vadd.f32 %v326, %v330
    %v333 = vadd.f32 %v327, %v331
    %v334 = vmax.f32 %v292, %v332
    %v335 = vmax.f32 %v293, %v333
    %v336 = vmul.f32 %v235, %v252
    %v337 = vmul.f32 %v235, %v253
    %v338 = vmul.f32 %v240, %v259
    %v339 = vmul.f32 %v240, %v260
    %v340 = vadd.f32 %v336, %v338
    %v341 = vadd.f32 %v337, %v339
    %v342 = vmul.f32 %v247, %v266
    %v343 = vmul.f32 %v247, %v267
    %v344 = vadd.f32 %v340, %v342
    %v345 = vadd.f32 %v341, %v343
    %v346 = vmul.f32 %v254, %v273
    %v347 = vmul.f32 %v254, %v274
    %v348 = vadd.f32 %v344, %v346
    %v349 = vadd.f32 %v345, %v347
    %v350 = vmul.f32 %v261, %v280
    %v351 = vmul.f32 %v261, %v281
    %v352 = vadd.f32 %v348, %v350
    %v353 = vadd.f32 %v349, %v351
    %v354 = vmul.f32 %v268, %v287
    %v355 = vmul.f32 %v268, %v288
    %v356 = vadd.f32 %v352, %v354
    %v357 = vadd.f32 %v353, %v355
    %v358 = vld [vmem:[#allocation14] sm:$0xff]
    %v359 = vld [vmem:[#allocation14 + $0x8] sm:$0xff]
    %v360 = vmul.f32 %v275, %v358
    %v361 = vmul.f32 %v275, %v359
    %v362 = vadd.f32 %v356, %v360
    %v363 = vadd.f32 %v357, %v361
    %v364 = vld [vmem:[#allocation15] sm:$0xff]
    %v365 = vld [vmem:[#allocation15 + $0x8] sm:$0xff]
    %v366 = vmul.f32 %v282, %v364
    %v367 = vmul.f32 %v282, %v365
    %v368 = vadd.f32 %v362, %v366
    %v369 = vadd.f32 %v363, %v367
    %v370 = vld [vmem:[#allocation16] sm:$0xff]
    %v371 = vld [vmem:[#allocation16 + $0x8] sm:$0xff]
    %v372 = vmul.f32 %v289, %v370
    %v373 = vmul.f32 %v289, %v371
    %v374 = vadd.f32 %v368, %v372
    %v375 = vadd.f32 %v369, %v373
    %v376 = vmax.f32 %v334, %v374
    %v377 = vmax.f32 %v335, %v375
    %v378 = vmul.f32 %v235, %v259
    %v379 = vmul.f32 %v235, %v260
    %v380 = vmul.f32 %v240, %v266
    %v381 = vmul.f32 %v240, %v267
    %v382 = vadd.f32 %v378, %v380
    %v383 = vadd.f32 %v379, %v381
    %v384 = vmul.f32 %v247, %v314
    %v385 = vmul.f32 %v247, %v315
    %v386 = vadd.f32 %v382, %v384
    %v387 = vadd.f32 %v383, %v385
    %v388 = vmul.f32 %v254, %v280
    %v389 = vmul.f32 %v254, %v281
    %v390 = vadd.f32 %v386, %v388
    %v391 = vadd.f32 %v387, %v389
    %v392 = vmul.f32 %v261, %v287
    %v393 = vmul.f32 %v261, %v288
    %v394 = vadd.f32 %v390, %v392
    %v395 = vadd.f32 %v391, %v393
    %v396 = vmul.f32 %v268, %v328
    %v397 = vmul.f32 %v268, %v329
    %v398 = vadd.f32 %v394, %v396
    %v399 = vadd.f32 %v395, %v397
    %v400 = vmul.f32 %v275, %v364
    %v401 = vmul.f32 %v275, %v365
    %v402 = vadd.f32 %v398, %v400
    %v403 = vadd.f32 %v399, %v401
    %v404 = vmul.f32 %v282, %v370
    %v405 = vmul.f32 %v282, %v371
    %v406 = vadd.f32 %v402, %v404
    %v407 = vadd.f32 %v403, %v405
    %v408 = vld [vmem:[#allocation17] sm:$0xff]
    %v409 = vld [vmem:[#allocation17 + $0x8] sm:$0xff]
    %v410 = vmul.f32 %v289, %v408
    %v411 = vmul.f32 %v289, %v409
    %v412 = vadd.f32 %v406, %v410
    %v413 = vadd.f32 %v407, %v411
    %v414 = vmax.f32 %v376, %v412
    %v415 = vmax.f32 %v377, %v413
    %v416 = vstv %s230
    %v417 = vadd.f32 %v414, %v416
    %v418 = vadd.f32 %v415, %v416
    %v419 = vpack.c.bf16 %v417, %v417
    %v420 = vpack.c.bf16 %v418, %v418
    %v421 = vld [vmem:[%s3] sm:$0xff]
    %v422 = vld [vmem:[%s3 + $0x8] sm:$0xff]
    %v423 = vld [vmem:[%s3 + $0x10] sm:$0xff]
    %v424 = vld [vmem:[%s3 + $0x18] sm:$0xff]
    %v425 = vld [vmem:[%s3 + $0x20] sm:$0xff]
    %v426 = vld [vmem:[%s3 + $0x28] sm:$0xff]
    %v427 = vld [vmem:[%s3 + $0x30] sm:$0xff]
    %v428 = vld [vmem:[%s3 + $0x38] sm:$0xff]
    %v429 = vld [vmem:[%s3 + $0x40] sm:$0xff]
    %v430 = vld [vmem:[%s3 + $0x48] sm:$0xff]
    %v431 = vld [vmem:[%s3 + $0x50] sm:$0xff]
    %v432 = vld [vmem:[%s3 + $0x58] sm:$0xff]
    %v433 = vld [vmem:[%s3 + $0x60] sm:$0xff]
    %v434 = vld [vmem:[%s3 + $0x68] sm:$0xff]
    %v435 = vld [vmem:[%s3 + $0x70] sm:$0xff]
    %v436 = vld [vmem:[%s3 + $0x78] sm:$0xff]
    %v437 = vld [vmem:[%s3 + $0x80] sm:$0xff]
    %v438 = vld [vmem:[%s3 + $0x88] sm:$0xff]
    %v439 = vld [vmem:[%s3 + $0x90] sm:$0xff]
    %v440 = vld [vmem:[%s3 + $0x98] sm:$0xff]
    %v441 = vld [vmem:[%s3 + $0xa0] sm:$0xff]
    %v442 = vld [vmem:[%s3 + $0xa8] sm:$0xff]
    %v443 = vld [vmem:[%s3 + $0xb0] sm:$0xff]
    %v444 = vld [vmem:[%s3 + $0xb8] sm:$0xff]
    %v445 = vld [vmem:[%s3 + $0xc0] sm:$0xff]
    %v446 = vld [vmem:[%s3 + $0xc8] sm:$0xff]
    %v447 = vld [vmem:[%s3 + $0xd0] sm:$0xff]
    %v448 = vld [vmem:[%s3 + $0xd8] sm:$0xff]
    %v449 = vld [vmem:[%s3 + $0xe0] sm:$0xff]
    %v450 = vld [vmem:[%s3 + $0xe8] sm:$0xff]
    %v451 = vld [vmem:[%s3 + $0xf0] sm:$0xff]
    %v452 = vld [vmem:[%s3 + $0xf8] sm:$0xff]
    %v453 = vld [vmem:[%s3 + $0x100] sm:$0xff]
    %v454 = vld [vmem:[%s3 + $0x108] sm:$0xff]
    %v455 = vld [vmem:[%s3 + $0x110] sm:$0xff]
    %v456 = vld [vmem:[%s3 + $0x118] sm:$0xff]
    %v457 = vld [vmem:[%s3 + $0x120] sm:$0xff]
    %v458 = vld [vmem:[%s3 + $0x128] sm:$0xff]
    %v459 = vld [vmem:[%s3 + $0x130] sm:$0xff]
    %v460 = vld [vmem:[%s3 + $0x138] sm:$0xff]
    %v461 = vld [vmem:[%s3 + $0x140] sm:$0xff]
    %v462 = vld [vmem:[%s3 + $0x148] sm:$0xff]
    %v463 = vld [vmem:[%s3 + $0x150] sm:$0xff]
    %v464 = vld [vmem:[%s3 + $0x158] sm:$0xff]
    %v465 = vld [vmem:[%s3 + $0x160] sm:$0xff]
    %v466 = vld [vmem:[%s3 + $0x168] sm:$0xff]
    %v467 = vld [vmem:[%s3 + $0x170] sm:$0xff]
    %v468 = vld [vmem:[%s3 + $0x178] sm:$0xff]
    %v469 = vld [vmem:[%s3 + $0x180] sm:$0x33]
    %v470 = vld [vmem:[%s3 + $0x188] sm:$0x33]
    %v471 = vstv %s212
    %v472 = vmul.f32 %v471, %v233
    %v473 = vmul.f32 %v471, %v234
    %v474 = vstv %s213
    %v475 = vmul.f32 %v474, %v238
    %v476 = vmul.f32 %v474, %v239
    %v477 = vadd.f32 %v472, %v475
    %v478 = vadd.f32 %v473, %v476
    %v479 = vstv %s214
    %v480 = vmul.f32 %v479, %v245
    %v481 = vmul.f32 %v479, %v246
    %v482 = vadd.f32 %v477, %v480
    %v483 = vadd.f32 %v478, %v481
    %v484 = vstv %s215
    %v485 = vmul.f32 %v484, %v252
    %v486 = vmul.f32 %v484, %v253
    %v487 = vadd.f32 %v482, %v485
    %v488 = vadd.f32 %v483, %v486
    %v489 = vstv %s216
    %v490 = vmul.f32 %v489, %v259
    %v491 = vmul.f32 %v489, %v260
    %v492 = vadd.f32 %v487, %v490
    %v493 = vadd.f32 %v488, %v491
    %v494 = vstv %s217
    %v495 = vmul.f32 %v494, %v266
    %v496 = vmul.f32 %v494, %v267
    %v497 = vadd.f32 %v492, %v495
    %v498 = vadd.f32 %v493, %v496
    %v499 = vstv %s218
    %v500 = vmul.f32 %v499, %v273
    %v501 = vmul.f32 %v499, %v274
    %v502 = vadd.f32 %v497, %v500
    %v503 = vadd.f32 %v498, %v501
    %v504 = vstv %s219
    %v505 = vmul.f32 %v504, %v280
    %v506 = vmul.f32 %v504, %v281
    %v507 = vadd.f32 %v502, %v505
    %v508 = vadd.f32 %v503, %v506
    %v509 = vstv %s220
    %v510 = vmul.f32 %v509, %v287
    %v511 = vmul.f32 %v509, %v288
    %v512 = vadd.f32 %v507, %v510
    %v513 = vadd.f32 %v508, %v511
    %v514 = vmul.f32 %v471, %v238
    %v515 = vmul.f32 %v471, %v239
    %v516 = vmul.f32 %v474, %v245
    %v517 = vmul.f32 %v474, %v246
    %v518 = vadd.f32 %v514, %v516
    %v519 = vadd.f32 %v515, %v517
    %v520 = vmul.f32 %v479, %v300
    %v521 = vmul.f32 %v479, %v301
    %v522 = vadd.f32 %v518, %v520
    %v523 = vadd.f32 %v519, %v521
    %v524 = vmul.f32 %v484, %v259
    %v525 = vmul.f32 %v484, %v260
    %v526 = vadd.f32 %v522, %v524
    %v527 = vadd.f32 %v523, %v525
    %v528 = vmul.f32 %v489, %v266
    %v529 = vmul.f32 %v489, %v267
    %v530 = vadd.f32 %v526, %v528
    %v531 = vadd.f32 %v527, %v529
    %v532 = vmul.f32 %v494, %v314
    %v533 = vmul.f32 %v494, %v315
    %v534 = vadd.f32 %v530, %v532
    %v535 = vadd.f32 %v531, %v533
    %v536 = vmul.f32 %v499, %v280
    %v537 = vmul.f32 %v499, %v281
    %v538 = vadd.f32 %v534, %v536
    %v539 = vadd.f32 %v535, %v537
    %v540 = vmul.f32 %v504, %v287
    %v541 = vmul.f32 %v504, %v288
    %v542 = vadd.f32 %v538, %v540
    %v543 = vadd.f32 %v539, %v541
    %v544 = vmul.f32 %v509, %v328
    %v545 = vmul.f32 %v509, %v329
    %v546 = vadd.f32 %v542, %v544
    %v547 = vadd.f32 %v543, %v545
    %v548 = vmax.f32 %v512, %v546
    %v549 = vmax.f32 %v513, %v547
    %v550 = vmul.f32 %v471, %v252
    %v551 = vmul.f32 %v471, %v253
    %v552 = vmul.f32 %v474, %v259
    %v553 = vmul.f32 %v474, %v260
    %v554 = vadd.f32 %v550, %v552
    %v555 = vadd.f32 %v551, %v553
    %v556 = vmul.f32 %v479, %v266
    %v557 = vmul.f32 %v479, %v267
    %v558 = vadd.f32 %v554, %v556
    %v559 = vadd.f32 %v555, %v557
    %v560 = vmul.f32 %v484, %v273
    %v561 = vmul.f32 %v484, %v274
    %v562 = vadd.f32 %v558, %v560
    %v563 = vadd.f32 %v559, %v561
    %v564 = vmul.f32 %v489, %v280
    %v565 = vmul.f32 %v489, %v281
    %v566 = vadd.f32 %v562, %v564
    %v567 = vadd.f32 %v563, %v565
    %v568 = vmul.f32 %v494, %v287
    %v569 = vmul.f32 %v494, %v288
    %v570 = vadd.f32 %v566, %v568
    %v571 = vadd.f32 %v567, %v569
    %v572 = vmul.f32 %v499, %v358
    %v573 = vmul.f32 %v499, %v359
    %v574 = vadd.f32 %v570, %v572
    %v575 = vadd.f32 %v571, %v573
    %v576 = vmul.f32 %v504, %v364
    %v577 = vmul.f32 %v504, %v365
    %v578 = vadd.f32 %v574, %v576
    %v579 = vadd.f32 %v575, %v577
    %v580 = vmul.f32 %v509, %v370
    %v581 = vmul.f32 %v509, %v371
    %v582 = vadd.f32 %v578, %v580
    %v583 = vadd.f32 %v579, %v581
    %v584 = vmax.f32 %v548, %v582
    %v585 = vmax.f32 %v549, %v583
    %v586 = vmul.f32 %v471, %v259
    %v587 = vmul.f32 %v471, %v260
    %v588 = vmul.f32 %v474, %v266
    %v589 = vmul.f32 %v474, %v267
    %v590 = vadd.f32 %v586, %v588
    %v591 = vadd.f32 %v587, %v589
    %v592 = vmul.f32 %v479, %v314
    %v593 = vmul.f32 %v479, %v315
    %v594 = vadd.f32 %v590, %v592
    %v595 = vadd.f32 %v591, %v593
    %v596 = vmul.f32 %v484, %v280
    %v597 = vmul.f32 %v484, %v281
    %v598 = vadd.f32 %v594, %v596
    %v599 = vadd.f32 %v595, %v597
    %v600 = vmul.f32 %v489, %v287
    %v601 = vmul.f32 %v489, %v288
    %v602 = vadd.f32 %v598, %v600
    %v603 = vadd.f32 %v599, %v601
    %v604 = vmul.f32 %v494, %v328
    %v605 = vmul.f32 %v494, %v329
    %v606 = vadd.f32 %v602, %v604
    %v607 = vadd.f32 %v603, %v605
    %v608 = vmul.f32 %v499, %v364
    %v609 = vmul.f32 %v499, %v365
    %v610 = vadd.f32 %v606, %v608
    %v611 = vadd.f32 %v607, %v609
    %v612 = vmul.f32 %v504, %v370
    %v613 = vmul.f32 %v504, %v371
    %v614 = vadd.f32 %v610, %v612
    %v615 = vadd.f32 %v611, %v613
    %v616 = vmul.f32 %v509, %v408
    %v617 = vmul.f32 %v509, %v409
    %v618 = vadd.f32 %v614, %v616
    %v619 = vadd.f32 %v615, %v617
    %v620 = vmax.f32 %v584, %v618
    %v621 = vmax.f32 %v585, %v619
    %v622 = vstv %s231
    %v623 = vadd.f32 %v620, %v622
    %v624 = vadd.f32 %v621, %v622
    %v625 = vpack.c.bf16 %v623, %v623
    %v626 = vpack.c.bf16 %v624, %v624
    %v627 = vld [vmem:[%s4] sm:$0xff]
    %v628 = vld [vmem:[%s4 + $0x8] sm:$0xff]
    %v629 = vld [vmem:[%s4 + $0x10] sm:$0xff]
    %v630 = vld [vmem:[%s4 + $0x18] sm:$0xff]
    %v631 = vld [vmem:[%s4 + $0x20] sm:$0xff]
    %v632 = vld [vmem:[%s4 + $0x28] sm:$0xff]
    %v633 = vld [vmem:[%s4 + $0x30] sm:$0xff]
    %v634 = vld [vmem:[%s4 + $0x38] sm:$0xff]
    %v635 = vld [vmem:[%s4 + $0x40] sm:$0xff]
    %v636 = vld [vmem:[%s4 + $0x48] sm:$0xff]
    %v637 = vld [vmem:[%s4 + $0x50] sm:$0xff]
    %v638 = vld [vmem:[%s4 + $0x58] sm:$0xff]
    %v639 = vld [vmem:[%s4 + $0x60] sm:$0xff]
    %v640 = vld [vmem:[%s4 + $0x68] sm:$0xff]
    %v641 = vld [vmem:[%s4 + $0x70] sm:$0xff]
    %v642 = vld [vmem:[%s4 + $0x78] sm:$0xff]
    %v643 = vld [vmem:[%s4 + $0x80] sm:$0xff]
    %v644 = vld [vmem:[%s4 + $0x88] sm:$0xff]
    %v645 = vld [vmem:[%s4 + $0x90] sm:$0xff]
    %v646 = vld [vmem:[%s4 + $0x98] sm:$0xff]
    %v647 = vld [vmem:[%s4 + $0xa0] sm:$0xff]
    %v648 = vld [vmem:[%s4 + $0xa8] sm:$0xff]
    %v649 = vld [vmem:[%s4 + $0xb0] sm:$0xff]
    %v650 = vld [vmem:[%s4 + $0xb8] sm:$0xff]
    %v651 = vld [vmem:[%s4 + $0xc0] sm:$0xff]
    %v652 = vld [vmem:[%s4 + $0xc8] sm:$0xff]
    %v653 = vld [vmem:[%s4 + $0xd0] sm:$0xff]
    %v654 = vld [vmem:[%s4 + $0xd8] sm:$0xff]
    %v655 = vld [vmem:[%s4 + $0xe0] sm:$0xff]
    %v656 = vld [vmem:[%s4 + $0xe8] sm:$0xff]
    %v657 = vld [vmem:[%s4 + $0xf0] sm:$0xff]
    %v658 = vld [vmem:[%s4 + $0xf8] sm:$0xff]
    %v659 = vld [vmem:[%s4 + $0x100] sm:$0xff]
    %v660 = vld [vmem:[%s4 + $0x108] sm:$0xff]
    %v661 = vld [vmem:[%s4 + $0x110] sm:$0xff]
    %v662 = vld [vmem:[%s4 + $0x118] sm:$0xff]
    %v663 = vld [vmem:[%s4 + $0x120] sm:$0xff]
    %v664 = vld [vmem:[%s4 + $0x128] sm:$0xff]
    %v665 = vld [vmem:[%s4 + $0x130] sm:$0xff]
    %v666 = vld [vmem:[%s4 + $0x138] sm:$0xff]
    %v667 = vld [vmem:[%s4 + $0x140] sm:$0xff]
    %v668 = vld [vmem:[%s4 + $0x148] sm:$0xff]
    %v669 = vld [vmem:[%s4 + $0x150] sm:$0xff]
    %v670 = vld [vmem:[%s4 + $0x158] sm:$0xff]
    %v671 = vld [vmem:[%s4 + $0x160] sm:$0xff]
    %v672 = vld [vmem:[%s4 + $0x168] sm:$0xff]
    %v673 = vld [vmem:[%s4 + $0x170] sm:$0xff]
    %v674 = vld [vmem:[%s4 + $0x178] sm:$0xff]
    %v675 = vld [vmem:[%s4 + $0x180] sm:$0x33]
    %v676 = vld [vmem:[%s4 + $0x188] sm:$0x33]
    %v727 = vunpack.c.l.b16 %v627
    %v728 = vunpack.c.h.b16 %v627
    %v729 = vunpack.c.l.b16 %v628
    %v730 = vunpack.c.h.b16 %v628
    %v731 = vunpack.c.l.b16 %v629
    %v732 = vunpack.c.h.b16 %v629
    %v733 = vunpack.c.l.b16 %v630
    %v734 = vunpack.c.h.b16 %v630
    %v735 = vunpack.c.l.b16 %v631
    %v736 = vunpack.c.h.b16 %v631
    %v737 = vunpack.c.l.b16 %v632
    %v738 = vunpack.c.h.b16 %v632
    %v739 = vunpack.c.l.b16 %v633
    %v740 = vunpack.c.h.b16 %v633
    %v741 = vunpack.c.l.b16 %v634
    %v742 = vunpack.c.h.b16 %v634
    %v743 = vunpack.c.l.b16 %v635
    %v744 = vunpack.c.h.b16 %v635
    %v745 = vunpack.c.l.b16 %v636
    %v746 = vunpack.c.h.b16 %v636
    %v747 = vunpack.c.l.b16 %v637
    %v748 = vunpack.c.h.b16 %v637
    %v749 = vunpack.c.l.b16 %v638
    %v750 = vunpack.c.h.b16 %v638
    %v751 = vunpack.c.l.b16 %v639
    %v752 = vunpack.c.h.b16 %v639
    %v753 = vunpack.c.l.b16 %v640
    %v754 = vunpack.c.h.b16 %v640
    %v755 = vunpack.c.l.b16 %v641
    %v756 = vunpack.c.h.b16 %v641
    %v757 = vunpack.c.l.b16 %v642
    %v758 = vunpack.c.h.b16 %v642
    %v759 = vunpack.c.l.b16 %v643
    %v760 = vunpack.c.h.b16 %v643
    %v761 = vunpack.c.l.b16 %v644
    %v762 = vunpack.c.h.b16 %v644
    %v763 = vunpack.c.l.b16 %v645
    %v764 = vunpack.c.h.b16 %v645
    %v765 = vunpack.c.l.b16 %v646
    %v766 = vunpack.c.h.b16 %v646
    %v767 = vunpack.c.l.b16 %v647
    %v768 = vunpack.c.h.b16 %v647
    %v769 = vunpack.c.l.b16 %v648
    %v770 = vunpack.c.h.b16 %v648
    %v771 = vunpack.c.l.b16 %v649
    %v772 = vunpack.c.h.b16 %v649
    %v773 = vunpack.c.l.b16 %v650
    %v774 = vunpack.c.h.b16 %v650
    %v775 = vunpack.c.l.b16 %v651
    %v776 = vunpack.c.h.b16 %v651
    %v777 = vunpack.c.l.b16 %v652
    %v778 = vunpack.c.h.b16 %v652
    %v779 = vunpack.c.l.b16 %v653
    %v780 = vunpack.c.h.b16 %v653
    %v781 = vunpack.c.l.b16 %v654
    %v782 = vunpack.c.h.b16 %v654
    %v783 = vunpack.c.l.b16 %v655
    %v784 = vunpack.c.h.b16 %v655
    %v785 = vunpack.c.l.b16 %v656
    %v786 = vunpack.c.h.b16 %v656
    %v787 = vunpack.c.l.b16 %v657
    %v788 = vunpack.c.h.b16 %v657
    %v789 = vunpack.c.l.b16 %v658
    %v790 = vunpack.c.h.b16 %v658
    %v791 = vunpack.c.l.b16 %v659
    %v792 = vunpack.c.h.b16 %v659
    %v793 = vunpack.c.l.b16 %v660
    %v794 = vunpack.c.h.b16 %v660
    %v795 = vunpack.c.l.b16 %v661
    %v796 = vunpack.c.h.b16 %v661
    %v797 = vunpack.c.l.b16 %v662
    %v798 = vunpack.c.h.b16 %v662
    %v799 = vunpack.c.l.b16 %v663
    %v800 = vunpack.c.h.b16 %v663
    %v801 = vunpack.c.l.b16 %v664
    %v802 = vunpack.c.h.b16 %v664
    %v803 = vunpack.c.l.b16 %v665
    %v804 = vunpack.c.h.b16 %v665
    %v805 = vunpack.c.l.b16 %v666
    %v806 = vunpack.c.h.b16 %v666
    %v807 = vunpack.c.l.b16 %v667
    %v808 = vunpack.c.h.b16 %v667
    %v809 = vunpack.c.l.b16 %v668
    %v810 = vunpack.c.h.b16 %v668
    %v811 = vunpack.c.l.b16 %v669
    %v812 = vunpack.c.h.b16 %v669
    %v813 = vunpack.c.l.b16 %v670
    %v814 = vunpack.c.h.b16 %v670
    %v815 = vunpack.c.l.b16 %v671
    %v816 = vunpack.c.h.b16 %v671
    %v817 = vunpack.c.l.b16 %v672
    %v818 = vunpack.c.h.b16 %v672
    %v819 = vunpack.c.l.b16 %v673
    %v820 = vunpack.c.h.b16 %v673
    %v821 = vunpack.c.l.b16 %v674
    %v822 = vunpack.c.h.b16 %v674
    %v823 = vunpack.c.l.b16 %v675
    %v824 = vunpack.c.h.b16 %v675
    %v825 = vunpack.c.l.b16 %v676
    %v826 = vunpack.c.h.b16 %v676
    %v827 = vpack.c.b16 %v731, %v727
    %v828 = vpack.c.b16 %v732, %v728
    %v829 = vpack.c.b16 %v733, %v729
    %v830 = vpack.c.b16 %v734, %v730
    %v831 = vpack.c.b16 %v739, %v735
    %v832 = vpack.c.b16 %v740, %v736
    %v833 = vpack.c.b16 %v741, %v737
    %v834 = vpack.c.b16 %v742, %v738
    %v835 = vpack.c.b16 %v747, %v743
    %v836 = vpack.c.b16 %v748, %v744
    %v837 = vpack.c.b16 %v749, %v745
    %v838 = vpack.c.b16 %v750, %v746
    %v839 = vpack.c.b16 %v755, %v751
    %v840 = vpack.c.b16 %v756, %v752
    %v841 = vpack.c.b16 %v757, %v753
    %v842 = vpack.c.b16 %v758, %v754
    %v843 = vpack.c.b16 %v763, %v759
    %v844 = vpack.c.b16 %v764, %v760
    %v845 = vpack.c.b16 %v765, %v761
    %v846 = vpack.c.b16 %v766, %v762
    %v847 = vpack.c.b16 %v771, %v767
    %v848 = vpack.c.b16 %v772, %v768
    %v849 = vpack.c.b16 %v773, %v769
    %v850 = vpack.c.b16 %v774, %v770
    %v851 = vpack.c.b16 %v779, %v775
    %v852 = vpack.c.b16 %v780, %v776
    %v853 = vpack.c.b16 %v781, %v777
    %v854 = vpack.c.b16 %v782, %v778
    %v855 = vpack.c.b16 %v787, %v783
    %v856 = vpack.c.b16 %v788, %v784
    %v857 = vpack.c.b16 %v789, %v785
    %v858 = vpack.c.b16 %v790, %v786
    %v859 = vpack.c.b16 %v795, %v791
    %v860 = vpack.c.b16 %v796, %v792
    %v861 = vpack.c.b16 %v797, %v793
    %v862 = vpack.c.b16 %v798, %v794
    %v863 = vpack.c.b16 %v803, %v799
    %v864 = vpack.c.b16 %v804, %v800
    %v865 = vpack.c.b16 %v805, %v801
    %v866 = vpack.c.b16 %v806, %v802
    %v867 = vpack.c.b16 %v811, %v807
    %v868 = vpack.c.b16 %v812, %v808
    %v869 = vpack.c.b16 %v813, %v809
    %v870 = vpack.c.b16 %v814, %v810
    %v871 = vpack.c.b16 %v819, %v815
    %v872 = vpack.c.b16 %v820, %v816
    %v873 = vpack.c.b16 %v821, %v817
    %v874 = vpack.c.b16 %v822, %v818
    %v875 = vpack.c.b16 %v823, %v823
    %v876 = vpack.c.b16 %v824, %v824
    %v877 = vpack.c.b16 %v825, %v825
    %v878 = vpack.c.b16 %v826, %v826
    %v928 = vsel %vm67, %v626, 0
    %vm930 = vcmask 1041408
    %v932 = vsel %vm930, %v875, 0
    %v935 = vsel %vm930, %v876, 0
    %v938 = vsel %vm930, %v877, 0
    %v941 = vsel %vm930, %v878, 0
    %943 = vmatpush.bf16.msra.mxu0 %v855
    %944 = vmatpush.bf16.msra.mxu0 %v851
    %945 = vmatpush.bf16.msra.mxu0 %v847
    %946 = vmatpush.bf16.msra.mxu0 %v843
    %947 = vmatpush.bf16.msra.mxu0 %v839
    %948 = vmatpush.bf16.msra.mxu0 %v835
    %949 = vmatpush.bf16.msra.mxu0 %v831
    %950 = vmatpush.bf16.msra.mxu0 %v827
    %951 = vmatmul.bf16.gmra.mxu0 %v625
    %v952 = vpop.f32.mrf.mxu0
    %v953 = vadd.f32 0.0, %v952
    %v954 = vpop.f32.mrf.mxu0
    %955 = vdwg.mxu0
    %956 = vmatpush.bf16.msra.mxu0 0
    %957 = vmatpush.bf16.msra.mxu0 0
    %958 = vmatpush.bf16.msra.mxu0 0
    %959 = vmatpush.bf16.msra.mxu0 %v932
    %960 = vmatpush.bf16.msra.mxu0 %v871
    %961 = vmatpush.bf16.msra.mxu0 %v867
    %962 = vmatpush.bf16.msra.mxu0 %v863
    %963 = vmatpush.bf16.msra.mxu0 %v859
    %964 = vmatmul.bf16.gmra.mxu0 %v928
    %v965 = vpop.f32.mrf.mxu0
    %v966 = vadd.f32 %v953, %v965
    %v967 = vpop.f32.mrf.mxu0
    %968 = vdwg.mxu0
    %969 = vmatpush.bf16.msra.mxu0 %v856
    %970 = vmatpush.bf16.msra.mxu0 %v852
    %971 = vmatpush.bf16.msra.mxu0 %v848
    %972 = vmatpush.bf16.msra.mxu0 %v844
    %973 = vmatpush.bf16.msra.mxu0 %v840
    %974 = vmatpush.bf16.msra.mxu0 %v836
    %975 = vmatpush.bf16.msra.mxu0 %v832
    %976 = vmatpush.bf16.msra.mxu0 %v828
    %977 = vmatmul.bf16.gmra.mxu0 %v625
    %v978 = vpop.f32.mrf.mxu0
    %v979 = vadd.f32 0.0, %v978
    %v980 = vpop.f32.mrf.mxu0
    %981 = vdwg.mxu0
    %982 = vmatpush.bf16.msra.mxu0 0
    %983 = vmatpush.bf16.msra.mxu0 0
    %984 = vmatpush.bf16.msra.mxu0 0
    %985 = vmatpush.bf16.msra.mxu0 %v935
    %986 = vmatpush.bf16.msra.mxu0 %v872
    %987 = vmatpush.bf16.msra.mxu0 %v868
    %988 = vmatpush.bf16.msra.mxu0 %v864
    %989 = vmatpush.bf16.msra.mxu0 %v860
    %990 = vmatmul.bf16.gmra.mxu0 %v928
    %v991 = vpop.f32.mrf.mxu0
    %v992 = vadd.f32 %v979, %v991
    %v993 = vpop.f32.mrf.mxu0
    %994 = vdwg.mxu0
    %995 = vmatpush.bf16.msra.mxu0 %v857
    %996 = vmatpush.bf16.msra.mxu0 %v853
    %997 = vmatpush.bf16.msra.mxu0 %v849
    %998 = vmatpush.bf16.msra.mxu0 %v845
    %999 = vmatpush.bf16.msra.mxu0 %v841
    %1000 = vmatpush.bf16.msra.mxu0 %v837
    %1001 = vmatpush.bf16.msra.mxu0 %v833
    %1002 = vmatpush.bf16.msra.mxu0 %v829
    %1003 = vmatmul.bf16.gmra.mxu0 %v625
    %v1004 = vpop.f32.mrf.mxu0
    %v1005 = vadd.f32 0.0, %v1004
    %v1006 = vpop.f32.mrf.mxu0
    %1007 = vdwg.mxu0
    %1008 = vmatpush.bf16.msra.mxu0 0
    %1009 = vmatpush.bf16.msra.mxu0 0
    %1010 = vmatpush.bf16.msra.mxu0 0
    %1011 = vmatpush.bf16.msra.mxu0 %v938
    %1012 = vmatpush.bf16.msra.mxu0 %v873
    %1013 = vmatpush.bf16.msra.mxu0 %v869
    %1014 = vmatpush.bf16.msra.mxu0 %v865
    %1015 = vmatpush.bf16.msra.mxu0 %v861
    %1016 = vmatmul.bf16.gmra.mxu0 %v928
    %v1017 = vpop.f32.mrf.mxu0
    %v1018 = vadd.f32 %v1005, %v1017
    %v1019 = vpop.f32.mrf.mxu0
    %1020 = vdwg.mxu0
    %1021 = vmatpush.bf16.msra.mxu0 %v858
    %1022 = vmatpush.bf16.msra.mxu0 %v854
    %1023 = vmatpush.bf16.msra.mxu0 %v850
    %1024 = vmatpush.bf16.msra.mxu0 %v846
    %1025 = vmatpush.bf16.msra.mxu0 %v842
    %1026 = vmatpush.bf16.msra.mxu0 %v838
    %1027 = vmatpush.bf16.msra.mxu0 %v834
    %1028 = vmatpush.bf16.msra.mxu0 %v830
    %1029 = vmatmul.bf16.gmra.mxu0 %v625
    %v1030 = vpop.f32.mrf.mxu0
    %v1031 = vadd.f32 0.0, %v1030
    %v1032 = vpop.f32.mrf.mxu0
    %1033 = vdwg.mxu0
    %1034 = vmatpush.bf16.msra.mxu0 0
    %1035 = vmatpush.bf16.msra.mxu0 0
    %1036 = vmatpush.bf16.msra.mxu0 0
    %1037 = vmatpush.bf16.msra.mxu0 %v941
    %1038 = vmatpush.bf16.msra.mxu0 %v874
    %1039 = vmatpush.bf16.msra.mxu0 %v870
    %1040 = vmatpush.bf16.msra.mxu0 %v866
    %1041 = vmatpush.bf16.msra.mxu0 %v862
    %1042 = vmatmul.bf16.gmra.mxu0 %v928
    %v1043 = vpop.f32.mrf.mxu0
    %v1044 = vadd.f32 %v1031, %v1043
    %v1045 = vpop.f32.mrf.mxu0
    %1046 = vdwg.mxu0
    %v1097 = vunpack.c.l.b16 %v421
    %v1098 = vunpack.c.h.b16 %v421
    %v1099 = vunpack.c.l.b16 %v422
    %v1100 = vunpack.c.h.b16 %v422
    %v1101 = vunpack.c.l.b16 %v423
    %v1102 = vunpack.c.h.b16 %v423
    %v1103 = vunpack.c.l.b16 %v424
    %v1104 = vunpack.c.h.b16 %v424
    %v1105 = vunpack.c.l.b16 %v425
    %v1106 = vunpack.c.h.b16 %v425
    %v1107 = vunpack.c.l.b16 %v426
    %v1108 = vunpack.c.h.b16 %v426
    %v1109 = vunpack.c.l.b16 %v427
    %v1110 = vunpack.c.h.b16 %v427
    %v1111 = vunpack.c.l.b16 %v428
    %v1112 = vunpack.c.h.b16 %v428
    %v1113 = vunpack.c.l.b16 %v429
    %v1114 = vunpack.c.h.b16 %v429
    %v1115 = vunpack.c.l.b16 %v430
    %v1116 = vunpack.c.h.b16 %v430
    %v1117 = vunpack.c.l.b16 %v431
    %v1118 = vunpack.c.h.b16 %v431
    %v1119 = vunpack.c.l.b16 %v432
    %v1120 = vunpack.c.h.b16 %v432
    %v1121 = vunpack.c.l.b16 %v433
    %v1122 = vunpack.c.h.b16 %v433
    %v1123 = vunpack.c.l.b16 %v434
    %v1124 = vunpack.c.h.b16 %v434
    %v1125 = vunpack.c.l.b16 %v435
    %v1126 = vunpack.c.h.b16 %v435
    %v1127 = vunpack.c.l.b16 %v436
    %v1128 = vunpack.c.h.b16 %v436
    %v1129 = vunpack.c.l.b16 %v437
    %v1130 = vunpack.c.h.b16 %v437
    %v1131 = vunpack.c.l.b16 %v438
    %v1132 = vunpack.c.h.b16 %v438
    %v1133 = vunpack.c.l.b16 %v439
    %v1134 = vunpack.c.h.b16 %v439
    %v1135 = vunpack.c.l.b16 %v440
    %v1136 = vunpack.c.h.b16 %v440
    %v1137 = vunpack.c.l.b16 %v441
    %v1138 = vunpack.c.h.b16 %v441
    %v1139 = vunpack.c.l.b16 %v442
    %v1140 = vunpack.c.h.b16 %v442
    %v1141 = vunpack.c.l.b16 %v443
    %v1142 = vunpack.c.h.b16 %v443
    %v1143 = vunpack.c.l.b16 %v444
    %v1144 = vunpack.c.h.b16 %v444
    %v1145 = vunpack.c.l.b16 %v445
    %v1146 = vunpack.c.h.b16 %v445
    %v1147 = vunpack.c.l.b16 %v446
    %v1148 = vunpack.c.h.b16 %v446
    %v1149 = vunpack.c.l.b16 %v447
    %v1150 = vunpack.c.h.b16 %v447
    %v1151 = vunpack.c.l.b16 %v448
    %v1152 = vunpack.c.h.b16 %v448
    %v1153 = vunpack.c.l.b16 %v449
    %v1154 = vunpack.c.h.b16 %v449
    %v1155 = vunpack.c.l.b16 %v450
    %v1156 = vunpack.c.h.b16 %v450
    %v1157 = vunpack.c.l.b16 %v451
    %v1158 = vunpack.c.h.b16 %v451
    %v1159 = vunpack.c.l.b16 %v452
    %v1160 = vunpack.c.h.b16 %v452
    %v1161 = vunpack.c.l.b16 %v453
    %v1162 = vunpack.c.h.b16 %v453
    %v1163 = vunpack.c.l.b16 %v454
    %v1164 = vunpack.c.h.b16 %v454
    %v1165 = vunpack.c.l.b16 %v455
    %v1166 = vunpack.c.h.b16 %v455
    %v1167 = vunpack.c.l.b16 %v456
    %v1168 = vunpack.c.h.b16 %v456
    %v1169 = vunpack.c.l.b16 %v457
    %v1170 = vunpack.c.h.b16 %v457
    %v1171 = vunpack.c.l.b16 %v458
    %v1172 = vunpack.c.h.b16 %v458
    %v1173 = vunpack.c.l.b16 %v459
    %v1174 = vunpack.c.h.b16 %v459
    %v1175 = vunpack.c.l.b16 %v460
    %v1176 = vunpack.c.h.b16 %v460
    %v1177 = vunpack.c.l.b16 %v461
    %v1178 = vunpack.c.h.b16 %v461
    %v1179 = vunpack.c.l.b16 %v462
    %v1180 = vunpack.c.h.b16 %v462
    %v1181 = vunpack.c.l.b16 %v463
    %v1182 = vunpack.c.h.b16 %v463
    %v1183 = vunpack.c.l.b16 %v464
    %v1184 = vunpack.c.h.b16 %v464
    %v1185 = vunpack.c.l.b16 %v465
    %v1186 = vunpack.c.h.b16 %v465
    %v1187 = vunpack.c.l.b16 %v466
    %v1188 = vunpack.c.h.b16 %v466
    %v1189 = vunpack.c.l.b16 %v467
    %v1190 = vunpack.c.h.b16 %v467
    %v1191 = vunpack.c.l.b16 %v468
    %v1192 = vunpack.c.h.b16 %v468
    %v1193 = vunpack.c.l.b16 %v469
    %v1194 = vunpack.c.h.b16 %v469
    %v1195 = vunpack.c.l.b16 %v470
    %v1196 = vunpack.c.h.b16 %v470
    %v1197 = vpack.c.b16 %v1101, %v1097
    %v1198 = vpack.c.b16 %v1102, %v1098
    %v1199 = vpack.c.b16 %v1103, %v1099
    %v1200 = vpack.c.b16 %v1104, %v1100
    %v1201 = vpack.c.b16 %v1109, %v1105
    %v1202 = vpack.c.b16 %v1110, %v1106
    %v1203 = vpack.c.b16 %v1111, %v1107
    %v1204 = vpack.c.b16 %v1112, %v1108
    %v1205 = vpack.c.b16 %v1117, %v1113
    %v1206 = vpack.c.b16 %v1118, %v1114
    %v1207 = vpack.c.b16 %v1119, %v1115
    %v1208 = vpack.c.b16 %v1120, %v1116
    %v1209 = vpack.c.b16 %v1125, %v1121
    %v1210 = vpack.c.b16 %v1126, %v1122
    %v1211 = vpack.c.b16 %v1127, %v1123
    %v1212 = vpack.c.b16 %v1128, %v1124
    %v1213 = vpack.c.b16 %v1133, %v1129
    %v1214 = vpack.c.b16 %v1134, %v1130
    %v1215 = vpack.c.b16 %v1135, %v1131
    %v1216 = vpack.c.b16 %v1136, %v1132
    %v1217 = vpack.c.b16 %v1141, %v1137
    %v1218 = vpack.c.b16 %v1142, %v1138
    %v1219 = vpack.c.b16 %v1143, %v1139
    %v1220 = vpack.c.b16 %v1144, %v1140
    %v1221 = vpack.c.b16 %v1149, %v1145
    %v1222 = vpack.c.b16 %v1150, %v1146
    %v1223 = vpack.c.b16 %v1151, %v1147
    %v1224 = vpack.c.b16 %v1152, %v1148
    %v1225 = vpack.c.b16 %v1157, %v1153
    %v1226 = vpack.c.b16 %v1158, %v1154
    %v1227 = vpack.c.b16 %v1159, %v1155
    %v1228 = vpack.c.b16 %v1160, %v1156
    %v1229 = vpack.c.b16 %v1165, %v1161
    %v1230 = vpack.c.b16 %v1166, %v1162
    %v1231 = vpack.c.b16 %v1167, %v1163
    %v1232 = vpack.c.b16 %v1168, %v1164
    %v1233 = vpack.c.b16 %v1173, %v1169
    %v1234 = vpack.c.b16 %v1174, %v1170
    %v1235 = vpack.c.b16 %v1175, %v1171
    %v1236 = vpack.c.b16 %v1176, %v1172
    %v1237 = vpack.c.b16 %v1181, %v1177
    %v1238 = vpack.c.b16 %v1182, %v1178
    %v1239 = vpack.c.b16 %v1183, %v1179
    %v1240 = vpack.c.b16 %v1184, %v1180
    %v1241 = vpack.c.b16 %v1189, %v1185
    %v1242 = vpack.c.b16 %v1190, %v1186
    %v1243 = vpack.c.b16 %v1191, %v1187
    %v1244 = vpack.c.b16 %v1192, %v1188
    %v1245 = vpack.c.b16 %v1193, %v1193
    %v1246 = vpack.c.b16 %v1194, %v1194
    %v1247 = vpack.c.b16 %v1195, %v1195
    %v1248 = vpack.c.b16 %v1196, %v1196
    %v1298 = vsel %vm67, %v420, 0
    %v1301 = vsel %vm930, %v1245, 0
    %v1304 = vsel %vm930, %v1246, 0
    %v1307 = vsel %vm930, %v1247, 0
    %v1310 = vsel %vm930, %v1248, 0
    %1312 = vmatpush.bf16.msra.mxu0 %v1225
    %1313 = vmatpush.bf16.msra.mxu0 %v1221
    %1314 = vmatpush.bf16.msra.mxu0 %v1217
    %1315 = vmatpush.bf16.msra.mxu0 %v1213
    %1316 = vmatpush.bf16.msra.mxu0 %v1209
    %1317 = vmatpush.bf16.msra.mxu0 %v1205
    %1318 = vmatpush.bf16.msra.mxu0 %v1201
    %1319 = vmatpush.bf16.msra.mxu0 %v1197
    %1320 = vmatmul.bf16.gmra.mxu0 %v419
    %v1321 = vpop.f32.mrf.mxu0
    %v1322 = vadd.f32 %v966, %v1321
    %v1323 = vpop.f32.mrf.mxu0
    %1324 = vdwg.mxu0
    %1325 = vmatpush.bf16.msra.mxu0 0
    %1326 = vmatpush.bf16.msra.mxu0 0
    %1327 = vmatpush.bf16.msra.mxu0 0
    %1328 = vmatpush.bf16.msra.mxu0 %v1301
    %1329 = vmatpush.bf16.msra.mxu0 %v1241
    %1330 = vmatpush.bf16.msra.mxu0 %v1237
    %1331 = vmatpush.bf16.msra.mxu0 %v1233
    %1332 = vmatpush.bf16.msra.mxu0 %v1229
    %1333 = vmatmul.bf16.gmra.mxu0 %v1298
    %v1334 = vpop.f32.mrf.mxu0
    %v1335 = vadd.f32 %v1322, %v1334
    %v1336 = vpop.f32.mrf.mxu0
    %1337 = vdwg.mxu0
    %1338 = vmatpush.bf16.msra.mxu0 %v1226
    %1339 = vmatpush.bf16.msra.mxu0 %v1222
    %1340 = vmatpush.bf16.msra.mxu0 %v1218
    %1341 = vmatpush.bf16.msra.mxu0 %v1214
    %1342 = vmatpush.bf16.msra.mxu0 %v1210
    %1343 = vmatpush.bf16.msra.mxu0 %v1206
    %1344 = vmatpush.bf16.msra.mxu0 %v1202
    %1345 = vmatpush.bf16.msra.mxu0 %v1198
    %1346 = vmatmul.bf16.gmra.mxu0 %v419
    %v1347 = vpop.f32.mrf.mxu0
    %v1348 = vadd.f32 %v992, %v1347
    %v1349 = vpop.f32.mrf.mxu0
    %1350 = vdwg.mxu0
    %1351 = vmatpush.bf16.msra.mxu0 0
    %1352 = vmatpush.bf16.msra.mxu0 0
    %1353 = vmatpush.bf16.msra.mxu0 0
    %1354 = vmatpush.bf16.msra.mxu0 %v1304
    %1355 = vmatpush.bf16.msra.mxu0 %v1242
    %1356 = vmatpush.bf16.msra.mxu0 %v1238
    %1357 = vmatpush.bf16.msra.mxu0 %v1234
    %1358 = vmatpush.bf16.msra.mxu0 %v1230
    %1359 = vmatmul.bf16.gmra.mxu0 %v1298
    %v1360 = vpop.f32.mrf.mxu0
    %v1361 = vadd.f32 %v1348, %v1360
    %v1362 = vpop.f32.mrf.mxu0
    %1363 = vdwg.mxu0
    %1364 = vmatpush.bf16.msra.mxu0 %v1227
    %1365 = vmatpush.bf16.msra.mxu0 %v1223
    %1366 = vmatpush.bf16.msra.mxu0 %v1219
    %1367 = vmatpush.bf16.msra.mxu0 %v1215
    %1368 = vmatpush.bf16.msra.mxu0 %v1211
    %1369 = vmatpush.bf16.msra.mxu0 %v1207
    %1370 = vmatpush.bf16.msra.mxu0 %v1203
    %1371 = vmatpush.bf16.msra.mxu0 %v1199
    %1372 = vmatmul.bf16.gmra.mxu0 %v419
    %v1373 = vpop.f32.mrf.mxu0
    %v1374 = vadd.f32 %v1018, %v1373
    %v1375 = vpop.f32.mrf.mxu0
    %1376 = vdwg.mxu0
    %1377 = vmatpush.bf16.msra.mxu0 0
    %1378 = vmatpush.bf16.msra.mxu0 0
    %1379 = vmatpush.bf16.msra.mxu0 0
    %1380 = vmatpush.bf16.msra.mxu0 %v1307
    %1381 = vmatpush.bf16.msra.mxu0 %v1243
    %1382 = vmatpush.bf16.msra.mxu0 %v1239
    %1383 = vmatpush.bf16.msra.mxu0 %v1235
    %1384 = vmatpush.bf16.msra.mxu0 %v1231
    %1385 = vmatmul.bf16.gmra.mxu0 %v1298
    %v1386 = vpop.f32.mrf.mxu0
    %v1387 = vadd.f32 %v1374, %v1386
    %v1388 = vpop.f32.mrf.mxu0
    %1389 = vdwg.mxu0
    %1390 = vmatpush.bf16.msra.mxu0 %v1228
    %1391 = vmatpush.bf16.msra.mxu0 %v1224
    %1392 = vmatpush.bf16.msra.mxu0 %v1220
    %1393 = vmatpush.bf16.msra.mxu0 %v1216
    %1394 = vmatpush.bf16.msra.mxu0 %v1212
    %1395 = vmatpush.bf16.msra.mxu0 %v1208
    %1396 = vmatpush.bf16.msra.mxu0 %v1204
    %1397 = vmatpush.bf16.msra.mxu0 %v1200
    %1398 = vmatmul.bf16.gmra.mxu0 %v419
    %v1399 = vpop.f32.mrf.mxu0
    %v1400 = vadd.f32 %v1044, %v1399
    %v1401 = vpop.f32.mrf.mxu0
    %1402 = vdwg.mxu0
    %1403 = vmatpush.bf16.msra.mxu0 0
    %1404 = vmatpush.bf16.msra.mxu0 0
    %1405 = vmatpush.bf16.msra.mxu0 0
    %1406 = vmatpush.bf16.msra.mxu0 %v1310
    %1407 = vmatpush.bf16.msra.mxu0 %v1244
    %1408 = vmatpush.bf16.msra.mxu0 %v1240
    %1409 = vmatpush.bf16.msra.mxu0 %v1236
    %1410 = vmatpush.bf16.msra.mxu0 %v1232
    %1411 = vmatmul.bf16.gmra.mxu0 %v1298
    %v1412 = vpop.f32.mrf.mxu0
    %v1413 = vadd.f32 %v1400, %v1412
    %v1414 = vpop.f32.mrf.mxu0
    %1415 = vdwg.mxu0
    %v1416 = vstv %s221
    %v1417 = vmul.f32 %v1416, %v233
    %v1418 = vmul.f32 %v1416, %v234
    %v1419 = vstv %s222
    %v1420 = vmul.f32 %v1419, %v238
    %v1421 = vmul.f32 %v1419, %v239
    %v1422 = vadd.f32 %v1417, %v1420
    %v1423 = vadd.f32 %v1418, %v1421
    %v1424 = vstv %s223
    %v1425 = vmul.f32 %v1424, %v245
    %v1426 = vmul.f32 %v1424, %v246
    %v1427 = vadd.f32 %v1422, %v1425
    %v1428 = vadd.f32 %v1423, %v1426
    %v1429 = vstv %s224
    %v1430 = vmul.f32 %v1429, %v252
    %v1431 = vmul.f32 %v1429, %v253
    %v1432 = vadd.f32 %v1427, %v1430
    %v1433 = vadd.f32 %v1428, %v1431
    %v1434 = vstv %s225
    %v1435 = vmul.f32 %v1434, %v259
    %v1436 = vmul.f32 %v1434, %v260
    %v1437 = vadd.f32 %v1432, %v1435
    %v1438 = vadd.f32 %v1433, %v1436
    %v1439 = vstv %s226
    %v1440 = vmul.f32 %v1439, %v266
    %v1441 = vmul.f32 %v1439, %v267
    %v1442 = vadd.f32 %v1437, %v1440
    %v1443 = vadd.f32 %v1438, %v1441
    %v1444 = vstv %s227
    %v1445 = vmul.f32 %v1444, %v273
    %v1446 = vmul.f32 %v1444, %v274
    %v1447 = vadd.f32 %v1442, %v1445
    %v1448 = vadd.f32 %v1443, %v1446
    %v1449 = vstv %s228
    %v1450 = vmul.f32 %v1449, %v280
    %v1451 = vmul.f32 %v1449, %v281
    %v1452 = vadd.f32 %v1447, %v1450
    %v1453 = vadd.f32 %v1448, %v1451
    %v1454 = vstv %s229
    %v1455 = vmul.f32 %v1454, %v287
    %v1456 = vmul.f32 %v1454, %v288
    %v1457 = vadd.f32 %v1452, %v1455
    %v1458 = vadd.f32 %v1453, %v1456
    %v1459 = vmul.f32 %v1416, %v238
    %v1460 = vmul.f32 %v1416, %v239
    %v1461 = vmul.f32 %v1419, %v245
    %v1462 = vmul.f32 %v1419, %v246
    %v1463 = vadd.f32 %v1459, %v1461
    %v1464 = vadd.f32 %v1460, %v1462
    %v1465 = vmul.f32 %v1424, %v300
    %v1466 = vmul.f32 %v1424, %v301
    %v1467 = vadd.f32 %v1463, %v1465
    %v1468 = vadd.f32 %v1464, %v1466
    %v1469 = vmul.f32 %v1429, %v259
    %v1470 = vmul.f32 %v1429, %v260
    %v1471 = vadd.f32 %v1467, %v1469
    %v1472 = vadd.f32 %v1468, %v1470
    %v1473 = vmul.f32 %v1434, %v266
    %v1474 = vmul.f32 %v1434, %v267
    %v1475 = vadd.f32 %v1471, %v1473
    %v1476 = vadd.f32 %v1472, %v1474
    %v1477 = vmul.f32 %v1439, %v314
    %v1478 = vmul.f32 %v1439, %v315
    %v1479 = vadd.f32 %v1475, %v1477
    %v1480 = vadd.f32 %v1476, %v1478
    %v1481 = vmul.f32 %v1444, %v280
    %v1482 = vmul.f32 %v1444, %v281
    %v1483 = vadd.f32 %v1479, %v1481
    %v1484 = vadd.f32 %v1480, %v1482
    %v1485 = vmul.f32 %v1449, %v287
    %v1486 = vmul.f32 %v1449, %v288
    %v1487 = vadd.f32 %v1483, %v1485
    %v1488 = vadd.f32 %v1484, %v1486
    %v1489 = vmul.f32 %v1454, %v328
    %v1490 = vmul.f32 %v1454, %v329
    %v1491 = vadd.f32 %v1487, %v1489
    %v1492 = vadd.f32 %v1488, %v1490
    %v1493 = vmax.f32 %v1457, %v1491
    %v1494 = vmax.f32 %v1458, %v1492
    %v1495 = vmul.f32 %v1416, %v252
    %v1496 = vmul.f32 %v1416, %v253
    %v1497 = vmul.f32 %v1419, %v259
    %v1498 = vmul.f32 %v1419, %v260
    %v1499 = vadd.f32 %v1495, %v1497
    %v1500 = vadd.f32 %v1496, %v1498
    %v1501 = vmul.f32 %v1424, %v266
    %v1502 = vmul.f32 %v1424, %v267
    %v1503 = vadd.f32 %v1499, %v1501
    %v1504 = vadd.f32 %v1500, %v1502
    %v1505 = vmul.f32 %v1429, %v273
    %v1506 = vmul.f32 %v1429, %v274
    %v1507 = vadd.f32 %v1503, %v1505
    %v1508 = vadd.f32 %v1504, %v1506
    %v1509 = vmul.f32 %v1434, %v280
    %v1510 = vmul.f32 %v1434, %v281
    %v1511 = vadd.f32 %v1507, %v1509
    %v1512 = vadd.f32 %v1508, %v1510
    %v1513 = vmul.f32 %v1439, %v287
    %v1514 = vmul.f32 %v1439, %v288
    %v1515 = vadd.f32 %v1511, %v1513
    %v1516 = vadd.f32 %v1512, %v1514
    %v1517 = vmul.f32 %v1444, %v358
    %v1518 = vmul.f32 %v1444, %v359
    %v1519 = vadd.f32 %v1515, %v1517
    %v1520 = vadd.f32 %v1516, %v1518
    %v1521 = vmul.f32 %v1449, %v364
    %v1522 = vmul.f32 %v1449, %v365
    %v1523 = vadd.f32 %v1519, %v1521
    %v1524 = vadd.f32 %v1520, %v1522
    %v1525 = vmul.f32 %v1454, %v370
    %v1526 = vmul.f32 %v1454, %v371
    %v1527 = vadd.f32 %v1523, %v1525
    %v1528 = vadd.f32 %v1524, %v1526
    %v1529 = vmax.f32 %v1493, %v1527
    %v1530 = vmax.f32 %v1494, %v1528
    %v1531 = vmul.f32 %v1416, %v259
    %v1532 = vmul.f32 %v1416, %v260
    %v1533 = vmul.f32 %v1419, %v266
    %v1534 = vmul.f32 %v1419, %v267
    %v1535 = vadd.f32 %v1531, %v1533
    %v1536 = vadd.f32 %v1532, %v1534
    %v1537 = vmul.f32 %v1424, %v314
    %v1538 = vmul.f32 %v1424, %v315
    %v1539 = vadd.f32 %v1535, %v1537
    %v1540 = vadd.f32 %v1536, %v1538
    %v1541 = vmul.f32 %v1429, %v280
    %v1542 = vmul.f32 %v1429, %v281
    %v1543 = vadd.f32 %v1539, %v1541
    %v1544 = vadd.f32 %v1540, %v1542
    %v1545 = vmul.f32 %v1434, %v287
    %v1546 = vmul.f32 %v1434, %v288
    %v1547 = vadd.f32 %v1543, %v1545
    %v1548 = vadd.f32 %v1544, %v1546
    %v1549 = vmul.f32 %v1439, %v328
    %v1550 = vmul.f32 %v1439, %v329
    %v1551 = vadd.f32 %v1547, %v1549
    %v1552 = vadd.f32 %v1548, %v1550
    %v1553 = vmul.f32 %v1444, %v364
    %v1554 = vmul.f32 %v1444, %v365
    %v1555 = vadd.f32 %v1551, %v1553
    %v1556 = vadd.f32 %v1552, %v1554
    %v1557 = vmul.f32 %v1449, %v370
    %v1558 = vmul.f32 %v1449, %v371
    %v1559 = vadd.f32 %v1555, %v1557
    %v1560 = vadd.f32 %v1556, %v1558
    %v1561 = vmul.f32 %v1454, %v408
    %v1562 = vmul.f32 %v1454, %v409
    %v1563 = vadd.f32 %v1559, %v1561
    %v1564 = vadd.f32 %v1560, %v1562
    %v1565 = vmax.f32 %v1529, %v1563
    %v1566 = vmax.f32 %v1530, %v1564
    %v1567 = vstv %s232
    %v1568 = vadd.f32 %v1565, %v1567
    %v1569 = vadd.f32 %v1566, %v1567
    %v1570 = vpack.c.bf16 %v1568, %v1568
    %v1571 = vpack.c.bf16 %v1569, %v1569
    %v1572 = vld [vmem:[%s5] sm:$0xff]
    %v1573 = vld [vmem:[%s5 + $0x8] sm:$0xff]
    %v1574 = vld [vmem:[%s5 + $0x10] sm:$0xff]
    %v1575 = vld [vmem:[%s5 + $0x18] sm:$0xff]
    %v1576 = vld [vmem:[%s5 + $0x20] sm:$0xff]
    %v1577 = vld [vmem:[%s5 + $0x28] sm:$0xff]
    %v1578 = vld [vmem:[%s5 + $0x30] sm:$0xff]
    %v1579 = vld [vmem:[%s5 + $0x38] sm:$0xff]
    %v1580 = vld [vmem:[%s5 + $0x40] sm:$0xff]
    %v1581 = vld [vmem:[%s5 + $0x48] sm:$0xff]
    %v1582 = vld [vmem:[%s5 + $0x50] sm:$0xff]
    %v1583 = vld [vmem:[%s5 + $0x58] sm:$0xff]
    %v1584 = vld [vmem:[%s5 + $0x60] sm:$0xff]
    %v1585 = vld [vmem:[%s5 + $0x68] sm:$0xff]
    %v1586 = vld [vmem:[%s5 + $0x70] sm:$0xff]
    %v1587 = vld [vmem:[%s5 + $0x78] sm:$0xff]
    %v1588 = vld [vmem:[%s5 + $0x80] sm:$0xff]
    %v1589 = vld [vmem:[%s5 + $0x88] sm:$0xff]
    %v1590 = vld [vmem:[%s5 + $0x90] sm:$0xff]
    %v1591 = vld [vmem:[%s5 + $0x98] sm:$0xff]
    %v1592 = vld [vmem:[%s5 + $0xa0] sm:$0xff]
    %v1593 = vld [vmem:[%s5 + $0xa8] sm:$0xff]
    %v1594 = vld [vmem:[%s5 + $0xb0] sm:$0xff]
    %v1595 = vld [vmem:[%s5 + $0xb8] sm:$0xff]
    %v1596 = vld [vmem:[%s5 + $0xc0] sm:$0xff]
    %v1597 = vld [vmem:[%s5 + $0xc8] sm:$0xff]
    %v1598 = vld [vmem:[%s5 + $0xd0] sm:$0xff]
    %v1599 = vld [vmem:[%s5 + $0xd8] sm:$0xff]
    %v1600 = vld [vmem:[%s5 + $0xe0] sm:$0xff]
    %v1601 = vld [vmem:[%s5 + $0xe8] sm:$0xff]
    %v1602 = vld [vmem:[%s5 + $0xf0] sm:$0xff]
    %v1603 = vld [vmem:[%s5 + $0xf8] sm:$0xff]
    %v1604 = vld [vmem:[%s5 + $0x100] sm:$0xff]
    %v1605 = vld [vmem:[%s5 + $0x108] sm:$0xff]
    %v1606 = vld [vmem:[%s5 + $0x110] sm:$0xff]
    %v1607 = vld [vmem:[%s5 + $0x118] sm:$0xff]
    %v1608 = vld [vmem:[%s5 + $0x120] sm:$0xff]
    %v1609 = vld [vmem:[%s5 + $0x128] sm:$0xff]
    %v1610 = vld [vmem:[%s5 + $0x130] sm:$0xff]
    %v1611 = vld [vmem:[%s5 + $0x138] sm:$0xff]
    %v1612 = vld [vmem:[%s5 + $0x140] sm:$0xff]
    %v1613 = vld [vmem:[%s5 + $0x148] sm:$0xff]
    %v1614 = vld [vmem:[%s5 + $0x150] sm:$0xff]
    %v1615 = vld [vmem:[%s5 + $0x158] sm:$0xff]
    %v1616 = vld [vmem:[%s5 + $0x160] sm:$0xff]
    %v1617 = vld [vmem:[%s5 + $0x168] sm:$0xff]
    %v1618 = vld [vmem:[%s5 + $0x170] sm:$0xff]
    %v1619 = vld [vmem:[%s5 + $0x178] sm:$0xff]
    %v1620 = vld [vmem:[%s5 + $0x180] sm:$0x33]
    %v1621 = vld [vmem:[%s5 + $0x188] sm:$0x33]
    %v1672 = vunpack.c.l.b16 %v1572
    %v1673 = vunpack.c.h.b16 %v1572
    %v1674 = vunpack.c.l.b16 %v1573
    %v1675 = vunpack.c.h.b16 %v1573
    %v1676 = vunpack.c.l.b16 %v1574
    %v1677 = vunpack.c.h.b16 %v1574
    %v1678 = vunpack.c.l.b16 %v1575
    %v1679 = vunpack.c.h.b16 %v1575
    %v1680 = vunpack.c.l.b16 %v1576
    %v1681 = vunpack.c.h.b16 %v1576
    %v1682 = vunpack.c.l.b16 %v1577
    %v1683 = vunpack.c.h.b16 %v1577
    %v1684 = vunpack.c.l.b16 %v1578
    %v1685 = vunpack.c.h.b16 %v1578
    %v1686 = vunpack.c.l.b16 %v1579
    %v1687 = vunpack.c.h.b16 %v1579
    %v1688 = vunpack.c.l.b16 %v1580
    %v1689 = vunpack.c.h.b16 %v1580
    %v1690 = vunpack.c.l.b16 %v1581
    %v1691 = vunpack.c.h.b16 %v1581
    %v1692 = vunpack.c.l.b16 %v1582
    %v1693 = vunpack.c.h.b16 %v1582
    %v1694 = vunpack.c.l.b16 %v1583
    %v1695 = vunpack.c.h.b16 %v1583
    %v1696 = vunpack.c.l.b16 %v1584
    %v1697 = vunpack.c.h.b16 %v1584
    %v1698 = vunpack.c.l.b16 %v1585
    %v1699 = vunpack.c.h.b16 %v1585
    %v1700 = vunpack.c.l.b16 %v1586
    %v1701 = vunpack.c.h.b16 %v1586
    %v1702 = vunpack.c.l.b16 %v1587
    %v1703 = vunpack.c.h.b16 %v1587
    %v1704 = vunpack.c.l.b16 %v1588
    %v1705 = vunpack.c.h.b16 %v1588
    %v1706 = vunpack.c.l.b16 %v1589
    %v1707 = vunpack.c.h.b16 %v1589
    %v1708 = vunpack.c.l.b16 %v1590
    %v1709 = vunpack.c.h.b16 %v1590
    %v1710 = vunpack.c.l.b16 %v1591
    %v1711 = vunpack.c.h.b16 %v1591
    %v1712 = vunpack.c.l.b16 %v1592
    %v1713 = vunpack.c.h.b16 %v1592
    %v1714 = vunpack.c.l.b16 %v1593
    %v1715 = vunpack.c.h.b16 %v1593
    %v1716 = vunpack.c.l.b16 %v1594
    %v1717 = vunpack.c.h.b16 %v1594
    %v1718 = vunpack.c.l.b16 %v1595
    %v1719 = vunpack.c.h.b16 %v1595
    %v1720 = vunpack.c.l.b16 %v1596
    %v1721 = vunpack.c.h.b16 %v1596
    %v1722 = vunpack.c.l.b16 %v1597
    %v1723 = vunpack.c.h.b16 %v1597
    %v1724 = vunpack.c.l.b16 %v1598
    %v1725 = vunpack.c.h.b16 %v1598
    %v1726 = vunpack.c.l.b16 %v1599
    %v1727 = vunpack.c.h.b16 %v1599
    %v1728 = vunpack.c.l.b16 %v1600
    %v1729 = vunpack.c.h.b16 %v1600
    %v1730 = vunpack.c.l.b16 %v1601
    %v1731 = vunpack.c.h.b16 %v1601
    %v1732 = vunpack.c.l.b16 %v1602
    %v1733 = vunpack.c.h.b16 %v1602
    %v1734 = vunpack.c.l.b16 %v1603
    %v1735 = vunpack.c.h.b16 %v1603
    %v1736 = vunpack.c.l.b16 %v1604
    %v1737 = vunpack.c.h.b16 %v1604
    %v1738 = vunpack.c.l.b16 %v1605
    %v1739 = vunpack.c.h.b16 %v1605
    %v1740 = vunpack.c.l.b16 %v1606
    %v1741 = vunpack.c.h.b16 %v1606
    %v1742 = vunpack.c.l.b16 %v1607
    %v1743 = vunpack.c.h.b16 %v1607
    %v1744 = vunpack.c.l.b16 %v1608
    %v1745 = vunpack.c.h.b16 %v1608
    %v1746 = vunpack.c.l.b16 %v1609
    %v1747 = vunpack.c.h.b16 %v1609
    %v1748 = vunpack.c.l.b16 %v1610
    %v1749 = vunpack.c.h.b16 %v1610
    %v1750 = vunpack.c.l.b16 %v1611
    %v1751 = vunpack.c.h.b16 %v1611
    %v1752 = vunpack.c.l.b16 %v1612
    %v1753 = vunpack.c.h.b16 %v1612
    %v1754 = vunpack.c.l.b16 %v1613
    %v1755 = vunpack.c.h.b16 %v1613
    %v1756 = vunpack.c.l.b16 %v1614
    %v1757 = vunpack.c.h.b16 %v1614
    %v1758 = vunpack.c.l.b16 %v1615
    %v1759 = vunpack.c.h.b16 %v1615
    %v1760 = vunpack.c.l.b16 %v1616
    %v1761 = vunpack.c.h.b16 %v1616
    %v1762 = vunpack.c.l.b16 %v1617
    %v1763 = vunpack.c.h.b16 %v1617
    %v1764 = vunpack.c.l.b16 %v1618
    %v1765 = vunpack.c.h.b16 %v1618
    %v1766 = vunpack.c.l.b16 %v1619
    %v1767 = vunpack.c.h.b16 %v1619
    %v1768 = vunpack.c.l.b16 %v1620
    %v1769 = vunpack.c.h.b16 %v1620
    %v1770 = vunpack.c.l.b16 %v1621
    %v1771 = vunpack.c.h.b16 %v1621
    %v1772 = vpack.c.b16 %v1676, %v1672
    %v1773 = vpack.c.b16 %v1677, %v1673
    %v1774 = vpack.c.b16 %v1678, %v1674
    %v1775 = vpack.c.b16 %v1679, %v1675
    %v1776 = vpack.c.b16 %v1684, %v1680
    %v1777 = vpack.c.b16 %v1685, %v1681
    %v1778 = vpack.c.b16 %v1686, %v1682
    %v1779 = vpack.c.b16 %v1687, %v1683
    %v1780 = vpack.c.b16 %v1692, %v1688
    %v1781 = vpack.c.b16 %v1693, %v1689
    %v1782 = vpack.c.b16 %v1694, %v1690
    %v1783 = vpack.c.b16 %v1695, %v1691
    %v1784 = vpack.c.b16 %v1700, %v1696
    %v1785 = vpack.c.b16 %v1701, %v1697
    %v1786 = vpack.c.b16 %v1702, %v1698
    %v1787 = vpack.c.b16 %v1703, %v1699
    %v1788 = vpack.c.b16 %v1708, %v1704
    %v1789 = vpack.c.b16 %v1709, %v1705
    %v1790 = vpack.c.b16 %v1710, %v1706
    %v1791 = vpack.c.b16 %v1711, %v1707
    %v1792 = vpack.c.b16 %v1716, %v1712
    %v1793 = vpack.c.b16 %v1717, %v1713
    %v1794 = vpack.c.b16 %v1718, %v1714
    %v1795 = vpack.c.b16 %v1719, %v1715
    %v1796 = vpack.c.b16 %v1724, %v1720
    %v1797 = vpack.c.b16 %v1725, %v1721
    %v1798 = vpack.c.b16 %v1726, %v1722
    %v1799 = vpack.c.b16 %v1727, %v1723
    %v1800 = vpack.c.b16 %v1732, %v1728
    %v1801 = vpack.c.b16 %v1733, %v1729
    %v1802 = vpack.c.b16 %v1734, %v1730
    %v1803 = vpack.c.b16 %v1735, %v1731
    %v1804 = vpack.c.b16 %v1740, %v1736
    %v1805 = vpack.c.b16 %v1741, %v1737
    %v1806 = vpack.c.b16 %v1742, %v1738
    %v1807 = vpack.c.b16 %v1743, %v1739
    %v1808 = vpack.c.b16 %v1748, %v1744
    %v1809 = vpack.c.b16 %v1749, %v1745
    %v1810 = vpack.c.b16 %v1750, %v1746
    %v1811 = vpack.c.b16 %v1751, %v1747
    %v1812 = vpack.c.b16 %v1756, %v1752
    %v1813 = vpack.c.b16 %v1757, %v1753
    %v1814 = vpack.c.b16 %v1758, %v1754
    %v1815 = vpack.c.b16 %v1759, %v1755
    %v1816 = vpack.c.b16 %v1764, %v1760
    %v1817 = vpack.c.b16 %v1765, %v1761
    %v1818 = vpack.c.b16 %v1766, %v1762
    %v1819 = vpack.c.b16 %v1767, %v1763
    %v1820 = vpack.c.b16 %v1768, %v1768
    %v1821 = vpack.c.b16 %v1769, %v1769
    %v1822 = vpack.c.b16 %v1770, %v1770
    %v1823 = vpack.c.b16 %v1771, %v1771
    %v1873 = vsel %vm67, %v1571, 0
    %v1876 = vsel %vm930, %v1820, 0
    %v1879 = vsel %vm930, %v1821, 0
    %v1882 = vsel %vm930, %v1822, 0
    %v1885 = vsel %vm930, %v1823, 0
    %1887 = vmatpush.bf16.msra.mxu0 %v1800
    %1888 = vmatpush.bf16.msra.mxu0 %v1796
    %1889 = vmatpush.bf16.msra.mxu0 %v1792
    %1890 = vmatpush.bf16.msra.mxu0 %v1788
    %1891 = vmatpush.bf16.msra.mxu0 %v1784
    %1892 = vmatpush.bf16.msra.mxu0 %v1780
    %1893 = vmatpush.bf16.msra.mxu0 %v1776
    %1894 = vmatpush.bf16.msra.mxu0 %v1772
    %1895 = vmatmul.bf16.gmra.mxu0 %v1570
    %v1896 = vpop.f32.mrf.mxu0
    %v1897 = vadd.f32 0.0, %v1896
    %v1898 = vpop.f32.mrf.mxu0
    %1899 = vdwg.mxu0
    %1900 = vmatpush.bf16.msra.mxu0 0
    %1901 = vmatpush.bf16.msra.mxu0 0
    %1902 = vmatpush.bf16.msra.mxu0 0
    %1903 = vmatpush.bf16.msra.mxu0 %v1876
    %1904 = vmatpush.bf16.msra.mxu0 %v1816
    %1905 = vmatpush.bf16.msra.mxu0 %v1812
    %1906 = vmatpush.bf16.msra.mxu0 %v1808
    %1907 = vmatpush.bf16.msra.mxu0 %v1804
    %1908 = vmatmul.bf16.gmra.mxu0 %v1873
    %v1909 = vpop.f32.mrf.mxu0
    %v1910 = vadd.f32 %v1897, %v1909
    %v1911 = vpop.f32.mrf.mxu0
    %1912 = vdwg.mxu0
    %1913 = vmatpush.bf16.msra.mxu0 %v1801
    %1914 = vmatpush.bf16.msra.mxu0 %v1797
    %1915 = vmatpush.bf16.msra.mxu0 %v1793
    %1916 = vmatpush.bf16.msra.mxu0 %v1789
    %1917 = vmatpush.bf16.msra.mxu0 %v1785
    %1918 = vmatpush.bf16.msra.mxu0 %v1781
    %1919 = vmatpush.bf16.msra.mxu0 %v1777
    %1920 = vmatpush.bf16.msra.mxu0 %v1773
    %1921 = vmatmul.bf16.gmra.mxu0 %v1570
    %v1922 = vpop.f32.mrf.mxu0
    %v1923 = vadd.f32 0.0, %v1922
    %v1924 = vpop.f32.mrf.mxu0
    %1925 = vdwg.mxu0
    %1926 = vmatpush.bf16.msra.mxu0 0
    %1927 = vmatpush.bf16.msra.mxu0 0
    %1928 = vmatpush.bf16.msra.mxu0 0
    %1929 = vmatpush.bf16.msra.mxu0 %v1879
    %1930 = vmatpush.bf16.msra.mxu0 %v1817
    %1931 = vmatpush.bf16.msra.mxu0 %v1813
    %1932 = vmatpush.bf16.msra.mxu0 %v1809
    %1933 = vmatpush.bf16.msra.mxu0 %v1805
    %1934 = vmatmul.bf16.gmra.mxu0 %v1873
    %v1935 = vpop.f32.mrf.mxu0
    %v1936 = vadd.f32 %v1923, %v1935
    %v1937 = vpop.f32.mrf.mxu0
    %1938 = vdwg.mxu0
    %1939 = vmatpush.bf16.msra.mxu0 %v1802
    %1940 = vmatpush.bf16.msra.mxu0 %v1798
    %1941 = vmatpush.bf16.msra.mxu0 %v1794
    %1942 = vmatpush.bf16.msra.mxu0 %v1790
    %1943 = vmatpush.bf16.msra.mxu0 %v1786
    %1944 = vmatpush.bf16.msra.mxu0 %v1782
    %1945 = vmatpush.bf16.msra.mxu0 %v1778
    %1946 = vmatpush.bf16.msra.mxu0 %v1774
    %1947 = vmatmul.bf16.gmra.mxu0 %v1570
    %v1948 = vpop.f32.mrf.mxu0
    %v1949 = vadd.f32 0.0, %v1948
    %v1950 = vpop.f32.mrf.mxu0
    %1951 = vdwg.mxu0
    %1952 = vmatpush.bf16.msra.mxu0 0
    %1953 = vmatpush.bf16.msra.mxu0 0
    %1954 = vmatpush.bf16.msra.mxu0 0
    %1955 = vmatpush.bf16.msra.mxu0 %v1882
    %1956 = vmatpush.bf16.msra.mxu0 %v1818
    %1957 = vmatpush.bf16.msra.mxu0 %v1814
    %1958 = vmatpush.bf16.msra.mxu0 %v1810
    %1959 = vmatpush.bf16.msra.mxu0 %v1806
    %1960 = vmatmul.bf16.gmra.mxu0 %v1873
    %v1961 = vpop.f32.mrf.mxu0
    %v1962 = vadd.f32 %v1949, %v1961
    %v1963 = vpop.f32.mrf.mxu0
    %1964 = vdwg.mxu0
    %1965 = vmatpush.bf16.msra.mxu0 %v1803
    %1966 = vmatpush.bf16.msra.mxu0 %v1799
    %1967 = vmatpush.bf16.msra.mxu0 %v1795
    %1968 = vmatpush.bf16.msra.mxu0 %v1791
    %1969 = vmatpush.bf16.msra.mxu0 %v1787
    %1970 = vmatpush.bf16.msra.mxu0 %v1783
    %1971 = vmatpush.bf16.msra.mxu0 %v1779
    %1972 = vmatpush.bf16.msra.mxu0 %v1775
    %1973 = vmatmul.bf16.gmra.mxu0 %v1570
    %v1974 = vpop.f32.mrf.mxu0
    %v1975 = vadd.f32 0.0, %v1974
    %v1976 = vpop.f32.mrf.mxu0
    %1977 = vdwg.mxu0
    %1978 = vmatpush.bf16.msra.mxu0 0
    %1979 = vmatpush.bf16.msra.mxu0 0
    %1980 = vmatpush.bf16.msra.mxu0 0
    %1981 = vmatpush.bf16.msra.mxu0 %v1885
    %1982 = vmatpush.bf16.msra.mxu0 %v1819
    %1983 = vmatpush.bf16.msra.mxu0 %v1815
    %1984 = vmatpush.bf16.msra.mxu0 %v1811
    %1985 = vmatpush.bf16.msra.mxu0 %v1807
    %1986 = vmatmul.bf16.gmra.mxu0 %v1873
    %v1987 = vpop.f32.mrf.mxu0
    %v1988 = vadd.f32 %v1975, %v1987
    %v1989 = vpop.f32.mrf.mxu0
    %1990 = vdwg.mxu0
    %v1991 = vadd.f32 %v1335, %v1910
    %v1992 = vadd.f32 %v1361, %v1936
    %v1993 = vadd.f32 %v1387, %v1962
    %v1994 = vadd.f32 %v1413, %v1988
    %v1995 = vld [vmem:[%s6] sm:$0xf]
    %v1997 = vperm.slane %v1995, 0
    %v1998 = vperm.slane %v1995, 1
    %v1999 = vperm.slane %v1995, 2
    %v2000 = vperm.slane %v1995, 3
    %v2005 = vadd.f32 %v1991, %v1997
    %v2006 = vadd.f32 %v1992, %v1998
    %v2007 = vadd.f32 %v1993, %v1999
    %v2008 = vadd.f32 %v1994, %v2000
    %v2009 = vmax.f32 %v2005, 0.0
    %v2010 = vmax.f32 %v2006, 0.0
    %v2011 = vmax.f32 %v2007, 0.0
    %v2012 = vmax.f32 %v2008, 0.0
    %v2013 = vpack.c.bf16 %v2009, %v2009
    %v2014 = vpack.c.bf16 %v2010, %v2010
    %v2015 = vpack.c.bf16 %v2011, %v2011
    %v2016 = vpack.c.bf16 %v2012, %v2012
    %v2017 = vld [vmem:[%s7] sm:$0xff]
    %v2018 = vld [vmem:[%s7 + $0x8] sm:$0xff]
    %v2019 = vld [vmem:[%s7 + $0x10] sm:$0xff]
    %v2020 = vld [vmem:[%s7 + $0x18] sm:$0xff]
    %v2021 = vld [vmem:[%s7 + $0x20] sm:$0xff]
    %v2022 = vld [vmem:[%s7 + $0x28] sm:$0xff]
    %v2023 = vld [vmem:[%s7 + $0x30] sm:$0xff]
    %v2024 = vld [vmem:[%s7 + $0x38] sm:$0xff]
    %v2025 = vld [vmem:[%s7 + $0x40] sm:$0xff]
    %v2026 = vld [vmem:[%s7 + $0x48] sm:$0xff]
    %v2027 = vld [vmem:[%s7 + $0x50] sm:$0xff]
    %v2028 = vld [vmem:[%s7 + $0x58] sm:$0xff]
    %v2029 = vld [vmem:[%s7 + $0x60] sm:$0xff]
    %v2030 = vld [vmem:[%s7 + $0x68] sm:$0xff]
    %v2031 = vld [vmem:[%s7 + $0x70] sm:$0xff]
    %v2032 = vld [vmem:[%s7 + $0x78] sm:$0xff]
    %v2033 = vld [vmem:[%s7 + $0x80] sm:$0xff]
    %v2034 = vld [vmem:[%s7 + $0x88] sm:$0xff]
    %v2035 = vld [vmem:[%s7 + $0x90] sm:$0xff]
    %v2036 = vld [vmem:[%s7 + $0x98] sm:$0xff]
    %v2037 = vld [vmem:[%s7 + $0xa0] sm:$0xff]
    %v2038 = vld [vmem:[%s7 + $0xa8] sm:$0xff]
    %v2039 = vld [vmem:[%s7 + $0xb0] sm:$0xff]
    %v2040 = vld [vmem:[%s7 + $0xb8] sm:$0xff]
    %v2041 = vld [vmem:[%s7 + $0xc0] sm:$0xff]
    %v2042 = vld [vmem:[%s7 + $0xc8] sm:$0xff]
    %v2043 = vld [vmem:[%s7 + $0xd0] sm:$0xff]
    %v2044 = vld [vmem:[%s7 + $0xd8] sm:$0xff]
    %v2045 = vld [vmem:[%s7 + $0xe0] sm:$0xff]
    %v2046 = vld [vmem:[%s7 + $0xe8] sm:$0xff]
    %v2047 = vld [vmem:[%s7 + $0xf0] sm:$0xff]
    %v2048 = vld [vmem:[%s7 + $0xf8] sm:$0xff]
    %v2049 = vld [vmem:[%s7 + $0x100] sm:$0xff]
    %v2050 = vld [vmem:[%s7 + $0x108] sm:$0xff]
    %v2051 = vld [vmem:[%s7 + $0x110] sm:$0xff]
    %v2052 = vld [vmem:[%s7 + $0x118] sm:$0xff]
    %v2053 = vld [vmem:[%s7 + $0x120] sm:$0xff]
    %v2054 = vld [vmem:[%s7 + $0x128] sm:$0xff]
    %v2055 = vld [vmem:[%s7 + $0x130] sm:$0xff]
    %v2056 = vld [vmem:[%s7 + $0x138] sm:$0xff]
    %v2057 = vld [vmem:[%s7 + $0x140] sm:$0xff]
    %v2058 = vld [vmem:[%s7 + $0x148] sm:$0xff]
    %v2059 = vld [vmem:[%s7 + $0x150] sm:$0xff]
    %v2060 = vld [vmem:[%s7 + $0x158] sm:$0xff]
    %v2061 = vld [vmem:[%s7 + $0x160] sm:$0xff]
    %v2062 = vld [vmem:[%s7 + $0x168] sm:$0xff]
    %v2063 = vld [vmem:[%s7 + $0x170] sm:$0xff]
    %v2064 = vld [vmem:[%s7 + $0x178] sm:$0xff]
    %v2065 = vld [vmem:[%s7 + $0x180] sm:$0xff]
    %v2066 = vld [vmem:[%s7 + $0x188] sm:$0xff]
    %v2067 = vld [vmem:[%s7 + $0x190] sm:$0xff]
    %v2068 = vld [vmem:[%s7 + $0x198] sm:$0xff]
    %v2069 = vld [vmem:[%s7 + $0x1a0] sm:$0xff]
    %v2070 = vld [vmem:[%s7 + $0x1a8] sm:$0xff]
    %v2071 = vld [vmem:[%s7 + $0x1b0] sm:$0xff]
    %v2072 = vld [vmem:[%s7 + $0x1b8] sm:$0xff]
    %v2073 = vld [vmem:[%s7 + $0x1c0] sm:$0xff]
    %v2074 = vld [vmem:[%s7 + $0x1c8] sm:$0xff]
    %v2075 = vld [vmem:[%s7 + $0x1d0] sm:$0xff]
    %v2076 = vld [vmem:[%s7 + $0x1d8] sm:$0xff]
    %v2077 = vld [vmem:[%s7 + $0x1e0] sm:$0xff]
    %v2078 = vld [vmem:[%s7 + $0x1e8] sm:$0xff]
    %v2079 = vld [vmem:[%s7 + $0x1f0] sm:$0xff]
    %v2080 = vld [vmem:[%s7 + $0x1f8] sm:$0xff]
    %v2081 = vld [vmem:[%s7 + $0x200] sm:$0xff]
    %v2082 = vld [vmem:[%s7 + $0x208] sm:$0xff]
    %v2083 = vld [vmem:[%s7 + $0x210] sm:$0xff]
    %v2084 = vld [vmem:[%s7 + $0x218] sm:$0xff]
    %v2085 = vld [vmem:[%s7 + $0x220] sm:$0xff]
    %v2086 = vld [vmem:[%s7 + $0x228] sm:$0xff]
    %v2087 = vld [vmem:[%s7 + $0x230] sm:$0xff]
    %v2088 = vld [vmem:[%s7 + $0x238] sm:$0xff]
    %v2089 = vld [vmem:[%s7 + $0x240] sm:$0xff]
    %v2090 = vld [vmem:[%s7 + $0x248] sm:$0xff]
    %v2091 = vld [vmem:[%s7 + $0x250] sm:$0xff]
    %v2092 = vld [vmem:[%s7 + $0x258] sm:$0xff]
    %v2093 = vld [vmem:[%s7 + $0x260] sm:$0xff]
    %v2094 = vld [vmem:[%s7 + $0x268] sm:$0xff]
    %v2095 = vld [vmem:[%s7 + $0x270] sm:$0xff]
    %v2096 = vld [vmem:[%s7 + $0x278] sm:$0xff]
    %v2097 = vld [vmem:[%s7 + $0x280] sm:$0xff]
    %v2098 = vld [vmem:[%s7 + $0x288] sm:$0xff]
    %v2099 = vld [vmem:[%s7 + $0x290] sm:$0xff]
    %v2100 = vld [vmem:[%s7 + $0x298] sm:$0xff]
    %v2101 = vld [vmem:[%s7 + $0x2a0] sm:$0xff]
    %v2102 = vld [vmem:[%s7 + $0x2a8] sm:$0xff]
    %v2103 = vld [vmem:[%s7 + $0x2b0] sm:$0xff]
    %v2104 = vld [vmem:[%s7 + $0x2b8] sm:$0xff]
    %v2105 = vld [vmem:[%s7 + $0x2c0] sm:$0xff]
    %v2106 = vld [vmem:[%s7 + $0x2c8] sm:$0xff]
    %v2107 = vld [vmem:[%s7 + $0x2d0] sm:$0xff]
    %v2108 = vld [vmem:[%s7 + $0x2d8] sm:$0xff]
    %v2109 = vld [vmem:[%s7 + $0x2e0] sm:$0xff]
    %v2110 = vld [vmem:[%s7 + $0x2e8] sm:$0xff]
    %v2111 = vld [vmem:[%s7 + $0x2f0] sm:$0xff]
    %v2112 = vld [vmem:[%s7 + $0x2f8] sm:$0xff]
    %v2113 = vld [vmem:[%s7 + $0x300] sm:$0xff]
    %v2114 = vld [vmem:[%s7 + $0x308] sm:$0xff]
    %v2115 = vld [vmem:[%s7 + $0x310] sm:$0xff]
    %v2116 = vld [vmem:[%s7 + $0x318] sm:$0xff]
    %v2117 = vld [vmem:[%s7 + $0x320] sm:$0xff]
    %v2118 = vld [vmem:[%s7 + $0x328] sm:$0xff]
    %v2119 = vld [vmem:[%s7 + $0x330] sm:$0xff]
    %v2120 = vld [vmem:[%s7 + $0x338] sm:$0xff]
    %v2121 = vld [vmem:[%s7 + $0x340] sm:$0xff]
    %v2122 = vld [vmem:[%s7 + $0x348] sm:$0xff]
    %v2123 = vld [vmem:[%s7 + $0x350] sm:$0xff]
    %v2124 = vld [vmem:[%s7 + $0x358] sm:$0xff]
    %v2125 = vld [vmem:[%s7 + $0x360] sm:$0xff]
    %v2126 = vld [vmem:[%s7 + $0x368] sm:$0xff]
    %v2127 = vld [vmem:[%s7 + $0x370] sm:$0xff]
    %v2128 = vld [vmem:[%s7 + $0x378] sm:$0xff]
    %v2129 = vld [vmem:[%s7 + $0x380] sm:$0xff]
    %v2130 = vld [vmem:[%s7 + $0x388] sm:$0xff]
    %v2131 = vld [vmem:[%s7 + $0x390] sm:$0xff]
    %v2132 = vld [vmem:[%s7 + $0x398] sm:$0xff]
    %v2133 = vld [vmem:[%s7 + $0x3a0] sm:$0xff]
    %v2134 = vld [vmem:[%s7 + $0x3a8] sm:$0xff]
    %v2135 = vld [vmem:[%s7 + $0x3b0] sm:$0xff]
    %v2136 = vld [vmem:[%s7 + $0x3b8] sm:$0xff]
    %v2137 = vld [vmem:[%s7 + $0x3c0] sm:$0xff]
    %v2138 = vld [vmem:[%s7 + $0x3c8] sm:$0xff]
    %v2139 = vld [vmem:[%s7 + $0x3d0] sm:$0xff]
    %v2140 = vld [vmem:[%s7 + $0x3d8] sm:$0xff]
    %v2141 = vld [vmem:[%s7 + $0x3e0] sm:$0xff]
    %v2142 = vld [vmem:[%s7 + $0x3e8] sm:$0xff]
    %v2143 = vld [vmem:[%s7 + $0x3f0] sm:$0xff]
    %v2144 = vld [vmem:[%s7 + $0x3f8] sm:$0xff]
    %v2145 = vld [vmem:[%s8] sm:$0xf]
    %v2147 = vperm.slane %v2145, 0
    %v2148 = vperm.slane %v2145, 1
    %v2149 = vperm.slane %v2145, 2
    %v2150 = vperm.slane %v2145, 3
    %v2283 = vunpack.c.l.b16 %v2017
    %v2284 = vunpack.c.h.b16 %v2017
    %v2285 = vunpack.c.l.b16 %v2018
    %v2286 = vunpack.c.h.b16 %v2018
    %v2287 = vunpack.c.l.b16 %v2019
    %v2288 = vunpack.c.h.b16 %v2019
    %v2289 = vunpack.c.l.b16 %v2020
    %v2290 = vunpack.c.h.b16 %v2020
    %v2291 = vunpack.c.l.b16 %v2021
    %v2292 = vunpack.c.h.b16 %v2021
    %v2293 = vunpack.c.l.b16 %v2022
    %v2294 = vunpack.c.h.b16 %v2022
    %v2295 = vunpack.c.l.b16 %v2023
    %v2296 = vunpack.c.h.b16 %v2023
    %v2297 = vunpack.c.l.b16 %v2024
    %v2298 = vunpack.c.h.b16 %v2024
    %v2299 = vunpack.c.l.b16 %v2025
    %v2300 = vunpack.c.h.b16 %v2025
    %v2301 = vunpack.c.l.b16 %v2026
    %v2302 = vunpack.c.h.b16 %v2026
    %v2303 = vunpack.c.l.b16 %v2027
    %v2304 = vunpack.c.h.b16 %v2027
    %v2305 = vunpack.c.l.b16 %v2028
    %v2306 = vunpack.c.h.b16 %v2028
    %v2307 = vunpack.c.l.b16 %v2029
    %v2308 = vunpack.c.h.b16 %v2029
    %v2309 = vunpack.c.l.b16 %v2030
    %v2310 = vunpack.c.h.b16 %v2030
    %v2311 = vunpack.c.l.b16 %v2031
    %v2312 = vunpack.c.h.b16 %v2031
    %v2313 = vunpack.c.l.b16 %v2032
    %v2314 = vunpack.c.h.b16 %v2032
    %v2315 = vunpack.c.l.b16 %v2033
    %v2316 = vunpack.c.h.b16 %v2033
    %v2317 = vunpack.c.l.b16 %v2034
    %v2318 = vunpack.c.h.b16 %v2034
    %v2319 = vunpack.c.l.b16 %v2035
    %v2320 = vunpack.c.h.b16 %v2035
    %v2321 = vunpack.c.l.b16 %v2036
    %v2322 = vunpack.c.h.b16 %v2036
    %v2323 = vunpack.c.l.b16 %v2037
    %v2324 = vunpack.c.h.b16 %v2037
    %v2325 = vunpack.c.l.b16 %v2038
    %v2326 = vunpack.c.h.b16 %v2038
    %v2327 = vunpack.c.l.b16 %v2039
    %v2328 = vunpack.c.h.b16 %v2039
    %v2329 = vunpack.c.l.b16 %v2040
    %v2330 = vunpack.c.h.b16 %v2040
    %v2331 = vunpack.c.l.b16 %v2041
    %v2332 = vunpack.c.h.b16 %v2041
    %v2333 = vunpack.c.l.b16 %v2042
    %v2334 = vunpack.c.h.b16 %v2042
    %v2335 = vunpack.c.l.b16 %v2043
    %v2336 = vunpack.c.h.b16 %v2043
    %v2337 = vunpack.c.l.b16 %v2044
    %v2338 = vunpack.c.h.b16 %v2044
    %v2339 = vunpack.c.l.b16 %v2045
    %v2340 = vunpack.c.h.b16 %v2045
    %v2341 = vunpack.c.l.b16 %v2046
    %v2342 = vunpack.c.h.b16 %v2046
    %v2343 = vunpack.c.l.b16 %v2047
    %v2344 = vunpack.c.h.b16 %v2047
    %v2345 = vunpack.c.l.b16 %v2048
    %v2346 = vunpack.c.h.b16 %v2048
    %v2347 = vunpack.c.l.b16 %v2049
    %v2348 = vunpack.c.h.b16 %v2049
    %v2349 = vunpack.c.l.b16 %v2050
    %v2350 = vunpack.c.h.b16 %v2050
    %v2351 = vunpack.c.l.b16 %v2051
    %v2352 = vunpack.c.h.b16 %v2051
    %v2353 = vunpack.c.l.b16 %v2052
    %v2354 = vunpack.c.h.b16 %v2052
    %v2355 = vunpack.c.l.b16 %v2053
    %v2356 = vunpack.c.h.b16 %v2053
    %v2357 = vunpack.c.l.b16 %v2054
    %v2358 = vunpack.c.h.b16 %v2054
    %v2359 = vunpack.c.l.b16 %v2055
    %v2360 = vunpack.c.h.b16 %v2055
    %v2361 = vunpack.c.l.b16 %v2056
    %v2362 = vunpack.c.h.b16 %v2056
    %v2363 = vunpack.c.l.b16 %v2057
    %v2364 = vunpack.c.h.b16 %v2057
    %v2365 = vunpack.c.l.b16 %v2058
    %v2366 = vunpack.c.h.b16 %v2058
    %v2367 = vunpack.c.l.b16 %v2059
    %v2368 = vunpack.c.h.b16 %v2059
    %v2369 = vunpack.c.l.b16 %v2060
    %v2370 = vunpack.c.h.b16 %v2060
    %v2371 = vunpack.c.l.b16 %v2061
    %v2372 = vunpack.c.h.b16 %v2061
    %v2373 = vunpack.c.l.b16 %v2062
    %v2374 = vunpack.c.h.b16 %v2062
    %v2375 = vunpack.c.l.b16 %v2063
    %v2376 = vunpack.c.h.b16 %v2063
    %v2377 = vunpack.c.l.b16 %v2064
    %v2378 = vunpack.c.h.b16 %v2064
    %v2379 = vunpack.c.l.b16 %v2065
    %v2380 = vunpack.c.h.b16 %v2065
    %v2381 = vunpack.c.l.b16 %v2066
    %v2382 = vunpack.c.h.b16 %v2066
    %v2383 = vunpack.c.l.b16 %v2067
    %v2384 = vunpack.c.h.b16 %v2067
    %v2385 = vunpack.c.l.b16 %v2068
    %v2386 = vunpack.c.h.b16 %v2068
    %v2387 = vunpack.c.l.b16 %v2069
    %v2388 = vunpack.c.h.b16 %v2069
    %v2389 = vunpack.c.l.b16 %v2070
    %v2390 = vunpack.c.h.b16 %v2070
    %v2391 = vunpack.c.l.b16 %v2071
    %v2392 = vunpack.c.h.b16 %v2071
    %v2393 = vunpack.c.l.b16 %v2072
    %v2394 = vunpack.c.h.b16 %v2072
    %v2395 = vunpack.c.l.b16 %v2073
    %v2396 = vunpack.c.h.b16 %v2073
    %v2397 = vunpack.c.l.b16 %v2074
    %v2398 = vunpack.c.h.b16 %v2074
    %v2399 = vunpack.c.l.b16 %v2075
    %v2400 = vunpack.c.h.b16 %v2075
    %v2401 = vunpack.c.l.b16 %v2076
    %v2402 = vunpack.c.h.b16 %v2076
    %v2403 = vunpack.c.l.b16 %v2077
    %v2404 = vunpack.c.h.b16 %v2077
    %v2405 = vunpack.c.l.b16 %v2078
    %v2406 = vunpack.c.h.b16 %v2078
    %v2407 = vunpack.c.l.b16 %v2079
    %v2408 = vunpack.c.h.b16 %v2079
    %v2409 = vunpack.c.l.b16 %v2080
    %v2410 = vunpack.c.h.b16 %v2080
    %v2411 = vunpack.c.l.b16 %v2081
    %v2412 = vunpack.c.h.b16 %v2081
    %v2413 = vunpack.c.l.b16 %v2082
    %v2414 = vunpack.c.h.b16 %v2082
    %v2415 = vunpack.c.l.b16 %v2083
    %v2416 = vunpack.c.h.b16 %v2083
    %v2417 = vunpack.c.l.b16 %v2084
    %v2418 = vunpack.c.h.b16 %v2084
    %v2419 = vunpack.c.l.b16 %v2085
    %v2420 = vunpack.c.h.b16 %v2085
    %v2421 = vunpack.c.l.b16 %v2086
    %v2422 = vunpack.c.h.b16 %v2086
    %v2423 = vunpack.c.l.b16 %v2087
    %v2424 = vunpack.c.h.b16 %v2087
    %v2425 = vunpack.c.l.b16 %v2088
    %v2426 = vunpack.c.h.b16 %v2088
    %v2427 = vunpack.c.l.b16 %v2089
    %v2428 = vunpack.c.h.b16 %v2089
    %v2429 = vunpack.c.l.b16 %v2090
    %v2430 = vunpack.c.h.b16 %v2090
    %v2431 = vunpack.c.l.b16 %v2091
    %v2432 = vunpack.c.h.b16 %v2091
    %v2433 = vunpack.c.l.b16 %v2092
    %v2434 = vunpack.c.h.b16 %v2092
    %v2435 = vunpack.c.l.b16 %v2093
    %v2436 = vunpack.c.h.b16 %v2093
    %v2437 = vunpack.c.l.b16 %v2094
    %v2438 = vunpack.c.h.b16 %v2094
    %v2439 = vunpack.c.l.b16 %v2095
    %v2440 = vunpack.c.h.b16 %v2095
    %v2441 = vunpack.c.l.b16 %v2096
    %v2442 = vunpack.c.h.b16 %v2096
    %v2443 = vunpack.c.l.b16 %v2097
    %v2444 = vunpack.c.h.b16 %v2097
    %v2445 = vunpack.c.l.b16 %v2098
    %v2446 = vunpack.c.h.b16 %v2098
    %v2447 = vunpack.c.l.b16 %v2099
    %v2448 = vunpack.c.h.b16 %v2099
    %v2449 = vunpack.c.l.b16 %v2100
    %v2450 = vunpack.c.h.b16 %v2100
    %v2451 = vunpack.c.l.b16 %v2101
    %v2452 = vunpack.c.h.b16 %v2101
    %v2453 = vunpack.c.l.b16 %v2102
    %v2454 = vunpack.c.h.b16 %v2102
    %v2455 = vunpack.c.l.b16 %v2103
    %v2456 = vunpack.c.h.b16 %v2103
    %v2457 = vunpack.c.l.b16 %v2104
    %v2458 = vunpack.c.h.b16 %v2104
    %v2459 = vunpack.c.l.b16 %v2105
    %v2460 = vunpack.c.h.b16 %v2105
    %v2461 = vunpack.c.l.b16 %v2106
    %v2462 = vunpack.c.h.b16 %v2106
    %v2463 = vunpack.c.l.b16 %v2107
    %v2464 = vunpack.c.h.b16 %v2107
    %v2465 = vunpack.c.l.b16 %v2108
    %v2466 = vunpack.c.h.b16 %v2108
    %v2467 = vunpack.c.l.b16 %v2109
    %v2468 = vunpack.c.h.b16 %v2109
    %v2469 = vunpack.c.l.b16 %v2110
    %v2470 = vunpack.c.h.b16 %v2110
    %v2471 = vunpack.c.l.b16 %v2111
    %v2472 = vunpack.c.h.b16 %v2111
    %v2473 = vunpack.c.l.b16 %v2112
    %v2474 = vunpack.c.h.b16 %v2112
    %v2475 = vunpack.c.l.b16 %v2113
    %v2476 = vunpack.c.h.b16 %v2113
    %v2477 = vunpack.c.l.b16 %v2114
    %v2478 = vunpack.c.h.b16 %v2114
    %v2479 = vunpack.c.l.b16 %v2115
    %v2480 = vunpack.c.h.b16 %v2115
    %v2481 = vunpack.c.l.b16 %v2116
    %v2482 = vunpack.c.h.b16 %v2116
    %v2483 = vunpack.c.l.b16 %v2117
    %v2484 = vunpack.c.h.b16 %v2117
    %v2485 = vunpack.c.l.b16 %v2118
    %v2486 = vunpack.c.h.b16 %v2118
    %v2487 = vunpack.c.l.b16 %v2119
    %v2488 = vunpack.c.h.b16 %v2119
    %v2489 = vunpack.c.l.b16 %v2120
    %v2490 = vunpack.c.h.b16 %v2120
    %v2491 = vunpack.c.l.b16 %v2121
    %v2492 = vunpack.c.h.b16 %v2121
    %v2493 = vunpack.c.l.b16 %v2122
    %v2494 = vunpack.c.h.b16 %v2122
    %v2495 = vunpack.c.l.b16 %v2123
    %v2496 = vunpack.c.h.b16 %v2123
    %v2497 = vunpack.c.l.b16 %v2124
    %v2498 = vunpack.c.h.b16 %v2124
    %v2499 = vunpack.c.l.b16 %v2125
    %v2500 = vunpack.c.h.b16 %v2125
    %v2501 = vunpack.c.l.b16 %v2126
    %v2502 = vunpack.c.h.b16 %v2126
    %v2503 = vunpack.c.l.b16 %v2127
    %v2504 = vunpack.c.h.b16 %v2127
    %v2505 = vunpack.c.l.b16 %v2128
    %v2506 = vunpack.c.h.b16 %v2128
    %v2507 = vunpack.c.l.b16 %v2129
    %v2508 = vunpack.c.h.b16 %v2129
    %v2509 = vunpack.c.l.b16 %v2130
    %v2510 = vunpack.c.h.b16 %v2130
    %v2511 = vunpack.c.l.b16 %v2131
    %v2512 = vunpack.c.h.b16 %v2131
    %v2513 = vunpack.c.l.b16 %v2132
    %v2514 = vunpack.c.h.b16 %v2132
    %v2515 = vunpack.c.l.b16 %v2133
    %v2516 = vunpack.c.h.b16 %v2133
    %v2517 = vunpack.c.l.b16 %v2134
    %v2518 = vunpack.c.h.b16 %v2134
    %v2519 = vunpack.c.l.b16 %v2135
    %v2520 = vunpack.c.h.b16 %v2135
    %v2521 = vunpack.c.l.b16 %v2136
    %v2522 = vunpack.c.h.b16 %v2136
    %v2523 = vunpack.c.l.b16 %v2137
    %v2524 = vunpack.c.h.b16 %v2137
    %v2525 = vunpack.c.l.b16 %v2138
    %v2526 = vunpack.c.h.b16 %v2138
    %v2527 = vunpack.c.l.b16 %v2139
    %v2528 = vunpack.c.h.b16 %v2139
    %v2529 = vunpack.c.l.b16 %v2140
    %v2530 = vunpack.c.h.b16 %v2140
    %v2531 = vunpack.c.l.b16 %v2141
    %v2532 = vunpack.c.h.b16 %v2141
    %v2533 = vunpack.c.l.b16 %v2142
    %v2534 = vunpack.c.h.b16 %v2142
    %v2535 = vunpack.c.l.b16 %v2143
    %v2536 = vunpack.c.h.b16 %v2143
    %v2537 = vunpack.c.l.b16 %v2144
    %v2538 = vunpack.c.h.b16 %v2144
    %v2539 = vpack.c.b16 %v2287, %v2283
    %v2540 = vpack.c.b16 %v2288, %v2284
    %v2541 = vpack.c.b16 %v2289, %v2285
    %v2542 = vpack.c.b16 %v2290, %v2286
    %v2543 = vpack.c.b16 %v2295, %v2291
    %v2544 = vpack.c.b16 %v2296, %v2292
    %v2545 = vpack.c.b16 %v2297, %v2293
    %v2546 = vpack.c.b16 %v2298, %v2294
    %v2547 = vpack.c.b16 %v2303, %v2299
    %v2548 = vpack.c.b16 %v2304, %v2300
    %v2549 = vpack.c.b16 %v2305, %v2301
    %v2550 = vpack.c.b16 %v2306, %v2302
    %v2551 = vpack.c.b16 %v2311, %v2307
    %v2552 = vpack.c.b16 %v2312, %v2308
    %v2553 = vpack.c.b16 %v2313, %v2309
    %v2554 = vpack.c.b16 %v2314, %v2310
    %v2555 = vpack.c.b16 %v2319, %v2315
    %v2556 = vpack.c.b16 %v2320, %v2316
    %v2557 = vpack.c.b16 %v2321, %v2317
    %v2558 = vpack.c.b16 %v2322, %v2318
    %v2559 = vpack.c.b16 %v2327, %v2323
    %v2560 = vpack.c.b16 %v2328, %v2324
    %v2561 = vpack.c.b16 %v2329, %v2325
    %v2562 = vpack.c.b16 %v2330, %v2326
    %v2563 = vpack.c.b16 %v2335, %v2331
    %v2564 = vpack.c.b16 %v2336, %v2332
    %v2565 = vpack.c.b16 %v2337, %v2333
    %v2566 = vpack.c.b16 %v2338, %v2334
    %v2567 = vpack.c.b16 %v2343, %v2339
    %v2568 = vpack.c.b16 %v2344, %v2340
    %v2569 = vpack.c.b16 %v2345, %v2341
    %v2570 = vpack.c.b16 %v2346, %v2342
    %v2571 = vpack.c.b16 %v2351, %v2347
    %v2572 = vpack.c.b16 %v2352, %v2348
    %v2573 = vpack.c.b16 %v2353, %v2349
    %v2574 = vpack.c.b16 %v2354, %v2350
    %v2575 = vpack.c.b16 %v2359, %v2355
    %v2576 = vpack.c.b16 %v2360, %v2356
    %v2577 = vpack.c.b16 %v2361, %v2357
    %v2578 = vpack.c.b16 %v2362, %v2358
    %v2579 = vpack.c.b16 %v2367, %v2363
    %v2580 = vpack.c.b16 %v2368, %v2364
    %v2581 = vpack.c.b16 %v2369, %v2365
    %v2582 = vpack.c.b16 %v2370, %v2366
    %v2583 = vpack.c.b16 %v2375, %v2371
    %v2584 = vpack.c.b16 %v2376, %v2372
    %v2585 = vpack.c.b16 %v2377, %v2373
    %v2586 = vpack.c.b16 %v2378, %v2374
    %v2587 = vpack.c.b16 %v2383, %v2379
    %v2588 = vpack.c.b16 %v2384, %v2380
    %v2589 = vpack.c.b16 %v2385, %v2381
    %v2590 = vpack.c.b16 %v2386, %v2382
    %v2591 = vpack.c.b16 %v2391, %v2387
    %v2592 = vpack.c.b16 %v2392, %v2388
    %v2593 = vpack.c.b16 %v2393, %v2389
    %v2594 = vpack.c.b16 %v2394, %v2390
    %v2595 = vpack.c.b16 %v2399, %v2395
    %v2596 = vpack.c.b16 %v2400, %v2396
    %v2597 = vpack.c.b16 %v2401, %v2397
    %v2598 = vpack.c.b16 %v2402, %v2398
    %v2599 = vpack.c.b16 %v2407, %v2403
    %v2600 = vpack.c.b16 %v2408, %v2404
    %v2601 = vpack.c.b16 %v2409, %v2405
    %v2602 = vpack.c.b16 %v2410, %v2406
    %v2603 = vpack.c.b16 %v2415, %v2411
    %v2604 = vpack.c.b16 %v2416, %v2412
    %v2605 = vpack.c.b16 %v2417, %v2413
    %v2606 = vpack.c.b16 %v2418, %v2414
    %v2607 = vpack.c.b16 %v2423, %v2419
    %v2608 = vpack.c.b16 %v2424, %v2420
    %v2609 = vpack.c.b16 %v2425, %v2421
    %v2610 = vpack.c.b16 %v2426, %v2422
    %v2611 = vpack.c.b16 %v2431, %v2427
    %v2612 = vpack.c.b16 %v2432, %v2428
    %v2613 = vpack.c.b16 %v2433, %v2429
    %v2614 = vpack.c.b16 %v2434, %v2430
    %v2615 = vpack.c.b16 %v2439, %v2435
    %v2616 = vpack.c.b16 %v2440, %v2436
    %v2617 = vpack.c.b16 %v2441, %v2437
    %v2618 = vpack.c.b16 %v2442, %v2438
    %v2619 = vpack.c.b16 %v2447, %v2443
    %v2620 = vpack.c.b16 %v2448, %v2444
    %v2621 = vpack.c.b16 %v2449, %v2445
    %v2622 = vpack.c.b16 %v2450, %v2446
    %v2623 = vpack.c.b16 %v2455, %v2451
    %v2624 = vpack.c.b16 %v2456, %v2452
    %v2625 = vpack.c.b16 %v2457, %v2453
    %v2626 = vpack.c.b16 %v2458, %v2454
    %v2627 = vpack.c.b16 %v2463, %v2459
    %v2628 = vpack.c.b16 %v2464, %v2460
    %v2629 = vpack.c.b16 %v2465, %v2461
    %v2630 = vpack.c.b16 %v2466, %v2462
    %v2631 = vpack.c.b16 %v2471, %v2467
    %v2632 = vpack.c.b16 %v2472, %v2468
    %v2633 = vpack.c.b16 %v2473, %v2469
    %v2634 = vpack.c.b16 %v2474, %v2470
    %v2635 = vpack.c.b16 %v2479, %v2475
    %v2636 = vpack.c.b16 %v2480, %v2476
    %v2637 = vpack.c.b16 %v2481, %v2477
    %v2638 = vpack.c.b16 %v2482, %v2478
    %v2639 = vpack.c.b16 %v2487, %v2483
    %v2640 = vpack.c.b16 %v2488, %v2484
    %v2641 = vpack.c.b16 %v2489, %v2485
    %v2642 = vpack.c.b16 %v2490, %v2486
    %v2643 = vpack.c.b16 %v2495, %v2491
    %v2644 = vpack.c.b16 %v2496, %v2492
    %v2645 = vpack.c.b16 %v2497, %v2493
    %v2646 = vpack.c.b16 %v2498, %v2494
    %v2647 = vpack.c.b16 %v2503, %v2499
    %v2648 = vpack.c.b16 %v2504, %v2500
    %v2649 = vpack.c.b16 %v2505, %v2501
    %v2650 = vpack.c.b16 %v2506, %v2502
    %v2651 = vpack.c.b16 %v2511, %v2507
    %v2652 = vpack.c.b16 %v2512, %v2508
    %v2653 = vpack.c.b16 %v2513, %v2509
    %v2654 = vpack.c.b16 %v2514, %v2510
    %v2655 = vpack.c.b16 %v2519, %v2515
    %v2656 = vpack.c.b16 %v2520, %v2516
    %v2657 = vpack.c.b16 %v2521, %v2517
    %v2658 = vpack.c.b16 %v2522, %v2518
    %v2659 = vpack.c.b16 %v2527, %v2523
    %v2660 = vpack.c.b16 %v2528, %v2524
    %v2661 = vpack.c.b16 %v2529, %v2525
    %v2662 = vpack.c.b16 %v2530, %v2526
    %v2663 = vpack.c.b16 %v2535, %v2531
    %v2664 = vpack.c.b16 %v2536, %v2532
    %v2665 = vpack.c.b16 %v2537, %v2533
    %v2666 = vpack.c.b16 %v2538, %v2534
    %2795 = vmatpush.bf16.msra.mxu0 %v2567
    %2796 = vmatpush.bf16.msra.mxu0 %v2563
    %2797 = vmatpush.bf16.msra.mxu0 %v2559
    %2798 = vmatpush.bf16.msra.mxu0 %v2555
    %2799 = vmatpush.bf16.msra.mxu0 %v2551
    %2800 = vmatpush.bf16.msra.mxu0 %v2547
    %2801 = vmatpush.bf16.msra.mxu0 %v2543
    %2802 = vmatpush.bf16.msra.mxu0 %v2539
    %2803 = vmatmul.bf16.gmra.mxu0 %v2013
    %v2804 = vpop.f32.mrf.mxu0
    %v2805 = vadd.f32 %v2147, %v2804
    %v2806 = vpop.f32.mrf.mxu0
    %2807 = vdwg.mxu0
    %2808 = vmatpush.bf16.msra.mxu0 %v2599
    %2809 = vmatpush.bf16.msra.mxu0 %v2595
    %2810 = vmatpush.bf16.msra.mxu0 %v2591
    %2811 = vmatpush.bf16.msra.mxu0 %v2587
    %2812 = vmatpush.bf16.msra.mxu0 %v2583
    %2813 = vmatpush.bf16.msra.mxu0 %v2579
    %2814 = vmatpush.bf16.msra.mxu0 %v2575
    %2815 = vmatpush.bf16.msra.mxu0 %v2571
    %2816 = vmatmul.bf16.gmra.mxu0 %v2014
    %v2817 = vpop.f32.mrf.mxu0
    %v2818 = vadd.f32 %v2805, %v2817
    %v2819 = vpop.f32.mrf.mxu0
    %2820 = vdwg.mxu0
    %2821 = vmatpush.bf16.msra.mxu0 %v2631
    %2822 = vmatpush.bf16.msra.mxu0 %v2627
    %2823 = vmatpush.bf16.msra.mxu0 %v2623
    %2824 = vmatpush.bf16.msra.mxu0 %v2619
    %2825 = vmatpush.bf16.msra.mxu0 %v2615
    %2826 = vmatpush.bf16.msra.mxu0 %v2611
    %2827 = vmatpush.bf16.msra.mxu0 %v2607
    %2828 = vmatpush.bf16.msra.mxu0 %v2603
    %2829 = vmatmul.bf16.gmra.mxu0 %v2015
    %v2830 = vpop.f32.mrf.mxu0
    %v2831 = vadd.f32 %v2818, %v2830
    %v2832 = vpop.f32.mrf.mxu0
    %2833 = vdwg.mxu0
    %2834 = vmatpush.bf16.msra.mxu0 %v2663
    %2835 = vmatpush.bf16.msra.mxu0 %v2659
    %2836 = vmatpush.bf16.msra.mxu0 %v2655
    %2837 = vmatpush.bf16.msra.mxu0 %v2651
    %2838 = vmatpush.bf16.msra.mxu0 %v2647
    %2839 = vmatpush.bf16.msra.mxu0 %v2643
    %2840 = vmatpush.bf16.msra.mxu0 %v2639
    %2841 = vmatpush.bf16.msra.mxu0 %v2635
    %2842 = vmatmul.bf16.gmra.mxu0 %v2016
    %v2843 = vpop.f32.mrf.mxu0
    %v2844 = vadd.f32 %v2831, %v2843
    %v2845 = vpop.f32.mrf.mxu0
    %2846 = vdwg.mxu0
    %2847 = vmatpush.bf16.msra.mxu0 %v2568
    %2848 = vmatpush.bf16.msra.mxu0 %v2564
    %2849 = vmatpush.bf16.msra.mxu0 %v2560
    %2850 = vmatpush.bf16.msra.mxu0 %v2556
    %2851 = vmatpush.bf16.msra.mxu0 %v2552
    %2852 = vmatpush.bf16.msra.mxu0 %v2548
    %2853 = vmatpush.bf16.msra.mxu0 %v2544
    %2854 = vmatpush.bf16.msra.mxu0 %v2540
    %2855 = vmatmul.bf16.gmra.mxu0 %v2013
    %v2856 = vpop.f32.mrf.mxu0
    %v2857 = vadd.f32 %v2148, %v2856
    %v2858 = vpop.f32.mrf.mxu0
    %2859 = vdwg.mxu0
    %2860 = vmatpush.bf16.msra.mxu0 %v2600
    %2861 = vmatpush.bf16.msra.mxu0 %v2596
    %2862 = vmatpush.bf16.msra.mxu0 %v2592
    %2863 = vmatpush.bf16.msra.mxu0 %v2588
    %2864 = vmatpush.bf16.msra.mxu0 %v2584
    %2865 = vmatpush.bf16.msra.mxu0 %v2580
    %2866 = vmatpush.bf16.msra.mxu0 %v2576
    %2867 = vmatpush.bf16.msra.mxu0 %v2572
    %2868 = vmatmul.bf16.gmra.mxu0 %v2014
    %v2869 = vpop.f32.mrf.mxu0
    %v2870 = vadd.f32 %v2857, %v2869
    %v2871 = vpop.f32.mrf.mxu0
    %2872 = vdwg.mxu0
    %2873 = vmatpush.bf16.msra.mxu0 %v2632
    %2874 = vmatpush.bf16.msra.mxu0 %v2628
    %2875 = vmatpush.bf16.msra.mxu0 %v2624
    %2876 = vmatpush.bf16.msra.mxu0 %v2620
    %2877 = vmatpush.bf16.msra.mxu0 %v2616
    %2878 = vmatpush.bf16.msra.mxu0 %v2612
    %2879 = vmatpush.bf16.msra.mxu0 %v2608
    %2880 = vmatpush.bf16.msra.mxu0 %v2604
    %2881 = vmatmul.bf16.gmra.mxu0 %v2015
    %v2882 = vpop.f32.mrf.mxu0
    %v2883 = vadd.f32 %v2870, %v2882
    %v2884 = vpop.f32.mrf.mxu0
    %2885 = vdwg.mxu0
    %2886 = vmatpush.bf16.msra.mxu0 %v2664
    %2887 = vmatpush.bf16.msra.mxu0 %v2660
    %2888 = vmatpush.bf16.msra.mxu0 %v2656
    %2889 = vmatpush.bf16.msra.mxu0 %v2652
    %2890 = vmatpush.bf16.msra.mxu0 %v2648
    %2891 = vmatpush.bf16.msra.mxu0 %v2644
    %2892 = vmatpush.bf16.msra.mxu0 %v2640
    %2893 = vmatpush.bf16.msra.mxu0 %v2636
    %2894 = vmatmul.bf16.gmra.mxu0 %v2016
    %v2895 = vpop.f32.mrf.mxu0
    %v2896 = vadd.f32 %v2883, %v2895
    %v2897 = vpop.f32.mrf.mxu0
    %2898 = vdwg.mxu0
    %2899 = vmatpush.bf16.msra.mxu0 %v2569
    %2900 = vmatpush.bf16.msra.mxu0 %v2565
    %2901 = vmatpush.bf16.msra.mxu0 %v2561
    %2902 = vmatpush.bf16.msra.mxu0 %v2557
    %2903 = vmatpush.bf16.msra.mxu0 %v2553
    %2904 = vmatpush.bf16.msra.mxu0 %v2549
    %2905 = vmatpush.bf16.msra.mxu0 %v2545
    %2906 = vmatpush.bf16.msra.mxu0 %v2541
    %2907 = vmatmul.bf16.gmra.mxu0 %v2013
    %v2908 = vpop.f32.mrf.mxu0
    %v2909 = vadd.f32 %v2149, %v2908
    %v2910 = vpop.f32.mrf.mxu0
    %2911 = vdwg.mxu0
    %2912 = vmatpush.bf16.msra.mxu0 %v2601
    %2913 = vmatpush.bf16.msra.mxu0 %v2597
    %2914 = vmatpush.bf16.msra.mxu0 %v2593
    %2915 = vmatpush.bf16.msra.mxu0 %v2589
    %2916 = vmatpush.bf16.msra.mxu0 %v2585
    %2917 = vmatpush.bf16.msra.mxu0 %v2581
    %2918 = vmatpush.bf16.msra.mxu0 %v2577
    %2919 = vmatpush.bf16.msra.mxu0 %v2573
    %2920 = vmatmul.bf16.gmra.mxu0 %v2014
    %v2921 = vpop.f32.mrf.mxu0
    %v2922 = vadd.f32 %v2909, %v2921
    %v2923 = vpop.f32.mrf.mxu0
    %2924 = vdwg.mxu0
    %2925 = vmatpush.bf16.msra.mxu0 %v2633
    %2926 = vmatpush.bf16.msra.mxu0 %v2629
    %2927 = vmatpush.bf16.msra.mxu0 %v2625
    %2928 = vmatpush.bf16.msra.mxu0 %v2621
    %2929 = vmatpush.bf16.msra.mxu0 %v2617
    %2930 = vmatpush.bf16.msra.mxu0 %v2613
    %2931 = vmatpush.bf16.msra.mxu0 %v2609
    %2932 = vmatpush.bf16.msra.mxu0 %v2605
    %2933 = vmatmul.bf16.gmra.mxu0 %v2015
    %v2934 = vpop.f32.mrf.mxu0
    %v2935 = vadd.f32 %v2922, %v2934
    %v2936 = vpop.f32.mrf.mxu0
    %2937 = vdwg.mxu0
    %2938 = vmatpush.bf16.msra.mxu0 %v2665
    %2939 = vmatpush.bf16.msra.mxu0 %v2661
    %2940 = vmatpush.bf16.msra.mxu0 %v2657
    %2941 = vmatpush.bf16.msra.mxu0 %v2653
    %2942 = vmatpush.bf16.msra.mxu0 %v2649
    %2943 = vmatpush.bf16.msra.mxu0 %v2645
    %2944 = vmatpush.bf16.msra.mxu0 %v2641
    %2945 = vmatpush.bf16.msra.mxu0 %v2637
    %2946 = vmatmul.bf16.gmra.mxu0 %v2016
    %v2947 = vpop.f32.mrf.mxu0
    %v2948 = vadd.f32 %v2935, %v2947
    %v2949 = vpop.f32.mrf.mxu0
    %2950 = vdwg.mxu0
    %2951 = vmatpush.bf16.msra.mxu0 %v2570
    %2952 = vmatpush.bf16.msra.mxu0 %v2566
    %2953 = vmatpush.bf16.msra.mxu0 %v2562
    %2954 = vmatpush.bf16.msra.mxu0 %v2558
    %2955 = vmatpush.bf16.msra.mxu0 %v2554
    %2956 = vmatpush.bf16.msra.mxu0 %v2550
    %2957 = vmatpush.bf16.msra.mxu0 %v2546
    %2958 = vmatpush.bf16.msra.mxu0 %v2542
    %2959 = vmatmul.bf16.gmra.mxu0 %v2013
    %v2960 = vpop.f32.mrf.mxu0
    %v2961 = vadd.f32 %v2150, %v2960
    %v2962 = vpop.f32.mrf.mxu0
    %2963 = vdwg.mxu0
    %2964 = vmatpush.bf16.msra.mxu0 %v2602
    %2965 = vmatpush.bf16.msra.mxu0 %v2598
    %2966 = vmatpush.bf16.msra.mxu0 %v2594
    %2967 = vmatpush.bf16.msra.mxu0 %v2590
    %2968 = vmatpush.bf16.msra.mxu0 %v2586
    %2969 = vmatpush.bf16.msra.mxu0 %v2582
    %2970 = vmatpush.bf16.msra.mxu0 %v2578
    %2971 = vmatpush.bf16.msra.mxu0 %v2574
    %2972 = vmatmul.bf16.gmra.mxu0 %v2014
    %v2973 = vpop.f32.mrf.mxu0
    %v2974 = vadd.f32 %v2961, %v2973
    %v2975 = vpop.f32.mrf.mxu0
    %2976 = vdwg.mxu0
    %2977 = vmatpush.bf16.msra.mxu0 %v2634
    %2978 = vmatpush.bf16.msra.mxu0 %v2630
    %2979 = vmatpush.bf16.msra.mxu0 %v2626
    %2980 = vmatpush.bf16.msra.mxu0 %v2622
    %2981 = vmatpush.bf16.msra.mxu0 %v2618
    %2982 = vmatpush.bf16.msra.mxu0 %v2614
    %2983 = vmatpush.bf16.msra.mxu0 %v2610
    %2984 = vmatpush.bf16.msra.mxu0 %v2606
    %2985 = vmatmul.bf16.gmra.mxu0 %v2015
    %v2986 = vpop.f32.mrf.mxu0
    %v2987 = vadd.f32 %v2974, %v2986
    %v2988 = vpop.f32.mrf.mxu0
    %2989 = vdwg.mxu0
    %2990 = vmatpush.bf16.msra.mxu0 %v2666
    %2991 = vmatpush.bf16.msra.mxu0 %v2662
    %2992 = vmatpush.bf16.msra.mxu0 %v2658
    %2993 = vmatpush.bf16.msra.mxu0 %v2654
    %2994 = vmatpush.bf16.msra.mxu0 %v2650
    %2995 = vmatpush.bf16.msra.mxu0 %v2646
    %2996 = vmatpush.bf16.msra.mxu0 %v2642
    %2997 = vmatpush.bf16.msra.mxu0 %v2638
    %2998 = vmatmul.bf16.gmra.mxu0 %v2016
    %v2999 = vpop.f32.mrf.mxu0
    %v3000 = vadd.f32 %v2987, %v2999
    %v3001 = vpop.f32.mrf.mxu0
    %3002 = vdwg.mxu0
    %v3003 = vmax.f32 %v2844, 0.0
    %v3004 = vmax.f32 %v2896, 0.0
    %v3005 = vmax.f32 %v2948, 0.0
    %v3006 = vmax.f32 %v3000, 0.0
    %v3007 = vpack.c.bf16 %v3003, %v3003
    %v3008 = vpack.c.bf16 %v3004, %v3004
    %v3009 = vpack.c.bf16 %v3005, %v3005
    %v3010 = vpack.c.bf16 %v3006, %v3006
    %v3011 = vld [vmem:[%s9] sm:$0xf]
    %v3012 = vld [vmem:[%s9 + $0x4] sm:$0xf]
    %v3013 = vld [vmem:[%s9 + $0x8] sm:$0xf]
    %v3014 = vld [vmem:[%s9 + $0xc] sm:$0xf]
    %v3015 = vld [vmem:[%s9 + $0x10] sm:$0xf]
    %v3016 = vld [vmem:[%s9 + $0x14] sm:$0xf]
    %v3017 = vld [vmem:[%s9 + $0x18] sm:$0xf]
    %v3018 = vld [vmem:[%s9 + $0x1c] sm:$0xf]
    %v3019 = vld [vmem:[%s9 + $0x20] sm:$0xf]
    %v3020 = vld [vmem:[%s9 + $0x24] sm:$0xf]
    %v3021 = vld [vmem:[%s9 + $0x28] sm:$0xf]
    %v3022 = vld [vmem:[%s9 + $0x2c] sm:$0xf]
    %v3023 = vld [vmem:[%s9 + $0x30] sm:$0xf]
    %v3024 = vld [vmem:[%s9 + $0x34] sm:$0xf]
    %v3025 = vld [vmem:[%s9 + $0x38] sm:$0xf]
    %v3026 = vld [vmem:[%s9 + $0x3c] sm:$0xf]
    %v3027 = vld [vmem:[%s9 + $0x40] sm:$0xf]
    %v3028 = vld [vmem:[%s9 + $0x44] sm:$0xf]
    %v3029 = vld [vmem:[%s9 + $0x48] sm:$0xf]
    %v3030 = vld [vmem:[%s9 + $0x4c] sm:$0xf]
    %v3031 = vld [vmem:[%s9 + $0x50] sm:$0xf]
    %v3032 = vld [vmem:[%s9 + $0x54] sm:$0xf]
    %v3033 = vld [vmem:[%s9 + $0x58] sm:$0xf]
    %v3034 = vld [vmem:[%s9 + $0x5c] sm:$0xf]
    %v3035 = vld [vmem:[%s9 + $0x60] sm:$0xf]
    %v3036 = vld [vmem:[%s9 + $0x64] sm:$0xf]
    %v3037 = vld [vmem:[%s9 + $0x68] sm:$0xf]
    %v3038 = vld [vmem:[%s9 + $0x6c] sm:$0xf]
    %v3039 = vld [vmem:[%s9 + $0x70] sm:$0xf]
    %v3040 = vld [vmem:[%s9 + $0x74] sm:$0xf]
    %v3041 = vld [vmem:[%s9 + $0x78] sm:$0xf]
    %v3042 = vld [vmem:[%s9 + $0x7c] sm:$0xf]
    %v3043 = vld [vmem:[%s9 + $0x80] sm:$0xf]
    %v3044 = vld [vmem:[%s9 + $0x84] sm:$0xf]
    %v3045 = vld [vmem:[%s9 + $0x88] sm:$0xf]
    %v3046 = vld [vmem:[%s9 + $0x8c] sm:$0xf]
    %v3047 = vld [vmem:[%s9 + $0x90] sm:$0xf]
    %v3048 = vld [vmem:[%s9 + $0x94] sm:$0xf]
    %v3049 = vld [vmem:[%s9 + $0x98] sm:$0xf]
    %v3050 = vld [vmem:[%s9 + $0x9c] sm:$0xf]
    %v3051 = vld [vmem:[%s9 + $0xa0] sm:$0xf]
    %v3052 = vld [vmem:[%s9 + $0xa4] sm:$0xf]
    %v3053 = vld [vmem:[%s9 + $0xa8] sm:$0xf]
    %v3054 = vld [vmem:[%s9 + $0xac] sm:$0xf]
    %v3055 = vld [vmem:[%s9 + $0xb0] sm:$0xf]
    %v3056 = vld [vmem:[%s9 + $0xb4] sm:$0xf]
    %v3057 = vld [vmem:[%s9 + $0xb8] sm:$0xf]
    %v3058 = vld [vmem:[%s9 + $0xbc] sm:$0xf]
    %v3059 = vld [vmem:[%s9 + $0xc0] sm:$0xf]
    %v3060 = vld [vmem:[%s9 + $0xc4] sm:$0xf]
    %v3061 = vld [vmem:[%s9 + $0xc8] sm:$0xf]
    %v3062 = vld [vmem:[%s9 + $0xcc] sm:$0xf]
    %v3063 = vld [vmem:[%s9 + $0xd0] sm:$0xf]
    %v3064 = vld [vmem:[%s9 + $0xd4] sm:$0xf]
    %v3065 = vld [vmem:[%s9 + $0xd8] sm:$0xf]
    %v3066 = vld [vmem:[%s9 + $0xdc] sm:$0xf]
    %v3067 = vld [vmem:[%s9 + $0xe0] sm:$0xf]
    %v3068 = vld [vmem:[%s9 + $0xe4] sm:$0xf]
    %v3069 = vld [vmem:[%s9 + $0xe8] sm:$0xf]
    %v3070 = vld [vmem:[%s9 + $0xec] sm:$0xf]
    %v3071 = vld [vmem:[%s9 + $0xf0] sm:$0xf]
    %v3072 = vld [vmem:[%s9 + $0xf4] sm:$0xf]
    %v3073 = vld [vmem:[%s9 + $0xf8] sm:$0xf]
    %v3074 = vld [vmem:[%s9 + $0xfc] sm:$0xf]
    %v3075 = vld [vmem:[%s10] sm:$0x1]
    %v3077 = vperm.slane %v3075, 0
    %v3143 = vunpack.c.l.b16 %v3011
    %v3144 = vunpack.c.l.b16 %v3012
    %v3145 = vunpack.c.l.b16 %v3013
    %v3146 = vunpack.c.l.b16 %v3014
    %v3147 = vunpack.c.l.b16 %v3015
    %v3148 = vunpack.c.l.b16 %v3016
    %v3149 = vunpack.c.l.b16 %v3017
    %v3150 = vunpack.c.l.b16 %v3018
    %v3151 = vunpack.c.l.b16 %v3019
    %v3152 = vunpack.c.l.b16 %v3020
    %v3153 = vunpack.c.l.b16 %v3021
    %v3154 = vunpack.c.l.b16 %v3022
    %v3155 = vunpack.c.l.b16 %v3023
    %v3156 = vunpack.c.l.b16 %v3024
    %v3157 = vunpack.c.l.b16 %v3025
    %v3158 = vunpack.c.l.b16 %v3026
    %v3159 = vunpack.c.l.b16 %v3027
    %v3160 = vunpack.c.l.b16 %v3028
    %v3161 = vunpack.c.l.b16 %v3029
    %v3162 = vunpack.c.l.b16 %v3030
    %v3163 = vunpack.c.l.b16 %v3031
    %v3164 = vunpack.c.l.b16 %v3032
    %v3165 = vunpack.c.l.b16 %v3033
    %v3166 = vunpack.c.l.b16 %v3034
    %v3167 = vunpack.c.l.b16 %v3035
    %v3168 = vunpack.c.l.b16 %v3036
    %v3169 = vunpack.c.l.b16 %v3037
    %v3170 = vunpack.c.l.b16 %v3038
    %v3171 = vunpack.c.l.b16 %v3039
    %v3172 = vunpack.c.l.b16 %v3040
    %v3173 = vunpack.c.l.b16 %v3041
    %v3174 = vunpack.c.l.b16 %v3042
    %v3175 = vunpack.c.l.b16 %v3043
    %v3176 = vunpack.c.l.b16 %v3044
    %v3177 = vunpack.c.l.b16 %v3045
    %v3178 = vunpack.c.l.b16 %v3046
    %v3179 = vunpack.c.l.b16 %v3047
    %v3180 = vunpack.c.l.b16 %v3048
    %v3181 = vunpack.c.l.b16 %v3049
    %v3182 = vunpack.c.l.b16 %v3050
    %v3183 = vunpack.c.l.b16 %v3051
    %v3184 = vunpack.c.l.b16 %v3052
    %v3185 = vunpack.c.l.b16 %v3053
    %v3186 = vunpack.c.l.b16 %v3054
    %v3187 = vunpack.c.l.b16 %v3055
    %v3188 = vunpack.c.l.b16 %v3056
    %v3189 = vunpack.c.l.b16 %v3057
    %v3190 = vunpack.c.l.b16 %v3058
    %v3191 = vunpack.c.l.b16 %v3059
    %v3192 = vunpack.c.l.b16 %v3060
    %v3193 = vunpack.c.l.b16 %v3061
    %v3194 = vunpack.c.l.b16 %v3062
    %v3195 = vunpack.c.l.b16 %v3063
    %v3196 = vunpack.c.l.b16 %v3064
    %v3197 = vunpack.c.l.b16 %v3065
    %v3198 = vunpack.c.l.b16 %v3066
    %v3199 = vunpack.c.l.b16 %v3067
    %v3200 = vunpack.c.l.b16 %v3068
    %v3201 = vunpack.c.l.b16 %v3069
    %v3202 = vunpack.c.l.b16 %v3070
    %v3203 = vunpack.c.l.b16 %v3071
    %v3204 = vunpack.c.l.b16 %v3072
    %v3205 = vunpack.c.l.b16 %v3073
    %v3206 = vunpack.c.l.b16 %v3074
    %v3207 = vpack.c.b16 %v3144, %v3143
    %v3208 = vpack.c.b16 %v3146, %v3145
    %v3209 = vpack.c.b16 %v3148, %v3147
    %v3210 = vpack.c.b16 %v3150, %v3149
    %v3211 = vpack.c.b16 %v3152, %v3151
    %v3212 = vpack.c.b16 %v3154, %v3153
    %v3213 = vpack.c.b16 %v3156, %v3155
    %v3214 = vpack.c.b16 %v3158, %v3157
    %v3215 = vpack.c.b16 %v3160, %v3159
    %v3216 = vpack.c.b16 %v3162, %v3161
    %v3217 = vpack.c.b16 %v3164, %v3163
    %v3218 = vpack.c.b16 %v3166, %v3165
    %v3219 = vpack.c.b16 %v3168, %v3167
    %v3220 = vpack.c.b16 %v3170, %v3169
    %v3221 = vpack.c.b16 %v3172, %v3171
    %v3222 = vpack.c.b16 %v3174, %v3173
    %v3223 = vpack.c.b16 %v3176, %v3175
    %v3224 = vpack.c.b16 %v3178, %v3177
    %v3225 = vpack.c.b16 %v3180, %v3179
    %v3226 = vpack.c.b16 %v3182, %v3181
    %v3227 = vpack.c.b16 %v3184, %v3183
    %v3228 = vpack.c.b16 %v3186, %v3185
    %v3229 = vpack.c.b16 %v3188, %v3187
    %v3230 = vpack.c.b16 %v3190, %v3189
    %v3231 = vpack.c.b16 %v3192, %v3191
    %v3232 = vpack.c.b16 %v3194, %v3193
    %v3233 = vpack.c.b16 %v3196, %v3195
    %v3234 = vpack.c.b16 %v3198, %v3197
    %v3235 = vpack.c.b16 %v3200, %v3199
    %v3236 = vpack.c.b16 %v3202, %v3201
    %v3237 = vpack.c.b16 %v3204, %v3203
    %v3238 = vpack.c.b16 %v3206, %v3205
    %3271 = vmatpush.bf16.msra.mxu0 %v3214
    %3272 = vmatpush.bf16.msra.mxu0 %v3213
    %3273 = vmatpush.bf16.msra.mxu0 %v3212
    %3274 = vmatpush.bf16.msra.mxu0 %v3211
    %3275 = vmatpush.bf16.msra.mxu0 %v3210
    %3276 = vmatpush.bf16.msra.mxu0 %v3209
    %3277 = vmatpush.bf16.msra.mxu0 %v3208
    %3278 = vmatpush.bf16.msra.mxu0 %v3207
    %3279 = vmatmul.bf16.gmra.mxu0 %v3007
    %v3280 = vpop.f32.mrf.mxu0
    %v3281 = vadd.f32 %v3077, %v3280
    %v3282 = vpop.f32.mrf.mxu0
    %3283 = vdwg.mxu0
    %3284 = vmatpush.bf16.msra.mxu0 %v3222
    %3285 = vmatpush.bf16.msra.mxu0 %v3221
    %3286 = vmatpush.bf16.msra.mxu0 %v3220
    %3287 = vmatpush.bf16.msra.mxu0 %v3219
    %3288 = vmatpush.bf16.msra.mxu0 %v3218
    %3289 = vmatpush.bf16.msra.mxu0 %v3217
    %3290 = vmatpush.bf16.msra.mxu0 %v3216
    %3291 = vmatpush.bf16.msra.mxu0 %v3215
    %3292 = vmatmul.bf16.gmra.mxu0 %v3008
    %v3293 = vpop.f32.mrf.mxu0
    %v3294 = vadd.f32 %v3281, %v3293
    %v3295 = vpop.f32.mrf.mxu0
    %3296 = vdwg.mxu0
    %3297 = vmatpush.bf16.msra.mxu0 %v3230
    %3298 = vmatpush.bf16.msra.mxu0 %v3229
    %3299 = vmatpush.bf16.msra.mxu0 %v3228
    %3300 = vmatpush.bf16.msra.mxu0 %v3227
    %3301 = vmatpush.bf16.msra.mxu0 %v3226
    %3302 = vmatpush.bf16.msra.mxu0 %v3225
    %3303 = vmatpush.bf16.msra.mxu0 %v3224
    %3304 = vmatpush.bf16.msra.mxu0 %v3223
    %3305 = vmatmul.bf16.gmra.mxu0 %v3009
    %v3306 = vpop.f32.mrf.mxu0
    %v3307 = vadd.f32 %v3294, %v3306
    %v3308 = vpop.f32.mrf.mxu0
    %3309 = vdwg.mxu0
    %3310 = vmatpush.bf16.msra.mxu0 %v3238
    %3311 = vmatpush.bf16.msra.mxu0 %v3237
    %3312 = vmatpush.bf16.msra.mxu0 %v3236
    %3313 = vmatpush.bf16.msra.mxu0 %v3235
    %3314 = vmatpush.bf16.msra.mxu0 %v3234
    %3315 = vmatpush.bf16.msra.mxu0 %v3233
    %3316 = vmatpush.bf16.msra.mxu0 %v3232
    %3317 = vmatpush.bf16.msra.mxu0 %v3231
    %3318 = vmatmul.bf16.gmra.mxu0 %v3010
    %v3319 = vpop.f32.mrf.mxu0
    %v3320 = vadd.f32 %v3307, %v3319
    %v3321 = vpop.f32.mrf.mxu0
    %3322 = vdwg.mxu0
    %3323 = vst [vmem:[%s11] sm:$0xff] %v3320
    // Predicated region
    $region54: #{neuralnet_forward.1} parent=1 // pred_check
      _
    $region55: #{neuralnet_forward.1} parent=1 // pred_check_branch
      %3325 = sbr.rel (0) target = $region57
    $region56: #{neuralnet_forward.1} parent=1 // pred_region
      _
    $region57: #{neuralnet_forward.1} parent=1 // pred_fallthru
      _
    // Predicated region
    $region58: #{neuralnet_forward.1} parent=1 // pred_check
      _
    $region59: #{neuralnet_forward.1} parent=1 // pred_check_branch
      %3327 = sbr.rel (0) target = $region61
    $region60: #{neuralnet_forward.1} parent=1 // pred_region
      _
    $region61: #{neuralnet_forward.1} parent=1 // pred_fallthru
      _
    %3328 = vsyncpa [#allocation19], 1
    %3329 = vsyncpa [#allocation21], 1

</llo_original>
